<compile_context>
chip_gen: v6e
topology: v6e:2x2x1
jax: 0.10.0
libtpu: 0.0.40
codegen_flags: <defaults>
</compile_context>

<pallas_src>
import functools
import math

import jax
import jax.numpy as jnp
from jax.experimental import pallas as pl
from jax.experimental.pallas import tpu as pltpu


# ----------------------------------------------------------------------------
# In-kernel helpers
# ----------------------------------------------------------------------------
def _layernorm(x, gamma, beta, eps=1e-5):
    # PyTorch LayerNorm (biased variance); rsqrt goes to the EUP.
    mu = jnp.mean(x, axis=-1, keepdims=True)
    xc = x - mu
    var = jnp.mean(xc * xc, axis=-1, keepdims=True)
    return xc * jax.lax.rsqrt(var + jnp.float32(eps)) * gamma + beta


def _gelu_tanh(x):
    # tanh-GELU (EUP); |err| vs the exact erf nn.GELU() is <~1e-3, well below the
    # bf16 matmul tolerance of this kernel.
    # TODO(synk): swap back to an erf polynomial if exact f32 GELU parity is needed.
    c = 0.7978845608028654  # sqrt(2/pi)
    return 0.5 * x * (1.0 + jnp.tanh(c * (x + 0.044715 * x * x * x)))


# ----------------------------------------------------------------------------
# Fused kernel: grid = (batch blocks, layers); x resident in VMEM across layers.
# ----------------------------------------------------------------------------
def _fused_block_kernel(x_ref, mrow_ref, mcol_ref,
                        ln1g_ref, ln1b_ref, wqkv_ref, wo_ref,
                        ln2g_ref, ln2b_ref, w1_ref, b1_ref, w2_ref, b2_ref,
                        o_ref, x_scratch,
                        *, num_heads, seq_len, block_b):
    layer = pl.program_id(1)

    # Layer 0: load the input tile into the residual-stream scratch (f32).
    @pl.when(layer == 0)
    def _():
        x_scratch[...] = x_ref[...]

    x = x_scratch[...]                               # (block_b*S, D) f32
    N, D = x.shape
    S, H, Bt = seq_len, num_heads, block_b
    dk = D // H
    inv_sqrt_dk = 1.0 / math.sqrt(dk)

    m_row = mrow_ref[...].astype(jnp.float32)        # (Bt, 1, S) key-padding rows
    m_col = mcol_ref[...].astype(jnp.float32)        # (Bt, S, 1) query-padding cols

    # ---------------- sublayer 1: x + MHA(LayerNorm(x)) ----------------
    xn = _layernorm(x, ln1g_ref[...], ln1b_ref[...]).astype(jnp.bfloat16)
    qkv = jnp.dot(xn, wqkv_ref[...],                 # bf16 x bf16 -> f32
                  preferred_element_type=jnp.float32)          # (N, 3D)

    ctx_rows = []
    rk_rows = []
    for i in range(Bt):                              # static, small
        qkv_i = qkv[i * S:(i + 1) * S, :]
        q = qkv_i[:, 0:D] * inv_sqrt_dk              # 1/sqrt(dk) folded into Q
        k = qkv_i[:, D:2 * D]
        v = qkv_i[:, 2 * D:3 * D]

        # (H, S, dk) head-major views built once per batch row.
        q3 = jnp.stack([q[:, h * dk:(h + 1) * dk] for h in range(H)],
                       axis=0).astype(jnp.bfloat16)
        k3 = jnp.stack([k[:, h * dk:(h + 1) * dk] for h in range(H)],
                       axis=0).astype(jnp.bfloat16)
        v3 = jnp.stack([v[:, h * dk:(h + 1) * dk] for h in range(H)],
                       axis=0).astype(jnp.bfloat16)

        # Additive mask bias rebuilt from the (S,) padding vector (== torch
        # einsum('ab,ac->abc') row); hoisted out of the head dimension.
        # NOTE: assumes an exact 0/1 mask (as in the PyTorch module).
        keep = m_col[i] * m_row[i]                   # (S, S)
        bias = (keep - 1.0) * jnp.float32(1e9)       # 0 valid, -1e9 masked

        s = jnp.einsum('hqd,hkd->hqk', q3, k3,
                       preferred_element_type=jnp.float32)     # (H, S, S)
        s = s + bias[None, :, :]
        s = s - jnp.max(s, axis=-1, keepdims=True)
        e = jnp.exp(s)                               # masked logits -> exactly 0
        p = e * pl.reciprocal(jnp.sum(e, axis=-1, keepdims=True), approx=True)
        ctx3 = jnp.einsum('hqk,hkd->hqd', p.astype(jnp.bfloat16), v3,
                          preferred_element_type=jnp.float32)  # (H, S, dk)
        ctx_i = jnp.concatenate([ctx3[h] for h in range(H)], axis=-1)  # (S, D)

        # Fully-masked query rows -> 0 (matches p_attn.masked_fill on dead rows).
        rk_i = m_col[i] * jnp.sum(m_row[i], axis=-1, keepdims=True)    # (S, 1)
        ctx_i = jnp.where(rk_i > 0.0, ctx_i, jnp.float32(0.0))
        ctx_rows.append(ctx_i)
        rk_rows.append(rk_i)

    ctx = jnp.concatenate(ctx_rows, axis=0).astype(jnp.bfloat16)       # (N, D)
    x = x + jnp.dot(ctx, wo_ref[...], preferred_element_type=jnp.float32)

    # ---------------- sublayer 2: x + FFN(LayerNorm(x)) ----------------
    xn2 = _layernorm(x, ln2g_ref[...], ln2b_ref[...]).astype(jnp.bfloat16)
    h1 = jnp.dot(xn2, w1_ref[...], preferred_element_type=jnp.float32) + b1_ref[...]
    h1 = _gelu_tanh(h1).astype(jnp.bfloat16)
    h2 = jnp.dot(h1, w2_ref[...], preferred_element_type=jnp.float32) + b2_ref[...]
    rk = jnp.concatenate(rk_rows, axis=0)            # (N, 1)
    h2 = jnp.where(rk > 0.0, h2, jnp.float32(0.0))   # PositionwiseFeedForward mask
    x = x + h2

    x_scratch[...] = x                               # carry to next layer
    o_ref[...] = x.astype(o_ref.dtype)


# ----------------------------------------------------------------------------
# TransformerLayer forward (Pallas): one fused call over all layers.
# ----------------------------------------------------------------------------
def transformer_layer_forward(params, x, mask, num_heads, *, block_b=None):
    B, S, D = x.shape
    assert D % num_heads == 0
    L = params["wqkv"].shape[0]
    d_ff = params["w1"].shape[-1]

    if block_b is None:
        block_b = 2 if (B % 2 == 0 and B >= 4) else 1
    assert B % block_b == 0
    grid_b = B // block_b
    Nt = block_b * S

    if mask is None:
        mask = jnp.ones((B, S), jnp.float32)
    m = mask.astype(jnp.float32)
    m_row = m.reshape(B, 1, S)                       # key view
    m_col = m.reshape(B, S, 1)                       # query view
    x2 = x.reshape(B * S, D)                         # lane-dense row slab

    dk = D // num_heads
    flops = B * L * (2 * S * D * 3 * D + 4 * num_heads * S * S * dk
                     + 2 * S * D * D + 4 * S * D * d_ff)
    transcendentals = B * L * (num_heads * S * S + S * d_ff)
    bytes_accessed = (2 * B * S * D * 4                              # x in + out
                      + L * 2 * (3 * D * D + D * D + 2 * D * d_ff)   # bf16 weights
                      + L * 4 * (5 * D + d_ff)                       # ln/bias params
                      + 2 * B * S * 4)                               # mask views
    cost = pl.CostEstimate(flops=int(flops), transcendentals=int(transcendentals),
                           bytes_accessed=int(bytes_accessed))

    kernel = functools.partial(_fused_block_kernel, num_heads=num_heads,
                               seq_len=S, block_b=block_b)

    out2 = pl.pallas_call(
        kernel,
        out_shape=jax.ShapeDtypeStruct((B * S, D), x.dtype),
        grid=(grid_b, L),
        in_specs=[
            pl.BlockSpec((Nt, D), lambda b, l: (b, 0)),              # x rows
            pl.BlockSpec((block_b, 1, S), lambda b, l: (b, 0, 0)),   # mask row view
            pl.BlockSpec((block_b, S, 1), lambda b, l: (b, 0, 0)),   # mask col view
            pl.BlockSpec((None, 1, D), lambda b, l: (l, 0, 0)),      # ln1 gamma
            pl.BlockSpec((None, 1, D), lambda b, l: (l, 0, 0)),      # ln1 beta
            pl.BlockSpec((None, D, 3 * D), lambda b, l: (l, 0, 0)),  # Wqkv (bf16)
            pl.BlockSpec((None, D, D), lambda b, l: (l, 0, 0)),      # Wo   (bf16)
            pl.BlockSpec((None, 1, D), lambda b, l: (l, 0, 0)),      # ln2 gamma
            pl.BlockSpec((None, 1, D), lambda b, l: (l, 0, 0)),      # ln2 beta
            pl.BlockSpec((None, D, d_ff), lambda b, l: (l, 0, 0)),   # W1   (bf16)
            pl.BlockSpec((None, 1, d_ff), lambda b, l: (l, 0, 0)),   # b1
            pl.BlockSpec((None, d_ff, D), lambda b, l: (l, 0, 0)),   # W2   (bf16)
            pl.BlockSpec((None, 1, D), lambda b, l: (l, 0, 0)),      # b2
        ],
        out_specs=pl.BlockSpec((Nt, D), lambda b, l: (b, 0)),
        scratch_shapes=[pltpu.VMEM((Nt, D), jnp.float32)],           # resident x
        compiler_params=pltpu.CompilerParams(
            dimension_semantics=("parallel", "arbitrary"),
            vmem_limit_bytes=32 * 1024 * 1024),
        cost_estimate=cost,
    )(x2, m_row, m_col,
      params["ln1_g"], params["ln1_b"], params["wqkv"], params["wo"],
      params["ln2_g"], params["ln2_b"], params["w1"], params["b1"],
      params["w2"], params["b2"])

    emb = out2.reshape(B, S, D)
    return emb, emb[:, 0, :]


# ----------------------------------------------------------------------------
# Parameter construction (PyTorch layout) + packing / stacking for the kernel
# ----------------------------------------------------------------------------
def init_layer_params(key, D, d_ff):
    ks = jax.random.split(key, 12)
    bd = 1.0 / math.sqrt(D)
    bf = 1.0 / math.sqrt(d_ff)
    u = lambda k, shape, b: jax.random.uniform(k, shape, jnp.float32, -b, b)
    return {
        "wq": u(ks[0], (D, D), bd), "wk": u(ks[1], (D, D), bd),
        "wv": u(ks[2], (D, D), bd), "wo": u(ks[3], (D, D), bd),
        "w1": u(ks[4], (d_ff, D), bd), "b1": u(ks[5], (d_ff,), bd),
        "w2": u(ks[6], (D, d_ff), bf), "b2": u(ks[7], (D,), bf),
        "ln1_g": 1.0 + 0.05 * jax.random.normal(ks[8], (D,), jnp.float32),
        "ln1_b": 0.05 * jax.random.normal(ks[9], (D,), jnp.float32),
        "ln2_g": 1.0 + 0.05 * jax.random.normal(ks[10], (D,), jnp.float32),
        "ln2_b": 0.05 * jax.random.normal(ks[11], (D,), jnp.float32),
    }


def pack_layer_params(p):
    # Pre-transpose to (Din, Dout), fuse Wq/Wk/Wv, cast matmul weights to bf16.
    D = p["wq"].shape[0]
    bf16 = jnp.bfloat16
    return {
        "ln1_g": p["ln1_g"].reshape(1, D), "ln1_b": p["ln1_b"].reshape(1, D),
        "wqkv": jnp.concatenate([p["wq"].T, p["wk"].T, p["wv"].T], axis=1).astype(bf16),
        "wo": p["wo"].T.astype(bf16),
        "ln2_g": p["ln2_g"].reshape(1, D), "ln2_b": p["ln2_b"].reshape(1, D),
        "w1": p["w1"].T.astype(bf16), "b1": p["b1"].reshape(1, -1),
        "w2": p["w2"].T.astype(bf16), "b2": p["b2"].reshape(1, -1),
    }


def pack_and_stack_params(raw_layers):
    packed = [pack_layer_params(p) for p in raw_layers]
    return {k: jnp.stack([lyr[k] for lyr in packed], axis=0) for k in packed[0]}


# ----------------------------------------------------------------------------
# Pure-JAX reference mirroring the PyTorch forward (eval mode, f32, exact GELU)
# ----------------------------------------------------------------------------
def reference_transformer_layer(raw_params, x, mask, num_heads):
    B, S, D = x.shape
    dk = D // num_heads
    mask3 = jnp.einsum("ab,ac->abc", mask, mask) if mask is not None else None

    def ln(v, g, b, eps=1e-5):
        mu = jnp.mean(v, axis=-1, keepdims=True)
        var = jnp.mean((v - mu) ** 2, axis=-1, keepdims=True)
        return (v - mu) / jnp.sqrt(var + eps) * g + b

    for p in raw_params:
        xn = ln(x, p["ln1_g"], p["ln1_b"])

        def proj(w, h):
            return (h @ w.T).reshape(B, S, num_heads, dk).transpose(0, 2, 1, 3)

        q, k, v = proj(p["wq"], xn), proj(p["wk"], xn), proj(p["wv"], xn)
        scores = (q @ k.transpose(0, 1, 3, 2)) / math.sqrt(dk)
        if mask3 is not None:
            mm = mask3[:, None, :, :]
            scores = jnp.where(mm == 0, -1e9, scores)
        p_attn = jax.nn.softmax(scores, axis=-1)
        if mask3 is not None:
            p_attn = jnp.where(mm == 0, 0.0, p_attn)
        ctx = (p_attn @ v).transpose(0, 2, 1, 3).reshape(B, S, D)
        x = x + ctx @ p["wo"].T

        xn2 = ln(x, p["ln2_g"], p["ln2_b"])
        h1 = jax.nn.gelu(xn2 @ p["w1"].T + p["b1"], approximate=False)
        h2 = h1 @ p["w2"].T + p["b2"]
        if mask3 is not None:
            rk = jnp.sum(mask3, axis=-1) > 0
            h2 = jnp.where(rk[..., None], h2, 0.0)
        x = x + h2
    return x, x[:, 0, :]


# ----------------------------------------------------------------------------
if __name__ == "__main__":
    B, S, D, H, L = 4, 16, 128, 4, 2        # batch, seq, d_model, heads, layers
    d_ff = 4 * D

    root = jax.random.PRNGKey(0)
    keys = jax.random.split(root, 1 + L)
    x = jax.random.normal(keys[0], (B, S, D), dtype=jnp.float32)

    # Key-padding mask, TransformerLayer-style (B, S).
    lengths = jnp.array([S, 11, 16, 5], dtype=jnp.int32)
    mask = (jnp.arange(S)[None, :] < lengths[:, None]).astype(jnp.float32)

    raw = [init_layer_params(k, D, d_ff) for k in keys[1:]]
    params = pack_and_stack_params(raw)

    emb, cls_emb = transformer_layer_forward(params, x, mask, H, block_b=2)
    emb = jax.block_until_ready(emb)
    cls_emb = jax.block_until_ready(cls_emb)

    ref_emb, ref_cls = reference_transformer_layer(raw, x, mask, H)

    assert emb.shape == (B, S, D) and cls_emb.shape == (B, D)
    # bf16 matmul operands (f32 accumulation) + tanh-GELU + approx reciprocal:
    # parity vs the f32 exact-GELU reference lands around 1e-2 relative.
    assert jnp.allclose(emb, ref_emb, atol=6e-2, rtol=6e-2), "emb mismatch vs reference"
    assert jnp.allclose(cls_emb, ref_cls, atol=6e-2, rtol=6e-2), "cls_emb mismatch vs reference"

    print("KERNEL_OK")
</pallas_src>

<mosaic_0001>
module attributes {stable_mosaic.version = 11 : i64} {
  func.func @_fused_block_kernel(%arg0: i32, %arg1: i32, %arg2: memref<32x128xf32, #tpu.memory_space<vmem>>, %arg3: memref<2x1x16xf32, #tpu.memory_space<vmem>>, %arg4: memref<2x16x1xf32, #tpu.memory_space<vmem>>, %arg5: memref<1x1x128xf32, #tpu.memory_space<vmem>>, %arg6: memref<1x1x128xf32, #tpu.memory_space<vmem>>, %arg7: memref<1x128x384xbf16, #tpu.memory_space<vmem>>, %arg8: memref<1x128x128xbf16, #tpu.memory_space<vmem>>, %arg9: memref<1x1x128xf32, #tpu.memory_space<vmem>>, %arg10: memref<1x1x128xf32, #tpu.memory_space<vmem>>, %arg11: memref<1x128x512xbf16, #tpu.memory_space<vmem>>, %arg12: memref<1x1x512xf32, #tpu.memory_space<vmem>>, %arg13: memref<1x512x128xbf16, #tpu.memory_space<vmem>>, %arg14: memref<1x1x128xf32, #tpu.memory_space<vmem>>, %arg15: memref<32x128xf32, #tpu.memory_space<vmem>>, %arg16: memref<32x128xf32, #tpu.memory_space<vmem>>) attributes {dimension_semantics = [#tpu.dimension_semantics<parallel>, #tpu.dimension_semantics<arbitrary>], iteration_bounds = array<i64: 2, 2>, scalar_prefetch = 0 : i64, scratch_operands = 1 : i64, tpu.core_type = #tpu.core_type<tc>, window_params = [{transform_indices = @transform_0, window_bounds = array<i64: 32, 128>}, {transform_indices = @transform_1, window_bounds = array<i64: 2, 1, 16>}, {transform_indices = @transform_2, window_bounds = array<i64: 2, 16, 1>}, {transform_indices = @transform_3, window_bounds = array<i64: 1, 1, 128>}, {transform_indices = @transform_4, window_bounds = array<i64: 1, 1, 128>}, {transform_indices = @transform_5, window_bounds = array<i64: 1, 128, 384>}, {transform_indices = @transform_6, window_bounds = array<i64: 1, 128, 128>}, {transform_indices = @transform_7, window_bounds = array<i64: 1, 1, 128>}, {transform_indices = @transform_8, window_bounds = array<i64: 1, 1, 128>}, {transform_indices = @transform_9, window_bounds = array<i64: 1, 128, 512>}, {transform_indices = @transform_10, window_bounds = array<i64: 1, 1, 512>}, {transform_indices = @transform_11, window_bounds = array<i64: 1, 512, 128>}, {transform_indices = @transform_12, window_bounds = array<i64: 1, 1, 128>}, {transform_indices = @transform_13, window_bounds = array<i64: 32, 128>}]} {
    %c0_i32 = arith.constant 0 : i32
    %0 = arith.cmpi eq, %arg1, %c0_i32 : i32
    %1 = arith.extui %0 : i1 to i32
    %c0_i32_0 = arith.constant 0 : i32
    %2 = arith.cmpi ne, %1, %c0_i32_0 : i32
    scf.if %2 {
      %c0_81 = arith.constant 0 : index
      %c0_82 = arith.constant 0 : index
      %275 = vector.load %arg2[%c0_81, %c0_82] : memref<32x128xf32, #tpu.memory_space<vmem>>, vector<32x128xf32>
      %c0_83 = arith.constant 0 : index
      %c0_84 = arith.constant 0 : index
      %276 = vector.load %arg16[%c0_83, %c0_84] : memref<32x128xf32, #tpu.memory_space<vmem>>, vector<32x128xf32>
      tpu.vector_store %arg16[%c0_83, %c0_84], %275 {strides = array<i32>} : memref<32x128xf32, #tpu.memory_space<vmem>>, vector<32x128xf32>,
    } else {
    }
    %c0 = arith.constant 0 : index
    %c0_1 = arith.constant 0 : index
    %3 = vector.load %arg16[%c0, %c0_1] : memref<32x128xf32, #tpu.memory_space<vmem>>, vector<32x128xf32>
    %c0_2 = arith.constant 0 : index
    %c0_3 = arith.constant 0 : index
    %c0_4 = arith.constant 0 : index
    %4 = vector.load %arg3[%c0_2, %c0_3, %c0_4] : memref<2x1x16xf32, #tpu.memory_space<vmem>>, vector<2x1x16xf32>
    %c0_5 = arith.constant 0 : index
    %c0_6 = arith.constant 0 : index
    %c0_7 = arith.constant 0 : index
    %5 = vector.load %arg4[%c0_5, %c0_6, %c0_7] : memref<2x16x1xf32, #tpu.memory_space<vmem>>, vector<2x16x1xf32>
    %c0_8 = arith.constant 0 : index
    %c0_9 = arith.constant 0 : index
    %c0_10 = arith.constant 0 : index
    %6 = vector.load %arg5[%c0_8, %c0_9, %c0_10] : memref<1x1x128xf32, #tpu.memory_space<vmem>>, vector<1x1x128xf32>
    %7 = vector.shape_cast %6 : vector<1x1x128xf32> to vector<1x128xf32>
    %c0_11 = arith.constant 0 : index
    %c0_12 = arith.constant 0 : index
    %c0_13 = arith.constant 0 : index
    %8 = vector.load %arg6[%c0_11, %c0_12, %c0_13] : memref<1x1x128xf32, #tpu.memory_space<vmem>>, vector<1x1x128xf32>
    %9 = vector.shape_cast %8 : vector<1x1x128xf32> to vector<1x128xf32>
    %cst = arith.constant dense<0.000000e+00> : vector<32xf32>
    %10 = vector.multi_reduction <add>, %3, %cst [1] : vector<32x128xf32> to vector<32xf32>
    %11 = vector.shape_cast %10 : vector<32xf32> to vector<32x1xf32>
    %cst_14 = arith.constant 1.280000e+02 : f32
    %12 = vector.broadcast %cst_14 : f32 to vector<32x1xf32>
    %13 = arith.divf %11, %12 : vector<32x1xf32>
    %14 = vector.broadcast %13 : vector<32x1xf32> to vector<32x128xf32>
    %15 = arith.subf %3, %14 : vector<32x128xf32>
    %16 = arith.mulf %15, %15 : vector<32x128xf32>
    %cst_15 = arith.constant dense<0.000000e+00> : vector<32xf32>
    %17 = vector.multi_reduction <add>, %16, %cst_15 [1] : vector<32x128xf32> to vector<32xf32>
    %18 = vector.shape_cast %17 : vector<32xf32> to vector<32x1xf32>
    %cst_16 = arith.constant 1.280000e+02 : f32
    %19 = vector.broadcast %cst_16 : f32 to vector<32x1xf32>
    %20 = arith.divf %18, %19 : vector<32x1xf32>
    %cst_17 = arith.constant 9.99999974E-6 : f32
    %21 = vector.broadcast %cst_17 : f32 to vector<32x1xf32>
    %22 = arith.addf %20, %21 : vector<32x1xf32>
    %23 = math.rsqrt %22 : vector<32x1xf32>
    %24 = vector.broadcast %23 : vector<32x1xf32> to vector<32x128xf32>
    %25 = arith.mulf %15, %24 : vector<32x128xf32>
    %26 = vector.broadcast %7 : vector<1x128xf32> to vector<32x128xf32>
    %27 = arith.mulf %25, %26 : vector<32x128xf32>
    %28 = vector.broadcast %9 : vector<1x128xf32> to vector<32x128xf32>
    %29 = arith.addf %27, %28 : vector<32x128xf32>
    %30 = arith.truncf %29 : vector<32x128xf32> to vector<32x128xbf16>
    %c0_18 = arith.constant 0 : index
    %c0_19 = arith.constant 0 : index
    %c0_20 = arith.constant 0 : index
    %31 = vector.load %arg7[%c0_18, %c0_19, %c0_20] : memref<1x128x384xbf16, #tpu.memory_space<vmem>>, vector<1x128x384xbf16>
    %32 = vector.shape_cast %31 : vector<1x128x384xbf16> to vector<128x384xbf16>
    %cst_21 = arith.constant dense<0.000000e+00> : vector<32x384xf32>
    %33 = tpu.matmul %30, %32, %cst_21 {dimension_numbers = #tpu.dot_dimension_numbers<[1], [0], [0], [1], [0, 0, 1, 1], [], []>} : vector<32x128xbf16>, vector<128x384xbf16>, vector<32x384xf32> -> vector<32x384xf32>
    %34 = vector.extract_strided_slice %33 {offsets = [0, 0], sizes = [16, 384], strides = [1, 1]} : vector<32x384xf32> to vector<16x384xf32>
    %35 = vector.extract_strided_slice %34 {offsets = [0, 0], sizes = [16, 128], strides = [1, 1]} : vector<16x384xf32> to vector<16x128xf32>
    %cst_22 = arith.constant 0.176776692 : f32
    %36 = vector.broadcast %cst_22 : f32 to vector<16x128xf32>
    %37 = arith.mulf %35, %36 : vector<16x128xf32>
    %38 = vector.extract_strided_slice %34 {offsets = [0, 128], sizes = [16, 128], strides = [1, 1]} : vector<16x384xf32> to vector<16x128xf32>
    %39 = vector.extract_strided_slice %34 {offsets = [0, 256], sizes = [16, 128], strides = [1, 1]} : vector<16x384xf32> to vector<16x128xf32>
    %40 = vector.extract_strided_slice %37 {offsets = [0, 0], sizes = [16, 32], strides = [1, 1]} : vector<16x128xf32> to vector<16x32xf32>
    %41 = vector.extract_strided_slice %37 {offsets = [0, 32], sizes = [16, 32], strides = [1, 1]} : vector<16x128xf32> to vector<16x32xf32>
    %42 = vector.extract_strided_slice %37 {offsets = [0, 64], sizes = [16, 32], strides = [1, 1]} : vector<16x128xf32> to vector<16x32xf32>
    %43 = vector.extract_strided_slice %37 {offsets = [0, 96], sizes = [16, 32], strides = [1, 1]} : vector<16x128xf32> to vector<16x32xf32>
    %44 = vector.shape_cast %40 : vector<16x32xf32> to vector<1x16x32xf32>
    %45 = vector.shape_cast %41 : vector<16x32xf32> to vector<1x16x32xf32>
    %46 = vector.shape_cast %42 : vector<16x32xf32> to vector<1x16x32xf32>
    %47 = vector.shape_cast %43 : vector<16x32xf32> to vector<1x16x32xf32>
    %48 = tpu.concatenate %44, %45, %46, %47 in 0 : vector<1x16x32xf32>, vector<1x16x32xf32>, vector<1x16x32xf32>, vector<1x16x32xf32> -> vector<4x16x32xf32>
    %49 = arith.truncf %48 : vector<4x16x32xf32> to vector<4x16x32xbf16>
    %50 = vector.extract_strided_slice %38 {offsets = [0, 0], sizes = [16, 32], strides = [1, 1]} : vector<16x128xf32> to vector<16x32xf32>
    %51 = vector.extract_strided_slice %38 {offsets = [0, 32], sizes = [16, 32], strides = [1, 1]} : vector<16x128xf32> to vector<16x32xf32>
    %52 = vector.extract_strided_slice %38 {offsets = [0, 64], sizes = [16, 32], strides = [1, 1]} : vector<16x128xf32> to vector<16x32xf32>
    %53 = vector.extract_strided_slice %38 {offsets = [0, 96], sizes = [16, 32], strides = [1, 1]} : vector<16x128xf32> to vector<16x32xf32>
    %54 = vector.shape_cast %50 : vector<16x32xf32> to vector<1x16x32xf32>
    %55 = vector.shape_cast %51 : vector<16x32xf32> to vector<1x16x32xf32>
    %56 = vector.shape_cast %52 : vector<16x32xf32> to vector<1x16x32xf32>
    %57 = vector.shape_cast %53 : vector<16x32xf32> to vector<1x16x32xf32>
    %58 = tpu.concatenate %54, %55, %56, %57 in 0 : vector<1x16x32xf32>, vector<1x16x32xf32>, vector<1x16x32xf32>, vector<1x16x32xf32> -> vector<4x16x32xf32>
    %59 = arith.truncf %58 : vector<4x16x32xf32> to vector<4x16x32xbf16>
    %60 = vector.extract_strided_slice %39 {offsets = [0, 0], sizes = [16, 32], strides = [1, 1]} : vector<16x128xf32> to vector<16x32xf32>
    %61 = vector.extract_strided_slice %39 {offsets = [0, 32], sizes = [16, 32], strides = [1, 1]} : vector<16x128xf32> to vector<16x32xf32>
    %62 = vector.extract_strided_slice %39 {offsets = [0, 64], sizes = [16, 32], strides = [1, 1]} : vector<16x128xf32> to vector<16x32xf32>
    %63 = vector.extract_strided_slice %39 {offsets = [0, 96], sizes = [16, 32], strides = [1, 1]} : vector<16x128xf32> to vector<16x32xf32>
    %64 = vector.shape_cast %60 : vector<16x32xf32> to vector<1x16x32xf32>
    %65 = vector.shape_cast %61 : vector<16x32xf32> to vector<1x16x32xf32>
    %66 = vector.shape_cast %62 : vector<16x32xf32> to vector<1x16x32xf32>
    %67 = vector.shape_cast %63 : vector<16x32xf32> to vector<1x16x32xf32>
    %68 = tpu.concatenate %64, %65, %66, %67 in 0 : vector<1x16x32xf32>, vector<1x16x32xf32>, vector<1x16x32xf32>, vector<1x16x32xf32> -> vector<4x16x32xf32>
    %69 = arith.truncf %68 : vector<4x16x32xf32> to vector<4x16x32xbf16>
    %70 = vector.extract_strided_slice %5 {offsets = [0, 0, 0], sizes = [1, 16, 1], strides = [1, 1, 1]} : vector<2x16x1xf32> to vector<1x16x1xf32>
    %71 = vector.shape_cast %70 : vector<1x16x1xf32> to vector<16x1xf32>
    %72 = vector.extract_strided_slice %4 {offsets = [0, 0, 0], sizes = [1, 1, 16], strides = [1, 1, 1]} : vector<2x1x16xf32> to vector<1x1x16xf32>
    %73 = vector.shape_cast %72 : vector<1x1x16xf32> to vector<1x16xf32>
    %74 = vector.broadcast %71 : vector<16x1xf32> to vector<16x16xf32>
    %75 = vector.broadcast %73 : vector<1x16xf32> to vector<16x16xf32>
    %76 = arith.mulf %74, %75 : vector<16x16xf32>
    %cst_23 = arith.constant 1.000000e+00 : f32
    %77 = vector.broadcast %cst_23 : f32 to vector<16x16xf32>
    %78 = arith.subf %76, %77 : vector<16x16xf32>
    %cst_24 = arith.constant 1.000000e+09 : f32
    %79 = vector.broadcast %cst_24 : f32 to vector<16x16xf32>
    %80 = arith.mulf %78, %79 : vector<16x16xf32>
    "tpu.trace_start"() <{level = 10 : i32, message = "hqd,hkd->hqk"}> : () -> ()
    %cst_25 = arith.constant dense<0.000000e+00> : vector<4x16x16xf32>
    %81 = tpu.matmul %49, %59, %cst_25 {dimension_numbers = #tpu.dot_dimension_numbers<[2], [2], [1], [1], [0, 0, 0, 1, 1, 1], [0], [0]>} : vector<4x16x32xbf16>, vector<4x16x32xbf16>, vector<4x16x16xf32> -> vector<4x16x16xf32>
    "tpu.trace_stop"() : () -> ()
    %82 = vector.shape_cast %80 : vector<16x16xf32> to vector<1x16x16xf32>
    %83 = vector.broadcast %82 : vector<1x16x16xf32> to vector<4x16x16xf32>
    %84 = arith.addf %81, %83 : vector<4x16x16xf32>
    %cst_26 = arith.constant dense<0xFF800000> : vector<4x16xf32>
    %85 = vector.multi_reduction <maximumf>, %84, %cst_26 [2] : vector<4x16x16xf32> to vector<4x16xf32>
    %86 = vector.shape_cast %85 : vector<4x16xf32> to vector<4x16x1xf32>
    %87 = vector.broadcast %86 : vector<4x16x1xf32> to vector<4x16x16xf32>
    %88 = arith.subf %84, %87 : vector<4x16x16xf32>
    %89 = math.exp %88 : vector<4x16x16xf32>
    %cst_27 = arith.constant dense<0.000000e+00> : vector<4x16xf32>
    %90 = vector.multi_reduction <add>, %89, %cst_27 [2] : vector<4x16x16xf32> to vector<4x16xf32>
    %91 = vector.shape_cast %90 : vector<4x16xf32> to vector<4x16x1xf32>
    %92 = tpu.reciprocal %91 {approx = true} : vector<4x16x1xf32> -> vector<4x16x1xf32>
    %93 = vector.broadcast %92 : vector<4x16x1xf32> to vector<4x16x16xf32>
    %94 = arith.mulf %89, %93 : vector<4x16x16xf32>
    %95 = arith.truncf %94 : vector<4x16x16xf32> to vector<4x16x16xbf16>
    "tpu.trace_start"() <{level = 10 : i32, message = "hqk,hkd->hqd"}> : () -> ()
    %cst_28 = arith.constant dense<0.000000e+00> : vector<4x16x32xf32>
    %96 = tpu.matmul %95, %69, %cst_28 {dimension_numbers = #tpu.dot_dimension_numbers<[2], [1], [1], [2], [0, 0, 0, 1, 1, 2], [0], [0]>} : vector<4x16x16xbf16>, vector<4x16x32xbf16>, vector<4x16x32xf32> -> vector<4x16x32xf32>
    "tpu.trace_stop"() : () -> ()
    %97 = vector.extract_strided_slice %96 {offsets = [0, 0, 0], sizes = [1, 16, 32], strides = [1, 1, 1]} : vector<4x16x32xf32> to vector<1x16x32xf32>
    %98 = vector.shape_cast %97 : vector<1x16x32xf32> to vector<16x32xf32>
    %99 = vector.extract_strided_slice %96 {offsets = [1, 0, 0], sizes = [1, 16, 32], strides = [1, 1, 1]} : vector<4x16x32xf32> to vector<1x16x32xf32>
    %100 = vector.shape_cast %99 : vector<1x16x32xf32> to vector<16x32xf32>
    %101 = vector.extract_strided_slice %96 {offsets = [2, 0, 0], sizes = [1, 16, 32], strides = [1, 1, 1]} : vector<4x16x32xf32> to vector<1x16x32xf32>
    %102 = vector.shape_cast %101 : vector<1x16x32xf32> to vector<16x32xf32>
    %103 = vector.extract_strided_slice %96 {offsets = [3, 0, 0], sizes = [1, 16, 32], strides = [1, 1, 1]} : vector<4x16x32xf32> to vector<1x16x32xf32>
    %104 = vector.shape_cast %103 : vector<1x16x32xf32> to vector<16x32xf32>
    %105 = tpu.concatenate %98, %100, %102, %104 in 1 : vector<16x32xf32>, vector<16x32xf32>, vector<16x32xf32>, vector<16x32xf32> -> vector<16x128xf32>
    %106 = vector.extract_strided_slice %5 {offsets = [0, 0, 0], sizes = [1, 16, 1], strides = [1, 1, 1]} : vector<2x16x1xf32> to vector<1x16x1xf32>
    %107 = vector.shape_cast %106 : vector<1x16x1xf32> to vector<16x1xf32>
    %108 = vector.extract_strided_slice %4 {offsets = [0, 0, 0], sizes = [1, 1, 16], strides = [1, 1, 1]} : vector<2x1x16xf32> to vector<1x1x16xf32>
    %109 = vector.shape_cast %108 : vector<1x1x16xf32> to vector<1x16xf32>
    %cst_29 = arith.constant dense<0.000000e+00> : vector<1xf32>
    %110 = vector.multi_reduction <add>, %109, %cst_29 [1] : vector<1x16xf32> to vector<1xf32>
    %111 = vector.shape_cast %110 : vector<1xf32> to vector<1x1xf32>
    %112 = vector.broadcast %111 : vector<1x1xf32> to vector<16x1xf32>
    %113 = arith.mulf %107, %112 : vector<16x1xf32>
    %cst_30 = arith.constant 0.000000e+00 : f32
    %114 = vector.broadcast %cst_30 : f32 to vector<16x1xf32>
    %115 = arith.cmpf ogt, %113, %114 : vector<16x1xf32>
    %cst_31 = arith.constant 0.000000e+00 : f32
    %116 = vector.shape_cast %115 : vector<16x1xi1> to vector<16x1xi1>
    %117 = vector.broadcast %116 : vector<16x1xi1> to vector<16x128xi1>
    %118 = vector.broadcast %cst_31 : f32 to vector<16x128xf32>
    %119 = arith.select %117, %105, %118 : vector<16x128xi1>, vector<16x128xf32>
    %120 = vector.extract_strided_slice %33 {offsets = [16, 0], sizes = [16, 384], strides = [1, 1]} : vector<32x384xf32> to vector<16x384xf32>
    %121 = vector.extract_strided_slice %120 {offsets = [0, 0], sizes = [16, 128], strides = [1, 1]} : vector<16x384xf32> to vector<16x128xf32>
    %cst_32 = arith.constant 0.176776692 : f32
    %122 = vector.broadcast %cst_32 : f32 to vector<16x128xf32>
    %123 = arith.mulf %121, %122 : vector<16x128xf32>
    %124 = vector.extract_strided_slice %120 {offsets = [0, 128], sizes = [16, 128], strides = [1, 1]} : vector<16x384xf32> to vector<16x128xf32>
    %125 = vector.extract_strided_slice %120 {offsets = [0, 256], sizes = [16, 128], strides = [1, 1]} : vector<16x384xf32> to vector<16x128xf32>
    %126 = vector.extract_strided_slice %123 {offsets = [0, 0], sizes = [16, 32], strides = [1, 1]} : vector<16x128xf32> to vector<16x32xf32>
    %127 = vector.extract_strided_slice %123 {offsets = [0, 32], sizes = [16, 32], strides = [1, 1]} : vector<16x128xf32> to vector<16x32xf32>
    %128 = vector.extract_strided_slice %123 {offsets = [0, 64], sizes = [16, 32], strides = [1, 1]} : vector<16x128xf32> to vector<16x32xf32>
    %129 = vector.extract_strided_slice %123 {offsets = [0, 96], sizes = [16, 32], strides = [1, 1]} : vector<16x128xf32> to vector<16x32xf32>
    %130 = vector.shape_cast %126 : vector<16x32xf32> to vector<1x16x32xf32>
    %131 = vector.shape_cast %127 : vector<16x32xf32> to vector<1x16x32xf32>
    %132 = vector.shape_cast %128 : vector<16x32xf32> to vector<1x16x32xf32>
    %133 = vector.shape_cast %129 : vector<16x32xf32> to vector<1x16x32xf32>
    %134 = tpu.concatenate %130, %131, %132, %133 in 0 : vector<1x16x32xf32>, vector<1x16x32xf32>, vector<1x16x32xf32>, vector<1x16x32xf32> -> vector<4x16x32xf32>
    %135 = arith.truncf %134 : vector<4x16x32xf32> to vector<4x16x32xbf16>
    %136 = vector.extract_strided_slice %124 {offsets = [0, 0], sizes = [16, 32], strides = [1, 1]} : vector<16x128xf32> to vector<16x32xf32>
    %137 = vector.extract_strided_slice %124 {offsets = [0, 32], sizes = [16, 32], strides = [1, 1]} : vector<16x128xf32> to vector<16x32xf32>
    %138 = vector.extract_strided_slice %124 {offsets = [0, 64], sizes = [16, 32], strides = [1, 1]} : vector<16x128xf32> to vector<16x32xf32>
    %139 = vector.extract_strided_slice %124 {offsets = [0, 96], sizes = [16, 32], strides = [1, 1]} : vector<16x128xf32> to vector<16x32xf32>
    %140 = vector.shape_cast %136 : vector<16x32xf32> to vector<1x16x32xf32>
    %141 = vector.shape_cast %137 : vector<16x32xf32> to vector<1x16x32xf32>
    %142 = vector.shape_cast %138 : vector<16x32xf32> to vector<1x16x32xf32>
    %143 = vector.shape_cast %139 : vector<16x32xf32> to vector<1x16x32xf32>
    %144 = tpu.concatenate %140, %141, %142, %143 in 0 : vector<1x16x32xf32>, vector<1x16x32xf32>, vector<1x16x32xf32>, vector<1x16x32xf32> -> vector<4x16x32xf32>
    %145 = arith.truncf %144 : vector<4x16x32xf32> to vector<4x16x32xbf16>
    %146 = vector.extract_strided_slice %125 {offsets = [0, 0], sizes = [16, 32], strides = [1, 1]} : vector<16x128xf32> to vector<16x32xf32>
    %147 = vector.extract_strided_slice %125 {offsets = [0, 32], sizes = [16, 32], strides = [1, 1]} : vector<16x128xf32> to vector<16x32xf32>
    %148 = vector.extract_strided_slice %125 {offsets = [0, 64], sizes = [16, 32], strides = [1, 1]} : vector<16x128xf32> to vector<16x32xf32>
    %149 = vector.extract_strided_slice %125 {offsets = [0, 96], sizes = [16, 32], strides = [1, 1]} : vector<16x128xf32> to vector<16x32xf32>
    %150 = vector.shape_cast %146 : vector<16x32xf32> to vector<1x16x32xf32>
    %151 = vector.shape_cast %147 : vector<16x32xf32> to vector<1x16x32xf32>
    %152 = vector.shape_cast %148 : vector<16x32xf32> to vector<1x16x32xf32>
    %153 = vector.shape_cast %149 : vector<16x32xf32> to vector<1x16x32xf32>
    %154 = tpu.concatenate %150, %151, %152, %153 in 0 : vector<1x16x32xf32>, vector<1x16x32xf32>, vector<1x16x32xf32>, vector<1x16x32xf32> -> vector<4x16x32xf32>
    %155 = arith.truncf %154 : vector<4x16x32xf32> to vector<4x16x32xbf16>
    %156 = vector.extract_strided_slice %5 {offsets = [1, 0, 0], sizes = [1, 16, 1], strides = [1, 1, 1]} : vector<2x16x1xf32> to vector<1x16x1xf32>
    %157 = vector.shape_cast %156 : vector<1x16x1xf32> to vector<16x1xf32>
    %158 = vector.extract_strided_slice %4 {offsets = [1, 0, 0], sizes = [1, 1, 16], strides = [1, 1, 1]} : vector<2x1x16xf32> to vector<1x1x16xf32>
    %159 = vector.shape_cast %158 : vector<1x1x16xf32> to vector<1x16xf32>
    %160 = vector.broadcast %157 : vector<16x1xf32> to vector<16x16xf32>
    %161 = vector.broadcast %159 : vector<1x16xf32> to vector<16x16xf32>
    %162 = arith.mulf %160, %161 : vector<16x16xf32>
    %cst_33 = arith.constant 1.000000e+00 : f32
    %163 = vector.broadcast %cst_33 : f32 to vector<16x16xf32>
    %164 = arith.subf %162, %163 : vector<16x16xf32>
    %cst_34 = arith.constant 1.000000e+09 : f32
    %165 = vector.broadcast %cst_34 : f32 to vector<16x16xf32>
    %166 = arith.mulf %164, %165 : vector<16x16xf32>
    "tpu.trace_start"() <{level = 10 : i32, message = "hqd,hkd->hqk"}> : () -> ()
    %cst_35 = arith.constant dense<0.000000e+00> : vector<4x16x16xf32>
    %167 = tpu.matmul %135, %145, %cst_35 {dimension_numbers = #tpu.dot_dimension_numbers<[2], [2], [1], [1], [0, 0, 0, 1, 1, 1], [0], [0]>} : vector<4x16x32xbf16>, vector<4x16x32xbf16>, vector<4x16x16xf32> -> vector<4x16x16xf32>
    "tpu.trace_stop"() : () -> ()
    %168 = vector.shape_cast %166 : vector<16x16xf32> to vector<1x16x16xf32>
    %169 = vector.broadcast %168 : vector<1x16x16xf32> to vector<4x16x16xf32>
    %170 = arith.addf %167, %169 : vector<4x16x16xf32>
    %cst_36 = arith.constant dense<0xFF800000> : vector<4x16xf32>
    %171 = vector.multi_reduction <maximumf>, %170, %cst_36 [2] : vector<4x16x16xf32> to vector<4x16xf32>
    %172 = vector.shape_cast %171 : vector<4x16xf32> to vector<4x16x1xf32>
    %173 = vector.broadcast %172 : vector<4x16x1xf32> to vector<4x16x16xf32>
    %174 = arith.subf %170, %173 : vector<4x16x16xf32>
    %175 = math.exp %174 : vector<4x16x16xf32>
    %cst_37 = arith.constant dense<0.000000e+00> : vector<4x16xf32>
    %176 = vector.multi_reduction <add>, %175, %cst_37 [2] : vector<4x16x16xf32> to vector<4x16xf32>
    %177 = vector.shape_cast %176 : vector<4x16xf32> to vector<4x16x1xf32>
    %178 = tpu.reciprocal %177 {approx = true} : vector<4x16x1xf32> -> vector<4x16x1xf32>
    %179 = vector.broadcast %178 : vector<4x16x1xf32> to vector<4x16x16xf32>
    %180 = arith.mulf %175, %179 : vector<4x16x16xf32>
    %181 = arith.truncf %180 : vector<4x16x16xf32> to vector<4x16x16xbf16>
    "tpu.trace_start"() <{level = 10 : i32, message = "hqk,hkd->hqd"}> : () -> ()
    %cst_38 = arith.constant dense<0.000000e+00> : vector<4x16x32xf32>
    %182 = tpu.matmul %181, %155, %cst_38 {dimension_numbers = #tpu.dot_dimension_numbers<[2], [1], [1], [2], [0, 0, 0, 1, 1, 2], [0], [0]>} : vector<4x16x16xbf16>, vector<4x16x32xbf16>, vector<4x16x32xf32> -> vector<4x16x32xf32>
    "tpu.trace_stop"() : () -> ()
    %183 = vector.extract_strided_slice %182 {offsets = [0, 0, 0], sizes = [1, 16, 32], strides = [1, 1, 1]} : vector<4x16x32xf32> to vector<1x16x32xf32>
    %184 = vector.shape_cast %183 : vector<1x16x32xf32> to vector<16x32xf32>
    %185 = vector.extract_strided_slice %182 {offsets = [1, 0, 0], sizes = [1, 16, 32], strides = [1, 1, 1]} : vector<4x16x32xf32> to vector<1x16x32xf32>
    %186 = vector.shape_cast %185 : vector<1x16x32xf32> to vector<16x32xf32>
    %187 = vector.extract_strided_slice %182 {offsets = [2, 0, 0], sizes = [1, 16, 32], strides = [1, 1, 1]} : vector<4x16x32xf32> to vector<1x16x32xf32>
    %188 = vector.shape_cast %187 : vector<1x16x32xf32> to vector<16x32xf32>
    %189 = vector.extract_strided_slice %182 {offsets = [3, 0, 0], sizes = [1, 16, 32], strides = [1, 1, 1]} : vector<4x16x32xf32> to vector<1x16x32xf32>
    %190 = vector.shape_cast %189 : vector<1x16x32xf32> to vector<16x32xf32>
    %191 = tpu.concatenate %184, %186, %188, %190 in 1 : vector<16x32xf32>, vector<16x32xf32>, vector<16x32xf32>, vector<16x32xf32> -> vector<16x128xf32>
    %192 = vector.extract_strided_slice %5 {offsets = [1, 0, 0], sizes = [1, 16, 1], strides = [1, 1, 1]} : vector<2x16x1xf32> to vector<1x16x1xf32>
    %193 = vector.shape_cast %192 : vector<1x16x1xf32> to vector<16x1xf32>
    %194 = vector.extract_strided_slice %4 {offsets = [1, 0, 0], sizes = [1, 1, 16], strides = [1, 1, 1]} : vector<2x1x16xf32> to vector<1x1x16xf32>
    %195 = vector.shape_cast %194 : vector<1x1x16xf32> to vector<1x16xf32>
    %cst_39 = arith.constant dense<0.000000e+00> : vector<1xf32>
    %196 = vector.multi_reduction <add>, %195, %cst_39 [1] : vector<1x16xf32> to vector<1xf32>
    %197 = vector.shape_cast %196 : vector<1xf32> to vector<1x1xf32>
    %198 = vector.broadcast %197 : vector<1x1xf32> to vector<16x1xf32>
    %199 = arith.mulf %193, %198 : vector<16x1xf32>
    %cst_40 = arith.constant 0.000000e+00 : f32
    %200 = vector.broadcast %cst_40 : f32 to vector<16x1xf32>
    %201 = arith.cmpf ogt, %199, %200 : vector<16x1xf32>
    %cst_41 = arith.constant 0.000000e+00 : f32
    %202 = vector.shape_cast %201 : vector<16x1xi1> to vector<16x1xi1>
    %203 = vector.broadcast %202 : vector<16x1xi1> to vector<16x128xi1>
    %204 = vector.broadcast %cst_41 : f32 to vector<16x128xf32>
    %205 = arith.select %203, %191, %204 : vector<16x128xi1>, vector<16x128xf32>
    %206 = tpu.concatenate %119, %205 in 0 : vector<16x128xf32>, vector<16x128xf32> -> vector<32x128xf32>
    %207 = arith.truncf %206 : vector<32x128xf32> to vector<32x128xbf16>
    %c0_42 = arith.constant 0 : index
    %c0_43 = arith.constant 0 : index
    %c0_44 = arith.constant 0 : index
    %208 = vector.load %arg8[%c0_42, %c0_43, %c0_44] : memref<1x128x128xbf16, #tpu.memory_space<vmem>>, vector<1x128x128xbf16>
    %209 = vector.shape_cast %208 : vector<1x128x128xbf16> to vector<128x128xbf16>
    %cst_45 = arith.constant dense<0.000000e+00> : vector<32x128xf32>
    %210 = tpu.matmul %207, %209, %cst_45 {dimension_numbers = #tpu.dot_dimension_numbers<[1], [0], [0], [1], [0, 0, 1, 1], [], []>} : vector<32x128xbf16>, vector<128x128xbf16>, vector<32x128xf32> -> vector<32x128xf32>
    %211 = arith.addf %3, %210 : vector<32x128xf32>
    %c0_46 = arith.constant 0 : index
    %c0_47 = arith.constant 0 : index
    %c0_48 = arith.constant 0 : index
    %212 = vector.load %arg9[%c0_46, %c0_47, %c0_48] : memref<1x1x128xf32, #tpu.memory_space<vmem>>, vector<1x1x128xf32>
    %213 = vector.shape_cast %212 : vector<1x1x128xf32> to vector<1x128xf32>
    %c0_49 = arith.constant 0 : index
    %c0_50 = arith.constant 0 : index
    %c0_51 = arith.constant 0 : index
    %214 = vector.load %arg10[%c0_49, %c0_50, %c0_51] : memref<1x1x128xf32, #tpu.memory_space<vmem>>, vector<1x1x128xf32>
    %215 = vector.shape_cast %214 : vector<1x1x128xf32> to vector<1x128xf32>
    %cst_52 = arith.constant dense<0.000000e+00> : vector<32xf32>
    %216 = vector.multi_reduction <add>, %211, %cst_52 [1] : vector<32x128xf32> to vector<32xf32>
    %217 = vector.shape_cast %216 : vector<32xf32> to vector<32x1xf32>
    %cst_53 = arith.constant 1.280000e+02 : f32
    %218 = vector.broadcast %cst_53 : f32 to vector<32x1xf32>
    %219 = arith.divf %217, %218 : vector<32x1xf32>
    %220 = vector.broadcast %219 : vector<32x1xf32> to vector<32x128xf32>
    %221 = arith.subf %211, %220 : vector<32x128xf32>
    %222 = arith.mulf %221, %221 : vector<32x128xf32>
    %cst_54 = arith.constant dense<0.000000e+00> : vector<32xf32>
    %223 = vector.multi_reduction <add>, %222, %cst_54 [1] : vector<32x128xf32> to vector<32xf32>
    %224 = vector.shape_cast %223 : vector<32xf32> to vector<32x1xf32>
    %cst_55 = arith.constant 1.280000e+02 : f32
    %225 = vector.broadcast %cst_55 : f32 to vector<32x1xf32>
    %226 = arith.divf %224, %225 : vector<32x1xf32>
    %cst_56 = arith.constant 9.99999974E-6 : f32
    %227 = vector.broadcast %cst_56 : f32 to vector<32x1xf32>
    %228 = arith.addf %226, %227 : vector<32x1xf32>
    %229 = math.rsqrt %228 : vector<32x1xf32>
    %230 = vector.broadcast %229 : vector<32x1xf32> to vector<32x128xf32>
    %231 = arith.mulf %221, %230 : vector<32x128xf32>
    %232 = vector.broadcast %213 : vector<1x128xf32> to vector<32x128xf32>
    %233 = arith.mulf %231, %232 : vector<32x128xf32>
    %234 = vector.broadcast %215 : vector<1x128xf32> to vector<32x128xf32>
    %235 = arith.addf %233, %234 : vector<32x128xf32>
    %236 = arith.truncf %235 : vector<32x128xf32> to vector<32x128xbf16>
    %c0_57 = arith.constant 0 : index
    %c0_58 = arith.constant 0 : index
    %c0_59 = arith.constant 0 : index
    %237 = vector.load %arg11[%c0_57, %c0_58, %c0_59] : memref<1x128x512xbf16, #tpu.memory_space<vmem>>, vector<1x128x512xbf16>
    %238 = vector.shape_cast %237 : vector<1x128x512xbf16> to vector<128x512xbf16>
    %cst_60 = arith.constant dense<0.000000e+00> : vector<32x512xf32>
    %239 = tpu.matmul %236, %238, %cst_60 {dimension_numbers = #tpu.dot_dimension_numbers<[1], [0], [0], [1], [0, 0, 1, 1], [], []>} : vector<32x128xbf16>, vector<128x512xbf16>, vector<32x512xf32> -> vector<32x512xf32>
    %c0_61 = arith.constant 0 : index
    %c0_62 = arith.constant 0 : index
    %c0_63 = arith.constant 0 : index
    %240 = vector.load %arg12[%c0_61, %c0_62, %c0_63] : memref<1x1x512xf32, #tpu.memory_space<vmem>>, vector<1x1x512xf32>
    %241 = vector.shape_cast %240 : vector<1x1x512xf32> to vector<1x512xf32>
    %242 = vector.broadcast %241 : vector<1x512xf32> to vector<32x512xf32>
    %243 = arith.addf %239, %242 : vector<32x512xf32>
    %cst_64 = arith.constant 5.000000e-01 : f32
    %244 = vector.broadcast %cst_64 : f32 to vector<32x512xf32>
    %245 = arith.mulf %244, %243 : vector<32x512xf32>
    %cst_65 = arith.constant 4.471500e-02 : f32
    %246 = vector.broadcast %cst_65 : f32 to vector<32x512xf32>
    %247 = arith.mulf %246, %243 : vector<32x512xf32>
    %248 = arith.mulf %247, %243 : vector<32x512xf32>
    %249 = arith.mulf %248, %243 : vector<32x512xf32>
    %250 = arith.addf %243, %249 : vector<32x512xf32>
    %cst_66 = arith.constant 0.797884583 : f32
    %251 = vector.broadcast %cst_66 : f32 to vector<32x512xf32>
    %252 = arith.mulf %251, %250 : vector<32x512xf32>
    %253 = math.tanh %252 : vector<32x512xf32>
    %cst_67 = arith.constant 1.000000e+00 : f32
    %254 = vector.broadcast %cst_67 : f32 to vector<32x512xf32>
    %255 = arith.addf %254, %253 : vector<32x512xf32>
    %256 = arith.mulf %245, %255 : vector<32x512xf32>
    %257 = arith.truncf %256 : vector<32x512xf32> to vector<32x512xbf16>
    %c0_68 = arith.constant 0 : index
    %c0_69 = arith.constant 0 : index
    %c0_70 = arith.constant 0 : index
    %258 = vector.load %arg13[%c0_68, %c0_69, %c0_70] : memref<1x512x128xbf16, #tpu.memory_space<vmem>>, vector<1x512x128xbf16>
    %259 = vector.shape_cast %258 : vector<1x512x128xbf16> to vector<512x128xbf16>
    %cst_71 = arith.constant dense<0.000000e+00> : vector<32x128xf32>
    %260 = tpu.matmul %257, %259, %cst_71 {dimension_numbers = #tpu.dot_dimension_numbers<[1], [0], [0], [1], [0, 0, 1, 1], [], []>} : vector<32x512xbf16>, vector<512x128xbf16>, vector<32x128xf32> -> vector<32x128xf32>
    %c0_72 = arith.constant 0 : index
    %c0_73 = arith.constant 0 : index
    %c0_74 = arith.constant 0 : index
    %261 = vector.load %arg14[%c0_72, %c0_73, %c0_74] : memref<1x1x128xf32, #tpu.memory_space<vmem>>, vector<1x1x128xf32>
    %262 = vector.shape_cast %261 : vector<1x1x128xf32> to vector<1x128xf32>
    %263 = vector.broadcast %262 : vector<1x128xf32> to vector<32x128xf32>
    %264 = arith.addf %260, %263 : vector<32x128xf32>
    %265 = tpu.concatenate %113, %199 in 0 : vector<16x1xf32>, vector<16x1xf32> -> vector<32x1xf32>
    %cst_75 = arith.constant 0.000000e+00 : f32
    %266 = vector.broadcast %cst_75 : f32 to vector<32x1xf32>
    %267 = arith.cmpf ogt, %265, %266 : vector<32x1xf32>
    %cst_76 = arith.constant 0.000000e+00 : f32
    %268 = vector.shape_cast %267 : vector<32x1xi1> to vector<32x1xi1>
    %269 = vector.broadcast %268 : vector<32x1xi1> to vector<32x128xi1>
    %270 = vector.broadcast %cst_76 : f32 to vector<32x128xf32>
    %271 = arith.select %269, %264, %270 : vector<32x128xi1>, vector<32x128xf32>
    %272 = arith.addf %211, %271 : vector<32x128xf32>
    %c0_77 = arith.constant 0 : index
    %c0_78 = arith.constant 0 : index
    %273 = vector.load %arg16[%c0_77, %c0_78] : memref<32x128xf32, #tpu.memory_space<vmem>>, vector<32x128xf32>
    tpu.vector_store %arg16[%c0_77, %c0_78], %272 {strides = array<i32>} : memref<32x128xf32, #tpu.memory_space<vmem>>, vector<32x128xf32>,
    %c0_79 = arith.constant 0 : index
    %c0_80 = arith.constant 0 : index
    %274 = vector.load %arg15[%c0_79, %c0_80] : memref<32x128xf32, #tpu.memory_space<vmem>>, vector<32x128xf32>
    tpu.vector_store %arg15[%c0_79, %c0_80], %272 {strides = array<i32>} : memref<32x128xf32, #tpu.memory_space<vmem>>, vector<32x128xf32>,
    return
  }
  func.func @transform_0(%arg0: i32, %arg1: i32) -> (i32, i32) {
    %c0_i32 = arith.constant 0 : i32
    %c0_i32_0 = arith.constant 0 : i32
    return %arg0, %c0_i32 : i32, i32
  }
  func.func @transform_1(%arg0: i32, %arg1: i32) -> (i32, i32, i32) {
    %c0_i32 = arith.constant 0 : i32
    %c0_i32_0 = arith.constant 0 : i32
    %c0_i32_1 = arith.constant 0 : i32
    return %arg0, %c0_i32, %c0_i32_0 : i32, i32, i32
  }
  func.func @transform_2(%arg0: i32, %arg1: i32) -> (i32, i32, i32) {
    %c0_i32 = arith.constant 0 : i32
    %c0_i32_0 = arith.constant 0 : i32
    %c0_i32_1 = arith.constant 0 : i32
    return %arg0, %c0_i32, %c0_i32_0 : i32, i32, i32
  }
  func.func @transform_3(%arg0: i32, %arg1: i32) -> (i32, i32, i32) {
    %c0_i32 = arith.constant 0 : i32
    %c0_i32_0 = arith.constant 0 : i32
    %c0_i32_1 = arith.constant 0 : i32
    return %arg1, %c0_i32, %c0_i32_0 : i32, i32, i32
  }
  func.func @transform_4(%arg0: i32, %arg1: i32) -> (i32, i32, i32) {
    %c0_i32 = arith.constant 0 : i32
    %c0_i32_0 = arith.constant 0 : i32
    %c0_i32_1 = arith.constant 0 : i32
    return %arg1, %c0_i32, %c0_i32_0 : i32, i32, i32
  }
  func.func @transform_5(%arg0: i32, %arg1: i32) -> (i32, i32, i32) {
    %c0_i32 = arith.constant 0 : i32
    %c0_i32_0 = arith.constant 0 : i32
    %c0_i32_1 = arith.constant 0 : i32
    return %arg1, %c0_i32, %c0_i32_0 : i32, i32, i32
  }
  func.func @transform_6(%arg0: i32, %arg1: i32) -> (i32, i32, i32) {
    %c0_i32 = arith.constant 0 : i32
    %c0_i32_0 = arith.constant 0 : i32
    %c0_i32_1 = arith.constant 0 : i32
    return %arg1, %c0_i32, %c0_i32_0 : i32, i32, i32
  }
  func.func @transform_7(%arg0: i32, %arg1: i32) -> (i32, i32, i32) {
    %c0_i32 = arith.constant 0 : i32
    %c0_i32_0 = arith.constant 0 : i32
    %c0_i32_1 = arith.constant 0 : i32
    return %arg1, %c0_i32, %c0_i32_0 : i32, i32, i32
  }
  func.func @transform_8(%arg0: i32, %arg1: i32) -> (i32, i32, i32) {
    %c0_i32 = arith.constant 0 : i32
    %c0_i32_0 = arith.constant 0 : i32
    %c0_i32_1 = arith.constant 0 : i32
    return %arg1, %c0_i32, %c0_i32_0 : i32, i32, i32
  }
  func.func @transform_9(%arg0: i32, %arg1: i32) -> (i32, i32, i32) {
    %c0_i32 = arith.constant 0 : i32
    %c0_i32_0 = arith.constant 0 : i32
    %c0_i32_1 = arith.constant 0 : i32
    return %arg1, %c0_i32, %c0_i32_0 : i32, i32, i32
  }
  func.func @transform_10(%arg0: i32, %arg1: i32) -> (i32, i32, i32) {
    %c0_i32 = arith.constant 0 : i32
    %c0_i32_0 = arith.constant 0 : i32
    %c0_i32_1 = arith.constant 0 : i32
    return %arg1, %c0_i32, %c0_i32_0 : i32, i32, i32
  }
  func.func @transform_11(%arg0: i32, %arg1: i32) -> (i32, i32, i32) {
    %c0_i32 = arith.constant 0 : i32
    %c0_i32_0 = arith.constant 0 : i32
    %c0_i32_1 = arith.constant 0 : i32
    return %arg1, %c0_i32, %c0_i32_0 : i32, i32, i32
  }
  func.func @transform_12(%arg0: i32, %arg1: i32) -> (i32, i32, i32) {
    %c0_i32 = arith.constant 0 : i32
    %c0_i32_0 = arith.constant 0 : i32
    %c0_i32_1 = arith.constant 0 : i32
    return %arg1, %c0_i32, %c0_i32_0 : i32, i32, i32
  }
  func.func @transform_13(%arg0: i32, %arg1: i32) -> (i32, i32) {
    %c0_i32 = arith.constant 0 : i32
    %c0_i32_0 = arith.constant 0 : i32
    return %arg0, %c0_i32 : i32, i32
  }
}

</mosaic_0001>

<llo_original>
// kernel: tpu_custom_call.1
$region0: #{tpu_custom_call.1}
  #allocation0 [shape = 'u32[]', space=smem, size = 0x4, offset = 0x4, fixed_abs, tag = 'smem constant byte address 0x4 - core index']
  #allocation1 [shape = 'u32[144,128]{1,0:T(1,128)}', space=vmem, size = 0x12000, scoped, tag = 'internal scratch']
  #allocation2 [shape = 'f32[32,128]{1,0:T(8,128)}', space=vmem, size = 0x4000, scoped, tag = 'scratch operand']
  %s0 = inlined_call_operand.vmem [shape: f32[64,128], index: 0, kind: input, shape index: {}]
  %s1 = inlined_call_operand.hbm [shape: f32[4,1,16], index: 1, kind: input, shape index: {}]
  %s2 = inlined_call_operand.vmem [shape: f32[4,16,1], index: 2, kind: input, shape index: {}]
  %s3 = inlined_call_operand.hbm [shape: f32[2,1,128], index: 3, kind: input, shape index: {}]
  %s4 = inlined_call_operand.vmem [shape: f32[2,1,128], index: 4, kind: input, shape index: {}]
  %s5 = inlined_call_operand.hbm [shape: bf16[2,128,384], index: 5, kind: input, shape index: {}]
  %s6 = inlined_call_operand.hbm [shape: bf16[2,128,128], index: 6, kind: input, shape index: {}]
  %s7 = inlined_call_operand.vmem [shape: f32[2,1,128], index: 7, kind: input, shape index: {}]
  %s8 = inlined_call_operand.vmem [shape: f32[2,1,128], index: 8, kind: input, shape index: {}]
  %s9 = inlined_call_operand.hbm [shape: bf16[2,128,512], index: 9, kind: input, shape index: {}]
  %s10 = inlined_call_operand.vmem [shape: f32[2,1,512], index: 10, kind: input, shape index: {}]
  %s11 = inlined_call_operand.hbm [shape: bf16[2,512,128], index: 11, kind: input, shape index: {}]
  %s12 = inlined_call_operand.vmem [shape: f32[2,1,128], index: 12, kind: input, shape index: {}]
  %s13 = inlined_call_operand.hbm [shape: f32[64,128], index: 13, kind: output, shape index: {}]
  %s14 = sld [smem:[#allocation0]]
  $region113: #{tpu_custom_call.1} parent=0
    _
  %s16 = ssub.s32 1, %s14
  %s17 = scalar_select 0, %s16, %s14
  $region1: #{tpu_custom_call.1} parent=0
    #allocation3 [shape = 'u8[2048]{0}', space=vmem, size = 0x800, scoped, tag = 'input window, operand 1']
    #allocation4 [shape = 's32[2]{0}', space=sflag, size = 0x8, scoped, tag = 'scoped memory for tpu_custom_call.1']
    #allocation5 [shape = 's32[2]{0}', space=sflag, size = 0x8, scoped, tag = 'scoped memory for tpu_custom_call.1']
    #allocation6 [shape = 'u8[1024]{0}', space=vmem, size = 0x400, scoped, tag = 'input window, operand 3']
    #allocation7 [shape = 's32[2]{0}', space=sflag, size = 0x8, scoped, tag = 'scoped memory for tpu_custom_call.1']
    #allocation8 [shape = 'u8[196608]{0}', space=vmem, size = 0x30000, scoped, tag = 'input window, operand 5']
    #allocation9 [shape = 'u8[65536]{0}', space=vmem, size = 0x10000, scoped, tag = 'input window, operand 6']
    #allocation10 [shape = 's32[2]{0}', space=sflag, size = 0x8, scoped, tag = 'scoped memory for tpu_custom_call.1']
    #allocation11 [shape = 'u8[262144]{0}', space=vmem, size = 0x40000, scoped, tag = 'input window, operand 9']
    #allocation12 [shape = 'u8[262144]{0}', space=vmem, size = 0x40000, scoped, tag = 'input window, operand 11']
    #allocation13 [shape = 's32[2]{0}', space=sflag, size = 0x8, scoped, tag = 'scoped memory for tpu_custom_call.1']
    #allocation14 [shape = 'u8[32768]{0}', space=vmem, size = 0x8000, scoped, tag = 'output window, operand 0']
    %18 = vsyncpa [#allocation4], 0
    %s19 = scalar_lea.sflag [#allocation4], 1
    %20 = vsyncpa %s19, 0
    %21 = vsyncpa [#allocation7], 0
    %s22 = scalar_lea.sflag [#allocation7], 1
    %23 = vsyncpa %s22, 0
    %24 = vsyncpa [#allocation10], 0
    %s25 = scalar_lea.sflag [#allocation10], 1
    %26 = vsyncpa %s25, 0
    %27 = vsyncpa [#allocation13], 0
    %s28 = scalar_lea.sflag [#allocation13], 1
    %29 = vsyncpa %s28, 0
    %30 = vsyncpa [#allocation5], 0
    %s31 = scalar_lea.sflag [#allocation5], 1
    %32 = vsyncpa %s31, 0
    loop: start=0, step=1, limit=6
    $region2: #{tpu_custom_call.1} parent=1 // loop_pre_header
      _
    $region3: #{tpu_custom_call.1} parent=1 // loop_header
      %s34 = sphi 0, %s38
      %p35 = scmp.ge.s32.totalorder %s34, 6
      %s41 = sphi 0, %s53
      %s42 = sphi 0, %s49
      %s43 = sphi 0, %s41
      %s44 = sphi 0, %s42
      %s45 = sphi 0, %s43
      %s46 = sphi 0, %s44
      %s56 = sphi 0, %s58
      %s59 = sphi 0, %s56
      %s60 = sphi 0, %s59
      %s76 = sphi 0, %s60
      %s82 = sphi 0, %s84
      %s85 = sphi 0, %s82
      %s86 = sphi 0, %s85
      %s102 = sphi 0, %s86
      %s108 = sphi 0, %s110
      %s111 = sphi 0, %s108
      %s112 = sphi 0, %s111
      %s128 = sphi 0, %s112
      %s134 = sphi 0, %s136
      %s137 = sphi 0, %s134
      %s138 = sphi 0, %s137
      %s154 = sphi 0, %s138
      %s160 = sphi 0, %s162
      %s163 = sphi 0, %s160
      %s164 = sphi 0, %s163
      %s180 = sphi 0, %s164
      %s186 = sphi 0, %s188
      %s189 = sphi 0, %s186
      %s190 = sphi 0, %s189
      %s206 = sphi 0, %s190
      %s212 = sphi 0, %s214
      %s215 = sphi 0, %s212
      %s216 = sphi 0, %s215
      %s232 = sphi 0, %s216
      %s238 = sphi 0, %s240
      %s241 = sphi 0, %s238
      %s242 = sphi 0, %s241
      %s258 = sphi 0, %s242
      %s264 = sphi 0, %s266
      %s267 = sphi 0, %s264
      %s268 = sphi 0, %s267
      %s284 = sphi 0, %s268
      %s290 = sphi 0, %s292
      %s293 = sphi 0, %s290
      %s294 = sphi 0, %s293
      %s310 = sphi 0, %s294
      %s316 = sphi 0, %s318
      %s319 = sphi 0, %s316
      %s320 = sphi 0, %s319
      %s336 = sphi 0, %s320
      %s342 = sphi 0, %s344
      %s345 = sphi 0, %s342
      %s346 = sphi 0, %s345
      %s362 = sphi 0, %s346
      %s368 = sphi 0, %s370
      %s371 = sphi 0, %s368
      %s372 = sphi 0, %s371
      %s388 = sphi 0, %s372
      %s394 = sphi 0, %s396
      %s397 = sphi 0, %s394
      %s398 = sphi 0, %s397
      %s414 = sphi 0, %s398
    $region4: #{tpu_custom_call.1} parent=1 // loop_header_branch
      %37 = sbr.rel (%p35) target = $region8
    $region5: #{tpu_custom_call.1} parent=1 // loop_body
      %s39 = ssub.s32 %s34, 1
      %s40 = ssub.s32 %s34, 2
      %s47 = sadd.s32 1, %s42
      %p48 = scmp.ge.s32.totalorder %s47, 2
      %s49 = scalar_select %p48, 0, %s47
      %s50 = sadd.s32 1, %s41
      %s51 = scalar_select %p48, %s50, %s41
      %p52 = scmp.ge.s32.totalorder %s51, 2
      %s53 = scalar_select %p52, 0, %s51
      %s54 = ssub.s32 %s41, %s53
      %p55 = scmp.eq.s32.totalorder %s54, 0
      %s57 = sadd.s32 %s56, 1
      %s58 = scalar_select %p55, %s56, %s57
      %p61 = pneg %p55
      %p62 = scmp.eq.s32.totalorder %s34, 3
      %p63 = por %p61, %p62
      %p64 = scmp.ne.s32.totalorder %s56, %s59
      %p65 = scmp.eq.s32.totalorder %s34, 0
      %p66 = por %p64, %p65
      %p67 = scmp.ne.s32.totalorder %s56, %s59
      %p68 = scmp.eq.s32.totalorder %s39, 3
      %p69 = por %p67, %p68
      %p70 = scmp.ne.s32.totalorder %s59, %s60
      %p71 = scmp.eq.s32.totalorder %s39, 0
      %p72 = por %p70, %p71
      %p73 = scmp.ne.s32.totalorder %s59, %s60
      %p74 = scmp.eq.s32.totalorder %s40, 3
      %p75 = por %p73, %p74
      %p77 = scmp.ne.s32.totalorder %s60, %s76
      %p78 = scmp.eq.s32.totalorder %s40, 0
      %p79 = por %p77, %p78
      %s80 = ssub.s32 %s41, %s53
      %p81 = scmp.eq.s32.totalorder %s80, 0
      %s83 = sadd.s32 %s82, 1
      %s84 = scalar_select %p81, %s82, %s83
      %p87 = pneg %p81
      %p88 = scmp.eq.s32.totalorder %s34, 3
      %p89 = por %p87, %p88
      %p90 = scmp.ne.s32.totalorder %s82, %s85
      %p91 = scmp.eq.s32.totalorder %s34, 0
      %p92 = por %p90, %p91
      %p93 = scmp.ne.s32.totalorder %s82, %s85
      %p94 = scmp.eq.s32.totalorder %s39, 3
      %p95 = por %p93, %p94
      %p96 = scmp.ne.s32.totalorder %s85, %s86
      %p97 = scmp.eq.s32.totalorder %s39, 0
      %p98 = por %p96, %p97
      %p99 = scmp.ne.s32.totalorder %s85, %s86
      %p100 = scmp.eq.s32.totalorder %s40, 3
      %p101 = por %p99, %p100
      %p103 = scmp.ne.s32.totalorder %s86, %s102
      %p104 = scmp.eq.s32.totalorder %s40, 0
      %p105 = por %p103, %p104
      %s106 = ssub.s32 %s41, %s53
      %p107 = scmp.eq.s32.totalorder %s106, 0
      %s109 = sadd.s32 %s108, 1
      %s110 = scalar_select %p107, %s108, %s109
      %p113 = pneg %p107
      %p114 = scmp.eq.s32.totalorder %s34, 3
      %p115 = por %p113, %p114
      %p116 = scmp.ne.s32.totalorder %s108, %s111
      %p117 = scmp.eq.s32.totalorder %s34, 0
      %p118 = por %p116, %p117
      %p119 = scmp.ne.s32.totalorder %s108, %s111
      %p120 = scmp.eq.s32.totalorder %s39, 3
      %p121 = por %p119, %p120
      %p122 = scmp.ne.s32.totalorder %s111, %s112
      %p123 = scmp.eq.s32.totalorder %s39, 0
      %p124 = por %p122, %p123
      %p125 = scmp.ne.s32.totalorder %s111, %s112
      %p126 = scmp.eq.s32.totalorder %s40, 3
      %p127 = por %p125, %p126
      %p129 = scmp.ne.s32.totalorder %s112, %s128
      %p130 = scmp.eq.s32.totalorder %s40, 0
      %p131 = por %p129, %p130
      %s132 = ssub.s32 %s42, %s49
      %p133 = scmp.eq.s32.totalorder %s132, 0
      %s135 = sadd.s32 %s134, 1
      %s136 = scalar_select %p133, %s134, %s135
      %p139 = pneg %p133
      %p140 = scmp.eq.s32.totalorder %s34, 3
      %p141 = por %p139, %p140
      %p142 = scmp.ne.s32.totalorder %s134, %s137
      %p143 = scmp.eq.s32.totalorder %s34, 0
      %p144 = por %p142, %p143
      %p145 = scmp.ne.s32.totalorder %s134, %s137
      %p146 = scmp.eq.s32.totalorder %s39, 3
      %p147 = por %p145, %p146
      %p148 = scmp.ne.s32.totalorder %s137, %s138
      %p149 = scmp.eq.s32.totalorder %s39, 0
      %p150 = por %p148, %p149
      %p151 = scmp.ne.s32.totalorder %s137, %s138
      %p152 = scmp.eq.s32.totalorder %s40, 3
      %p153 = por %p151, %p152
      %p155 = scmp.ne.s32.totalorder %s138, %s154
      %p156 = scmp.eq.s32.totalorder %s40, 0
      %p157 = por %p155, %p156
      %s158 = ssub.s32 %s42, %s49
      %p159 = scmp.eq.s32.totalorder %s158, 0
      %s161 = sadd.s32 %s160, 1
      %s162 = scalar_select %p159, %s160, %s161
      %p165 = pneg %p159
      %p166 = scmp.eq.s32.totalorder %s34, 3
      %p167 = por %p165, %p166
      %p168 = scmp.ne.s32.totalorder %s160, %s163
      %p169 = scmp.eq.s32.totalorder %s34, 0
      %p170 = por %p168, %p169
      %p171 = scmp.ne.s32.totalorder %s160, %s163
      %p172 = scmp.eq.s32.totalorder %s39, 3
      %p173 = por %p171, %p172
      %p174 = scmp.ne.s32.totalorder %s163, %s164
      %p175 = scmp.eq.s32.totalorder %s39, 0
      %p176 = por %p174, %p175
      %p177 = scmp.ne.s32.totalorder %s163, %s164
      %p178 = scmp.eq.s32.totalorder %s40, 3
      %p179 = por %p177, %p178
      %p181 = scmp.ne.s32.totalorder %s164, %s180
      %p182 = scmp.eq.s32.totalorder %s40, 0
      %p183 = por %p181, %p182
      %s184 = ssub.s32 %s42, %s49
      %p185 = scmp.eq.s32.totalorder %s184, 0
      %s187 = sadd.s32 %s186, 1
      %s188 = scalar_select %p185, %s186, %s187
      %p191 = pneg %p185
      %p192 = scmp.eq.s32.totalorder %s34, 3
      %p193 = por %p191, %p192
      %p194 = scmp.ne.s32.totalorder %s186, %s189
      %p195 = scmp.eq.s32.totalorder %s34, 0
      %p196 = por %p194, %p195
      %p197 = scmp.ne.s32.totalorder %s186, %s189
      %p198 = scmp.eq.s32.totalorder %s39, 3
      %p199 = por %p197, %p198
      %p200 = scmp.ne.s32.totalorder %s189, %s190
      %p201 = scmp.eq.s32.totalorder %s39, 0
      %p202 = por %p200, %p201
      %p203 = scmp.ne.s32.totalorder %s189, %s190
      %p204 = scmp.eq.s32.totalorder %s40, 3
      %p205 = por %p203, %p204
      %p207 = scmp.ne.s32.totalorder %s190, %s206
      %p208 = scmp.eq.s32.totalorder %s40, 0
      %p209 = por %p207, %p208
      %s210 = ssub.s32 %s42, %s49
      %p211 = scmp.eq.s32.totalorder %s210, 0
      %s213 = sadd.s32 %s212, 1
      %s214 = scalar_select %p211, %s212, %s213
      %p217 = pneg %p211
      %p218 = scmp.eq.s32.totalorder %s34, 3
      %p219 = por %p217, %p218
      %p220 = scmp.ne.s32.totalorder %s212, %s215
      %p221 = scmp.eq.s32.totalorder %s34, 0
      %p222 = por %p220, %p221
      %p223 = scmp.ne.s32.totalorder %s212, %s215
      %p224 = scmp.eq.s32.totalorder %s39, 3
      %p225 = por %p223, %p224
      %p226 = scmp.ne.s32.totalorder %s215, %s216
      %p227 = scmp.eq.s32.totalorder %s39, 0
      %p228 = por %p226, %p227
      %p229 = scmp.ne.s32.totalorder %s215, %s216
      %p230 = scmp.eq.s32.totalorder %s40, 3
      %p231 = por %p229, %p230
      %p233 = scmp.ne.s32.totalorder %s216, %s232
      %p234 = scmp.eq.s32.totalorder %s40, 0
      %p235 = por %p233, %p234
      %s236 = ssub.s32 %s42, %s49
      %p237 = scmp.eq.s32.totalorder %s236, 0
      %s239 = sadd.s32 %s238, 1
      %s240 = scalar_select %p237, %s238, %s239
      %p243 = pneg %p237
      %p244 = scmp.eq.s32.totalorder %s34, 3
      %p245 = por %p243, %p244
      %p246 = scmp.ne.s32.totalorder %s238, %s241
      %p247 = scmp.eq.s32.totalorder %s34, 0
      %p248 = por %p246, %p247
      %p249 = scmp.ne.s32.totalorder %s238, %s241
      %p250 = scmp.eq.s32.totalorder %s39, 3
      %p251 = por %p249, %p250
      %p252 = scmp.ne.s32.totalorder %s241, %s242
      %p253 = scmp.eq.s32.totalorder %s39, 0
      %p254 = por %p252, %p253
      %p255 = scmp.ne.s32.totalorder %s241, %s242
      %p256 = scmp.eq.s32.totalorder %s40, 3
      %p257 = por %p255, %p256
      %p259 = scmp.ne.s32.totalorder %s242, %s258
      %p260 = scmp.eq.s32.totalorder %s40, 0
      %p261 = por %p259, %p260
      %s262 = ssub.s32 %s42, %s49
      %p263 = scmp.eq.s32.totalorder %s262, 0
      %s265 = sadd.s32 %s264, 1
      %s266 = scalar_select %p263, %s264, %s265
      %p269 = pneg %p263
      %p270 = scmp.eq.s32.totalorder %s34, 3
      %p271 = por %p269, %p270
      %p272 = scmp.ne.s32.totalorder %s264, %s267
      %p273 = scmp.eq.s32.totalorder %s34, 0
      %p274 = por %p272, %p273
      %p275 = scmp.ne.s32.totalorder %s264, %s267
      %p276 = scmp.eq.s32.totalorder %s39, 3
      %p277 = por %p275, %p276
      %p278 = scmp.ne.s32.totalorder %s267, %s268
      %p279 = scmp.eq.s32.totalorder %s39, 0
      %p280 = por %p278, %p279
      %p281 = scmp.ne.s32.totalorder %s267, %s268
      %p282 = scmp.eq.s32.totalorder %s40, 3
      %p283 = por %p281, %p282
      %p285 = scmp.ne.s32.totalorder %s268, %s284
      %p286 = scmp.eq.s32.totalorder %s40, 0
      %p287 = por %p285, %p286
      %s288 = ssub.s32 %s42, %s49
      %p289 = scmp.eq.s32.totalorder %s288, 0
      %s291 = sadd.s32 %s290, 1
      %s292 = scalar_select %p289, %s290, %s291
      %p295 = pneg %p289
      %p296 = scmp.eq.s32.totalorder %s34, 3
      %p297 = por %p295, %p296
      %p298 = scmp.ne.s32.totalorder %s290, %s293
      %p299 = scmp.eq.s32.totalorder %s34, 0
      %p300 = por %p298, %p299
      %p301 = scmp.ne.s32.totalorder %s290, %s293
      %p302 = scmp.eq.s32.totalorder %s39, 3
      %p303 = por %p301, %p302
      %p304 = scmp.ne.s32.totalorder %s293, %s294
      %p305 = scmp.eq.s32.totalorder %s39, 0
      %p306 = por %p304, %p305
      %p307 = scmp.ne.s32.totalorder %s293, %s294
      %p308 = scmp.eq.s32.totalorder %s40, 3
      %p309 = por %p307, %p308
      %p311 = scmp.ne.s32.totalorder %s294, %s310
      %p312 = scmp.eq.s32.totalorder %s40, 0
      %p313 = por %p311, %p312
      %s314 = ssub.s32 %s42, %s49
      %p315 = scmp.eq.s32.totalorder %s314, 0
      %s317 = sadd.s32 %s316, 1
      %s318 = scalar_select %p315, %s316, %s317
      %p321 = pneg %p315
      %p322 = scmp.eq.s32.totalorder %s34, 3
      %p323 = por %p321, %p322
      %p324 = scmp.ne.s32.totalorder %s316, %s319
      %p325 = scmp.eq.s32.totalorder %s34, 0
      %p326 = por %p324, %p325
      %p327 = scmp.ne.s32.totalorder %s316, %s319
      %p328 = scmp.eq.s32.totalorder %s39, 3
      %p329 = por %p327, %p328
      %p330 = scmp.ne.s32.totalorder %s319, %s320
      %p331 = scmp.eq.s32.totalorder %s39, 0
      %p332 = por %p330, %p331
      %p333 = scmp.ne.s32.totalorder %s319, %s320
      %p334 = scmp.eq.s32.totalorder %s40, 3
      %p335 = por %p333, %p334
      %p337 = scmp.ne.s32.totalorder %s320, %s336
      %p338 = scmp.eq.s32.totalorder %s40, 0
      %p339 = por %p337, %p338
      %s340 = ssub.s32 %s42, %s49
      %p341 = scmp.eq.s32.totalorder %s340, 0
      %s343 = sadd.s32 %s342, 1
      %s344 = scalar_select %p341, %s342, %s343
      %p347 = pneg %p341
      %p348 = scmp.eq.s32.totalorder %s34, 3
      %p349 = por %p347, %p348
      %p350 = scmp.ne.s32.totalorder %s342, %s345
      %p351 = scmp.eq.s32.totalorder %s34, 0
      %p352 = por %p350, %p351
      %p353 = scmp.ne.s32.totalorder %s342, %s345
      %p354 = scmp.eq.s32.totalorder %s39, 3
      %p355 = por %p353, %p354
      %p356 = scmp.ne.s32.totalorder %s345, %s346
      %p357 = scmp.eq.s32.totalorder %s39, 0
      %p358 = por %p356, %p357
      %p359 = scmp.ne.s32.totalorder %s345, %s346
      %p360 = scmp.eq.s32.totalorder %s40, 3
      %p361 = por %p359, %p360
      %p363 = scmp.ne.s32.totalorder %s346, %s362
      %p364 = scmp.eq.s32.totalorder %s40, 0
      %p365 = por %p363, %p364
      %s366 = ssub.s32 %s42, %s49
      %p367 = scmp.eq.s32.totalorder %s366, 0
      %s369 = sadd.s32 %s368, 1
      %s370 = scalar_select %p367, %s368, %s369
      %p373 = pneg %p367
      %p374 = scmp.eq.s32.totalorder %s34, 3
      %p375 = por %p373, %p374
      %p376 = scmp.ne.s32.totalorder %s368, %s371
      %p377 = scmp.eq.s32.totalorder %s34, 0
      %p378 = por %p376, %p377
      %p379 = scmp.ne.s32.totalorder %s368, %s371
      %p380 = scmp.eq.s32.totalorder %s39, 3
      %p381 = por %p379, %p380
      %p382 = scmp.ne.s32.totalorder %s371, %s372
      %p383 = scmp.eq.s32.totalorder %s39, 0
      %p384 = por %p382, %p383
      %p385 = scmp.ne.s32.totalorder %s371, %s372
      %p386 = scmp.eq.s32.totalorder %s40, 3
      %p387 = por %p385, %p386
      %p389 = scmp.ne.s32.totalorder %s372, %s388
      %p390 = scmp.eq.s32.totalorder %s40, 0
      %p391 = por %p389, %p390
      %s392 = ssub.s32 %s41, %s53
      %p393 = scmp.eq.s32.totalorder %s392, 0
      %s395 = sadd.s32 %s394, 1
      %s396 = scalar_select %p393, %s394, %s395
      %p399 = pneg %p393
      %p400 = scmp.eq.s32.totalorder %s34, 3
      %p401 = por %p399, %p400
      %p402 = scmp.ne.s32.totalorder %s394, %s397
      %p403 = scmp.eq.s32.totalorder %s34, 0
      %p404 = por %p402, %p403
      %p405 = scmp.ne.s32.totalorder %s394, %s397
      %p406 = scmp.eq.s32.totalorder %s39, 3
      %p407 = por %p405, %p406
      %p408 = scmp.ne.s32.totalorder %s397, %s398
      %p409 = scmp.eq.s32.totalorder %s39, 0
      %p410 = por %p408, %p409
      %p411 = scmp.ne.s32.totalorder %s397, %s398
      %p412 = scmp.eq.s32.totalorder %s40, 3
      %p413 = por %p411, %p412
      %p415 = scmp.ne.s32.totalorder %s398, %s414
      %p416 = scmp.eq.s32.totalorder %s40, 0
      %p417 = por %p415, %p416
      %p418 = scmp.le.s32.totalorder 1, %s34
      %p419 = scmp.lt.s32.totalorder %s34, 5
      %p420 = pnand %p418, %p419
      %p421 = pneg %p420
      // Predicated region
      $region9: #{tpu_custom_call.1} parent=5 // pred_check
        _
      $region10: #{tpu_custom_call.1} parent=5 // pred_check_branch
        %423 = sbr.rel (%p420) target = $region12
      $region11: #{tpu_custom_call.1} parent=5 // pred_region
        %s424 = ssub.s32 %s34, 1
      $region12: #{tpu_custom_call.1} parent=5 // pred_fallthru
        _
      %p425 = scmp.lt.s32.totalorder %s34, 4
      // Predicated region
      $region13: #{tpu_custom_call.1} parent=5 // pred_check
        %p426 = pneg %p425
      $region14: #{tpu_custom_call.1} parent=5 // pred_check_branch
        %428 = sbr.rel (%p426) target = $region16
      $region15: #{tpu_custom_call.1} parent=5 // pred_region
        // Predicated region
        $region17: #{tpu_custom_call.1} parent=15 // pred_check
          %p429 = pneg %p66
        $region18: #{tpu_custom_call.1} parent=15 // pred_check_branch
          %431 = sbr.rel (%p429) target = $region20
        $region19: #{tpu_custom_call.1} parent=15 // pred_region
          %s432 = smul.u32 4, %s41
          %p433 = scmp.lt.s32.totalorder %s432, 7
          %s434 = scalar_select %p433, %s432, 7
          %s435 = smul.addr %s434, 8
          %s436 = scalar_lea.vmem %s0, %s435
          %s437 = smul.u32 4, %s41
        $region20: #{tpu_custom_call.1} parent=15 // pred_fallthru
          _
        // Predicated region
        $region21: #{tpu_custom_call.1} parent=15 // pred_check
          %p438 = pneg %p92
        $region22: #{tpu_custom_call.1} parent=15 // pred_check_branch
          %440 = sbr.rel (%p438) target = $region24
        $region23: #{tpu_custom_call.1} parent=15 // pred_region
          %s441 = sand.u32 %s82, 1
          %s442 = scalar_lea.sflag [#allocation4], %s441
          %s443 = sand.u32 %s82, 1
          %s444 = smul.addr %s443, 2
          %s445 = scalar_lea.vmem [#allocation3], %s444
          %s446 = smul.u32 2, %s41
          %s448 = ssub.s32 32, 32
          %449 = vsyncadd %s442, %s448
          %s450 = smul.addr %s446, 16
          %s451 = scalar_lea.hbm %s1, %s450
          %s452 = sshll.u32 %s445, 4
          %s453 = int_to_ptr.vmem [resolvable:$true] %s452
          %458 = dma.hbm_to_vmem [thread:$0]  %s451, 32, %s453, %s442, 16, 16, 1
        $region24: #{tpu_custom_call.1} parent=15 // pred_fallthru
          _
        // Predicated region
        $region25: #{tpu_custom_call.1} parent=15 // pred_check
          %p459 = pneg %p118
        $region26: #{tpu_custom_call.1} parent=15 // pred_check_branch
          %461 = sbr.rel (%p459) target = $region28
        $region27: #{tpu_custom_call.1} parent=15 // pred_region
          %s462 = smul.u32 2, %s41
          %p463 = scmp.lt.s32.totalorder %s462, 3
          %s464 = scalar_select %p463, %s462, 3
          %s465 = smul.addr %s464, 2
          %s466 = smul.addr %s465, 8
          %s467 = scalar_lea.vmem %s2, %s466
          %s468 = smul.u32 2, %s41
        $region28: #{tpu_custom_call.1} parent=15 // pred_fallthru
          _
        // Predicated region
        $region29: #{tpu_custom_call.1} parent=15 // pred_check
          %p469 = pneg %p144
        $region30: #{tpu_custom_call.1} parent=15 // pred_check_branch
          %471 = sbr.rel (%p469) target = $region32
        $region31: #{tpu_custom_call.1} parent=15 // pred_region
          %s472 = sand.u32 %s34, 1
          %s473 = scalar_lea.sflag [#allocation7], %s472
          %s474 = sand.u32 %s134, 1
          %s475 = scalar_lea.vmem [#allocation6], %s474
          %s477 = ssub.s32 16, 16
          %478 = vsyncadd %s473, %s477
          %s479 = smul.addr %s42, 16
          %s480 = scalar_lea.hbm %s3, %s479
          %s482 = sshll.u32 %s475, 4
          %s483 = int_to_ptr.vmem [resolvable:$true] %s482
          %485 = dma.hbm_to_vmem [thread:$0]  %s480, 16, %s483, %s473
        $region32: #{tpu_custom_call.1} parent=15 // pred_fallthru
          _
        // Predicated region
        $region33: #{tpu_custom_call.1} parent=15 // pred_check
          %p486 = pneg %p170
        $region34: #{tpu_custom_call.1} parent=15 // pred_check_branch
          %488 = sbr.rel (%p486) target = $region36
        $region35: #{tpu_custom_call.1} parent=15 // pred_region
          %p489 = scmp.lt.s32.totalorder %s42, 1
          %s490 = scalar_select %p489, %s42, 1
          %s491 = scalar_lea.vmem %s4, %s490
        $region36: #{tpu_custom_call.1} parent=15 // pred_fallthru
          _
        // Predicated region
        $region37: #{tpu_custom_call.1} parent=15 // pred_check
          %p492 = pneg %p196
        $region38: #{tpu_custom_call.1} parent=15 // pred_check_branch
          %494 = sbr.rel (%p492) target = $region40
        $region39: #{tpu_custom_call.1} parent=15 // pred_region
          %s495 = sand.u32 %s34, 1
          %s496 = scalar_lea.sflag [#allocation7], %s495
          %s497 = sand.u32 %s186, 1
          %s498 = smul.addr %s497, 192
          %s499 = scalar_lea.vmem [#allocation8], %s498
          %s501 = ssub.s32 3072, 3072
          %502 = vsyncadd %s496, %s501
          %s503 = smul.addr %s42, 48
          %s504 = smul.addr %s503, 64
          %s505 = scalar_lea.hbm %s5, %s504
          %s506 = sshll.u32 %s499, 4
          %s507 = int_to_ptr.vmem [resolvable:$true] %s506
          %512 = dma.hbm_to_vmem [thread:$0]  %s505, 3072, %s507, %s496, 192, 192, 12
        $region40: #{tpu_custom_call.1} parent=15 // pred_fallthru
          _
        // Predicated region
        $region41: #{tpu_custom_call.1} parent=15 // pred_check
          %p513 = pneg %p222
        $region42: #{tpu_custom_call.1} parent=15 // pred_check_branch
          %515 = sbr.rel (%p513) target = $region44
        $region43: #{tpu_custom_call.1} parent=15 // pred_region
          %s516 = sand.u32 %s34, 1
          %s517 = scalar_lea.sflag [#allocation10], %s516
          %s518 = sand.u32 %s212, 1
          %s519 = smul.addr %s518, 64
          %s520 = scalar_lea.vmem [#allocation9], %s519
          %s522 = ssub.s32 1024, 1024
          %523 = vsyncadd %s517, %s522
          %s524 = smul.addr %s42, 16
          %s525 = smul.addr %s524, 64
          %s526 = scalar_lea.hbm %s6, %s525
          %s527 = sshll.u32 %s520, 4
          %s528 = int_to_ptr.vmem [resolvable:$true] %s527
          %533 = dma.hbm_to_vmem [thread:$0]  %s526, 1024, %s528, %s517, 64, 64, 4
        $region44: #{tpu_custom_call.1} parent=15 // pred_fallthru
          _
        // Predicated region
        $region45: #{tpu_custom_call.1} parent=15 // pred_check
          %p534 = pneg %p248
        $region46: #{tpu_custom_call.1} parent=15 // pred_check_branch
          %536 = sbr.rel (%p534) target = $region48
        $region47: #{tpu_custom_call.1} parent=15 // pred_region
          %p537 = scmp.lt.s32.totalorder %s42, 1
          %s538 = scalar_select %p537, %s42, 1
          %s539 = scalar_lea.vmem %s7, %s538
        $region48: #{tpu_custom_call.1} parent=15 // pred_fallthru
          _
        // Predicated region
        $region49: #{tpu_custom_call.1} parent=15 // pred_check
          %p540 = pneg %p274
        $region50: #{tpu_custom_call.1} parent=15 // pred_check_branch
          %542 = sbr.rel (%p540) target = $region52
        $region51: #{tpu_custom_call.1} parent=15 // pred_region
          %p543 = scmp.lt.s32.totalorder %s42, 1
          %s544 = scalar_select %p543, %s42, 1
          %s545 = scalar_lea.vmem %s8, %s544
        $region52: #{tpu_custom_call.1} parent=15 // pred_fallthru
          _
        // Predicated region
        $region53: #{tpu_custom_call.1} parent=15 // pred_check
          %p546 = pneg %p300
        $region54: #{tpu_custom_call.1} parent=15 // pred_check_branch
          %548 = sbr.rel (%p546) target = $region56
        $region55: #{tpu_custom_call.1} parent=15 // pred_region
          %s549 = sand.u32 %s34, 1
          %s550 = scalar_lea.sflag [#allocation10], %s549
          %s551 = sand.u32 %s290, 1
          %s552 = smul.addr %s551, 256
          %s553 = scalar_lea.vmem [#allocation11], %s552
          %s555 = ssub.s32 4096, 4096
          %556 = vsyncadd %s550, %s555
          %s557 = smul.addr %s42, 64
          %s558 = smul.addr %s557, 64
          %s559 = scalar_lea.hbm %s9, %s558
          %s560 = sshll.u32 %s553, 4
          %s561 = int_to_ptr.vmem [resolvable:$true] %s560
          %566 = dma.hbm_to_vmem [thread:$0]  %s559, 4096, %s561, %s550, 256, 256, 16
        $region56: #{tpu_custom_call.1} parent=15 // pred_fallthru
          _
        // Predicated region
        $region57: #{tpu_custom_call.1} parent=15 // pred_check
          %p567 = pneg %p326
        $region58: #{tpu_custom_call.1} parent=15 // pred_check_branch
          %569 = sbr.rel (%p567) target = $region60
        $region59: #{tpu_custom_call.1} parent=15 // pred_region
          %p570 = scmp.lt.s32.totalorder %s42, 1
          %s571 = scalar_select %p570, %s42, 1
          %s572 = smul.addr %s571, 4
          %s573 = scalar_lea.vmem %s10, %s572
        $region60: #{tpu_custom_call.1} parent=15 // pred_fallthru
          _
        // Predicated region
        $region61: #{tpu_custom_call.1} parent=15 // pred_check
          %p574 = pneg %p352
        $region62: #{tpu_custom_call.1} parent=15 // pred_check_branch
          %576 = sbr.rel (%p574) target = $region64
        $region63: #{tpu_custom_call.1} parent=15 // pred_region
          %s577 = sand.u32 %s342, 1
          %s578 = scalar_lea.sflag [#allocation13], %s577
          %s579 = sand.u32 %s342, 1
          %s580 = smul.addr %s579, 256
          %s581 = scalar_lea.vmem [#allocation12], %s580
          %s583 = ssub.s32 4096, 4096
          %584 = vsyncadd %s578, %s583
          %s585 = smul.addr %s42, 64
          %s586 = smul.addr %s585, 64
          %s587 = scalar_lea.hbm %s11, %s586
          %s588 = sshll.u32 %s581, 4
          %s589 = int_to_ptr.vmem [resolvable:$true] %s588
          %594 = dma.hbm_to_vmem [thread:$0]  %s587, 4096, %s589, %s578, 64, 64, 4
        $region64: #{tpu_custom_call.1} parent=15 // pred_fallthru
          _
        // Predicated region
        $region65: #{tpu_custom_call.1} parent=15 // pred_check
          %p595 = pneg %p378
        $region66: #{tpu_custom_call.1} parent=15 // pred_check_branch
          %597 = sbr.rel (%p595) target = $region68
        $region67: #{tpu_custom_call.1} parent=15 // pred_region
          %p598 = scmp.lt.s32.totalorder %s42, 1
          %s599 = scalar_select %p598, %s42, 1
          %s600 = scalar_lea.vmem %s12, %s599
        $region68: #{tpu_custom_call.1} parent=15 // pred_fallthru
          _
      $region16: #{tpu_custom_call.1} parent=5 // pred_fallthru
        _
      %p601 = scmp.le.s32.totalorder 1, %s34
      %p602 = scmp.lt.s32.totalorder %s34, 5
      %p603 = pnand %p601, %p602
      %p604 = pneg %p603
      // Predicated region
      $region69: #{tpu_custom_call.1} parent=5 // pred_check
        _
      $region70: #{tpu_custom_call.1} parent=5 // pred_check_branch
        %606 = sbr.rel (%p603) target = $region72
      $region71: #{tpu_custom_call.1} parent=5 // pred_region
        %s607 = ssub.s32 %s34, 1
        %s608 = sand.u32 %s85, 1
        %s609 = scalar_lea.sflag [#allocation4], %s608
        %s610 = sand.u32 %s85, 1
        %s611 = smul.addr %s610, 2
        %s612 = scalar_lea.vmem [#allocation3], %s611
        // Predicated region
        $region73: #{tpu_custom_call.1} parent=71 // pred_check
          %p613 = pneg %p98
        $region74: #{tpu_custom_call.1} parent=71 // pred_check_branch
          %615 = sbr.rel (%p613) target = $region76
        $region75: #{tpu_custom_call.1} parent=71 // pred_region
          %616 = dma.done %s609, 32
        $region76: #{tpu_custom_call.1} parent=71 // pred_fallthru
          _
        %s617 = sand.u32 %s39, 1
        %s618 = scalar_lea.sflag [#allocation7], %s617
        %s619 = sand.u32 %s137, 1
        %s620 = scalar_lea.vmem [#allocation6], %s619
        // Predicated region
        $region77: #{tpu_custom_call.1} parent=71 // pred_check
          %p621 = pneg %p150
        $region78: #{tpu_custom_call.1} parent=71 // pred_check_branch
          %623 = sbr.rel (%p621) target = $region80
        $region79: #{tpu_custom_call.1} parent=71 // pred_region
          %624 = dma.done %s618, 16
        $region80: #{tpu_custom_call.1} parent=71 // pred_fallthru
          _
        %s625 = sand.u32 %s39, 1
        %s626 = scalar_lea.sflag [#allocation7], %s625
        %s627 = sand.u32 %s189, 1
        %s628 = smul.addr %s627, 192
        %s629 = scalar_lea.vmem [#allocation8], %s628
        // Predicated region
        $region81: #{tpu_custom_call.1} parent=71 // pred_check
          %p630 = pneg %p202
        $region82: #{tpu_custom_call.1} parent=71 // pred_check_branch
          %632 = sbr.rel (%p630) target = $region84
        $region83: #{tpu_custom_call.1} parent=71 // pred_region
          %633 = dma.done %s626, 3072
        $region84: #{tpu_custom_call.1} parent=71 // pred_fallthru
          _
        %s634 = sand.u32 %s39, 1
        %s635 = scalar_lea.sflag [#allocation10], %s634
        %s636 = sand.u32 %s215, 1
        %s637 = smul.addr %s636, 64
        %s638 = scalar_lea.vmem [#allocation9], %s637
        // Predicated region
        $region85: #{tpu_custom_call.1} parent=71 // pred_check
          %p639 = pneg %p228
        $region86: #{tpu_custom_call.1} parent=71 // pred_check_branch
          %641 = sbr.rel (%p639) target = $region88
        $region87: #{tpu_custom_call.1} parent=71 // pred_region
          %642 = dma.done %s635, 1024
        $region88: #{tpu_custom_call.1} parent=71 // pred_fallthru
          _
        %s643 = sand.u32 %s39, 1
        %s644 = scalar_lea.sflag [#allocation10], %s643
        %s645 = sand.u32 %s293, 1
        %s646 = smul.addr %s645, 256
        %s647 = scalar_lea.vmem [#allocation11], %s646
        // Predicated region
        $region89: #{tpu_custom_call.1} parent=71 // pred_check
          %p648 = pneg %p306
        $region90: #{tpu_custom_call.1} parent=71 // pred_check_branch
          %650 = sbr.rel (%p648) target = $region92
        $region91: #{tpu_custom_call.1} parent=71 // pred_region
          %651 = dma.done %s644, 4096
        $region92: #{tpu_custom_call.1} parent=71 // pred_fallthru
          _
        %s652 = sand.u32 %s345, 1
        %s653 = scalar_lea.sflag [#allocation13], %s652
        %s654 = sand.u32 %s345, 1
        %s655 = smul.addr %s654, 256
        %s656 = scalar_lea.vmem [#allocation12], %s655
        // Predicated region
        $region93: #{tpu_custom_call.1} parent=71 // pred_check
          %p657 = pneg %p358
        $region94: #{tpu_custom_call.1} parent=71 // pred_check_branch
          %659 = sbr.rel (%p657) target = $region96
        $region95: #{tpu_custom_call.1} parent=71 // pred_region
          %660 = dma.done %s653, 4096
        $region96: #{tpu_custom_call.1} parent=71 // pred_fallthru
          _
        %s661 = smul.u32 4, %s43
        %p662 = scmp.lt.s32.totalorder %s661, 7
        %s663 = scalar_select %p662, %s661, 7
        %s664 = smul.addr %s663, 8
        %s665 = scalar_lea.vmem %s0, %s664
        %p666 = pneg %p72
        %p667 = pneg %p69
        %s668 = sand.u32 %s85, 1
        %s669 = scalar_lea.sflag [#allocation4], %s668
        %s670 = sand.u32 %s85, 1
        %s671 = smul.addr %s670, 2
        %s672 = scalar_lea.vmem [#allocation3], %s671
        %p673 = pneg %p98
        %p674 = pneg %p95
        %s675 = smul.u32 2, %s43
        %p676 = scmp.lt.s32.totalorder %s675, 3
        %s677 = scalar_select %p676, %s675, 3
        %s678 = smul.addr %s677, 2
        %s679 = smul.addr %s678, 8
        %s680 = scalar_lea.vmem %s2, %s679
        %p681 = pneg %p124
        %p682 = pneg %p121
        %s683 = sand.u32 %s39, 1
        %s684 = scalar_lea.sflag [#allocation7], %s683
        %s685 = sand.u32 %s137, 1
        %s686 = scalar_lea.vmem [#allocation6], %s685
        %p687 = pneg %p150
        %p688 = pneg %p147
        %p689 = scmp.lt.s32.totalorder %s44, 1
        %s690 = scalar_select %p689, %s44, 1
        %s691 = scalar_lea.vmem %s4, %s690
        %p692 = pneg %p176
        %p693 = pneg %p173
        %s694 = sand.u32 %s39, 1
        %s695 = scalar_lea.sflag [#allocation7], %s694
        %s696 = sand.u32 %s189, 1
        %s697 = smul.addr %s696, 192
        %s698 = scalar_lea.vmem [#allocation8], %s697
        %p699 = pneg %p202
        %p700 = pneg %p199
        %s701 = sand.u32 %s39, 1
        %s702 = scalar_lea.sflag [#allocation10], %s701
        %s703 = sand.u32 %s215, 1
        %s704 = smul.addr %s703, 64
        %s705 = scalar_lea.vmem [#allocation9], %s704
        %p706 = pneg %p228
        %p707 = pneg %p225
        %p708 = scmp.lt.s32.totalorder %s44, 1
        %s709 = scalar_select %p708, %s44, 1
        %s710 = scalar_lea.vmem %s7, %s709
        %p711 = pneg %p254
        %p712 = pneg %p251
        %p713 = scmp.lt.s32.totalorder %s44, 1
        %s714 = scalar_select %p713, %s44, 1
        %s715 = scalar_lea.vmem %s8, %s714
        %p716 = pneg %p280
        %p717 = pneg %p277
        %s718 = sand.u32 %s39, 1
        %s719 = scalar_lea.sflag [#allocation10], %s718
        %s720 = sand.u32 %s293, 1
        %s721 = smul.addr %s720, 256
        %s722 = scalar_lea.vmem [#allocation11], %s721
        %p723 = pneg %p306
        %p724 = pneg %p303
        %p725 = scmp.lt.s32.totalorder %s44, 1
        %s726 = scalar_select %p725, %s44, 1
        %s727 = smul.addr %s726, 4
        %s728 = scalar_lea.vmem %s10, %s727
        %p729 = pneg %p332
        %p730 = pneg %p329
        %s731 = sand.u32 %s345, 1
        %s732 = scalar_lea.sflag [#allocation13], %s731
        %s733 = sand.u32 %s345, 1
        %s734 = smul.addr %s733, 256
        %s735 = scalar_lea.vmem [#allocation12], %s734
        %p736 = pneg %p358
        %p737 = pneg %p355
        %p738 = scmp.lt.s32.totalorder %s44, 1
        %s739 = scalar_select %p738, %s44, 1
        %s740 = scalar_lea.vmem %s12, %s739
        %p741 = pneg %p384
        %p742 = pneg %p381
        %p743 = pneg %p410
        %p744 = pneg %p407
        %s745 = sand.u32 %s397, 1
        %s746 = scalar_lea.sflag [#allocation5], %s745
        %s747 = sand.u32 %s397, 1
        %s748 = smul.addr %s747, 32
        %s749 = scalar_lea.vmem [#allocation14], %s748
        %s750 = smul.u32 4, %s43
        %p751 = scmp.lt.s32.totalorder %s750, 7
        %s752 = scalar_select %p751, %s750, 7
        %s753 = smul.addr %s752, 8
        %s754 = scalar_lea.vmem %s0, %s753
        %s755 = smul.u32 4, %s43
        %s756 = smul.u32 2, %s43
        %s757 = smul.u32 2, %s43
        %p758 = scmp.lt.s32.totalorder %s757, 3
        %s759 = scalar_select %p758, %s757, 3
        %s760 = smul.addr %s759, 2
        %s761 = smul.addr %s760, 8
        %s762 = scalar_lea.vmem %s2, %s761
        %s763 = smul.u32 2, %s43
        %p764 = scmp.lt.s32.totalorder %s44, 1
        %s765 = scalar_select %p764, %s44, 1
        %s766 = scalar_lea.vmem %s4, %s765
        %p767 = scmp.lt.s32.totalorder %s44, 1
        %s768 = scalar_select %p767, %s44, 1
        %s769 = scalar_lea.vmem %s7, %s768
        %p770 = scmp.lt.s32.totalorder %s44, 1
        %s771 = scalar_select %p770, %s44, 1
        %s772 = scalar_lea.vmem %s8, %s771
        %p773 = scmp.lt.s32.totalorder %s44, 1
        %s774 = scalar_select %p773, %s44, 1
        %s775 = smul.addr %s774, 4
        %s776 = scalar_lea.vmem %s10, %s775
        %p777 = scmp.lt.s32.totalorder %s44, 1
        %s778 = scalar_select %p777, %s44, 1
        %s779 = scalar_lea.vmem %s12, %s778
        %s780 = smul.u32 4, %s43
        %p782 = scmp.eq.s32.totalorder %s44, 0
        // Predicated region
        $region97: #{tpu_custom_call.1} parent=71 // pred_check
          %p783 = pneg %p782
        $region98: #{tpu_custom_call.1} parent=71 // pred_check_branch
          %785 = sbr.rel (%p783) target = $region100
        $region99: #{tpu_custom_call.1} parent=71 // pred_region
          %v786 = vld [vmem:[%s754] sm:$0xff]
          %v787 = vld [vmem:[%s754 + $0x8] sm:$0xff]
          %v788 = vld [vmem:[%s754 + $0x10] sm:$0xff]
          %v789 = vld [vmem:[%s754 + $0x18] sm:$0xff]
          %790 = vst [vmem:[#allocation2] sm:$0xff] %v786
          %791 = vst [vmem:[#allocation2 + $0x8] sm:$0xff] %v787
          %792 = vst [vmem:[#allocation2 + $0x10] sm:$0xff] %v788
          %793 = vst [vmem:[#allocation2 + $0x18] sm:$0xff] %v789
        $region100: #{tpu_custom_call.1} parent=71 // pred_fallthru
          _
        %v794 = vld [vmem:[#allocation2] sm:$0xff]
        %v795 = vld [vmem:[#allocation2 + $0x8] sm:$0xff]
        %v796 = vld [vmem:[#allocation2 + $0x10] sm:$0xff]
        %v797 = vld [vmem:[#allocation2 + $0x18] sm:$0xff]
        %v798 = vld [vmem:[%s612] sm:$0x1]
        %v799 = vld [vmem:[%s612 + $0x1] sm:$0x1]
        %v800 = vld [vmem:[%s762] sm:$0xff]
        %v801 = vld [vmem:[%s762 + $0x8] sm:$0xff]
        %v802 = vld [vmem:[%s762 + $0x10] sm:$0xff]
        %v803 = vld [vmem:[%s762 + $0x18] sm:$0xff]
        %v804 = vld [vmem:[%s620] sm:$0x1]
        %v805 = vld [vmem:[%s766] sm:$0x1]
        %806 = vadd.xlane.f32.xlu0 %v794
        %v807 = vpop.xlane.xlu0 %806
        %808 = vadd.xlane.f32.xlu0 %v795
        %v809 = vpop.xlane.xlu0 %808
        %810 = vadd.xlane.f32.xlu0 %v796
        %v811 = vpop.xlane.xlu0 %810
        %812 = vadd.xlane.f32.xlu0 %v797
        %v813 = vpop.xlane.xlu0 %812
        %v814 = vrcp.pop 128.0
        %v815 = vmul.f32 %v807, %v814
        %v816 = vmul.f32 %v809, %v814
        %v817 = vmul.f32 %v811, %v814
        %v818 = vmul.f32 %v813, %v814
        %v819 = vsub.f32 %v794, %v815
        %v820 = vsub.f32 %v795, %v816
        %v821 = vsub.f32 %v796, %v817
        %v822 = vsub.f32 %v797, %v818
        %v823 = vmul.f32 %v819, %v819
        %v824 = vmul.f32 %v820, %v820
        %v825 = vmul.f32 %v821, %v821
        %v826 = vmul.f32 %v822, %v822
        %827 = vadd.xlane.f32.xlu0 %v823
        %v828 = vpop.xlane.xlu0 %827
        %829 = vadd.xlane.f32.xlu0 %v824
        %v830 = vpop.xlane.xlu0 %829
        %831 = vadd.xlane.f32.xlu0 %v825
        %v832 = vpop.xlane.xlu0 %831
        %833 = vadd.xlane.f32.xlu0 %v826
        %v834 = vpop.xlane.xlu0 %833
        %v835 = vmul.f32 %v828, %v814
        %v836 = vmul.f32 %v830, %v814
        %v837 = vmul.f32 %v832, %v814
        %v838 = vmul.f32 %v834, %v814
        %v839 = vadd.f32 %v835, 1e-05
        %v840 = vadd.f32 %v836, 1e-05
        %v841 = vadd.f32 %v837, 1e-05
        %v842 = vadd.f32 %v838, 1e-05
        %v843 = vrsqrt.pop %v839
        %v844 = vrsqrt.pop %v840
        %v845 = vrsqrt.pop %v841
        %v846 = vrsqrt.pop %v842
        %v847 = vmul.f32 %v819, %v843
        %v848 = vmul.f32 %v820, %v844
        %v849 = vmul.f32 %v821, %v845
        %v850 = vmul.f32 %v822, %v846
        %v852 = vlaneseq
        %v853 = vshrl.u32 %v852, 7
        %v854 = vsub.s32 0, %v853
        %v855 = vrot.slane %v804, %v854
        %v857 = vmul.f32 %v847, %v855
        %v858 = vmul.f32 %v848, %v855
        %v859 = vmul.f32 %v849, %v855
        %v860 = vmul.f32 %v850, %v855
        %v862 = vlaneseq
        %v863 = vshrl.u32 %v862, 7
        %v864 = vsub.s32 0, %v863
        %v865 = vrot.slane %v805, %v864
        %v867 = vadd.f32 %v857, %v865
        %v868 = vadd.f32 %v858, %v865
        %v869 = vadd.f32 %v859, %v865
        %v870 = vadd.f32 %v860, %v865
        %v871 = vpack.c.bf16 %v868, %v867
        %v872 = vpack.c.bf16 %v870, %v869
        %v873 = vld [vmem:[%s629] sm:$0xff]
        %v874 = vld [vmem:[%s629 + $0x8] sm:$0xf]
        %v875 = vld [vmem:[%s629 + $0xc] sm:$0xff]
        %v876 = vld [vmem:[%s629 + $0x14] sm:$0xf]
        %v877 = vld [vmem:[%s629 + $0x18] sm:$0xff]
        %v878 = vld [vmem:[%s629 + $0x20] sm:$0xf]
        %v879 = vld [vmem:[%s629 + $0x24] sm:$0xff]
        %v880 = vld [vmem:[%s629 + $0x2c] sm:$0xf]
        %v881 = vld [vmem:[%s629 + $0x30] sm:$0xff]
        %v882 = vld [vmem:[%s629 + $0x38] sm:$0xf]
        %v883 = vld [vmem:[%s629 + $0x3c] sm:$0xff]
        %v884 = vld [vmem:[%s629 + $0x44] sm:$0xf]
        %v885 = vld [vmem:[%s629 + $0x48] sm:$0xff]
        %v886 = vld [vmem:[%s629 + $0x50] sm:$0xf]
        %v887 = vld [vmem:[%s629 + $0x54] sm:$0xff]
        %v888 = vld [vmem:[%s629 + $0x5c] sm:$0xf]
        %v889 = vld [vmem:[%s629 + $0x60] sm:$0xff]
        %v890 = vld [vmem:[%s629 + $0x68] sm:$0xf]
        %v891 = vld [vmem:[%s629 + $0x6c] sm:$0xff]
        %v892 = vld [vmem:[%s629 + $0x74] sm:$0xf]
        %v893 = vld [vmem:[%s629 + $0x78] sm:$0xff]
        %v894 = vld [vmem:[%s629 + $0x80] sm:$0xf]
        %v895 = vld [vmem:[%s629 + $0x84] sm:$0xff]
        %v896 = vld [vmem:[%s629 + $0x8c] sm:$0xf]
        %v897 = vld [vmem:[%s629 + $0x90] sm:$0xff]
        %v898 = vld [vmem:[%s629 + $0x98] sm:$0xf]
        %v899 = vld [vmem:[%s629 + $0x9c] sm:$0xff]
        %v900 = vld [vmem:[%s629 + $0xa4] sm:$0xf]
        %v901 = vld [vmem:[%s629 + $0xa8] sm:$0xff]
        %v902 = vld [vmem:[%s629 + $0xb0] sm:$0xf]
        %v903 = vld [vmem:[%s629 + $0xb4] sm:$0xff]
        %v904 = vld [vmem:[%s629 + $0xbc] sm:$0xf]
        %v937 = vunpack.c.l.b16 %v873
        %v938 = vunpack.c.h.b16 %v873
        %v939 = vunpack.c.l.b16 %v874
        %v940 = vunpack.c.l.b16 %v875
        %v941 = vunpack.c.h.b16 %v875
        %v942 = vunpack.c.l.b16 %v876
        %v943 = vunpack.c.l.b16 %v877
        %v944 = vunpack.c.h.b16 %v877
        %v945 = vunpack.c.l.b16 %v878
        %v946 = vunpack.c.l.b16 %v879
        %v947 = vunpack.c.h.b16 %v879
        %v948 = vunpack.c.l.b16 %v880
        %v949 = vunpack.c.l.b16 %v881
        %v950 = vunpack.c.h.b16 %v881
        %v951 = vunpack.c.l.b16 %v882
        %v952 = vunpack.c.l.b16 %v883
        %v953 = vunpack.c.h.b16 %v883
        %v954 = vunpack.c.l.b16 %v884
        %v955 = vunpack.c.l.b16 %v885
        %v956 = vunpack.c.h.b16 %v885
        %v957 = vunpack.c.l.b16 %v886
        %v958 = vunpack.c.l.b16 %v887
        %v959 = vunpack.c.h.b16 %v887
        %v960 = vunpack.c.l.b16 %v888
        %v961 = vunpack.c.l.b16 %v889
        %v962 = vunpack.c.h.b16 %v889
        %v963 = vunpack.c.l.b16 %v890
        %v964 = vunpack.c.l.b16 %v891
        %v965 = vunpack.c.h.b16 %v891
        %v966 = vunpack.c.l.b16 %v892
        %v967 = vunpack.c.l.b16 %v893
        %v968 = vunpack.c.h.b16 %v893
        %v969 = vunpack.c.l.b16 %v894
        %v970 = vunpack.c.l.b16 %v895
        %v971 = vunpack.c.h.b16 %v895
        %v972 = vunpack.c.l.b16 %v896
        %v973 = vunpack.c.l.b16 %v897
        %v974 = vunpack.c.h.b16 %v897
        %v975 = vunpack.c.l.b16 %v898
        %v976 = vunpack.c.l.b16 %v899
        %v977 = vunpack.c.h.b16 %v899
        %v978 = vunpack.c.l.b16 %v900
        %v979 = vunpack.c.l.b16 %v901
        %v980 = vunpack.c.h.b16 %v901
        %v981 = vunpack.c.l.b16 %v902
        %v982 = vunpack.c.l.b16 %v903
        %v983 = vunpack.c.h.b16 %v903
        %v984 = vunpack.c.l.b16 %v904
        %v985 = vpack.c.b16 %v940, %v937
        %v986 = vpack.c.b16 %v941, %v938
        %v987 = vpack.c.b16 %v942, %v939
        %v988 = vpack.c.b16 %v946, %v943
        %v989 = vpack.c.b16 %v947, %v944
        %v990 = vpack.c.b16 %v948, %v945
        %v991 = vpack.c.b16 %v952, %v949
        %v992 = vpack.c.b16 %v953, %v950
        %v993 = vpack.c.b16 %v954, %v951
        %v994 = vpack.c.b16 %v958, %v955
        %v995 = vpack.c.b16 %v959, %v956
        %v996 = vpack.c.b16 %v960, %v957
        %v997 = vpack.c.b16 %v964, %v961
        %v998 = vpack.c.b16 %v965, %v962
        %v999 = vpack.c.b16 %v966, %v963
        %v1000 = vpack.c.b16 %v970, %v967
        %v1001 = vpack.c.b16 %v971, %v968
        %v1002 = vpack.c.b16 %v972, %v969
        %v1003 = vpack.c.b16 %v976, %v973
        %v1004 = vpack.c.b16 %v977, %v974
        %v1005 = vpack.c.b16 %v978, %v975
        %v1006 = vpack.c.b16 %v982, %v979
        %v1007 = vpack.c.b16 %v983, %v980
        %v1008 = vpack.c.b16 %v984, %v981
        %1033 = vmatprep.subr.bf16.mxu0 %v1007
        %1034 = vmatpush1.bf16.msra.mxu0 %v1006
        %1035 = vmatprep.subr.bf16.mxu0 %v1004
        %1036 = vmatpush1.bf16.msra.mxu0 %v1003
        %1037 = vmatprep.subr.bf16.mxu0 %v1001
        %1038 = vmatpush1.bf16.msra.mxu0 %v1000
        %1039 = vmatprep.subr.bf16.mxu0 %v998
        %1040 = vmatpush1.bf16.msra.mxu0 %v997
        %1041 = vmatprep.subr.bf16.mxu0 %v995
        %1042 = vmatpush1.bf16.msra.mxu0 %v994
        %1043 = vmatprep.subr.bf16.mxu0 %v992
        %1044 = vmatpush1.bf16.msra.mxu0 %v991
        %1045 = vmatprep.subr.bf16.mxu0 %v989
        %1046 = vmatpush1.bf16.msra.mxu0 %v988
        %1047 = vmatprep.subr.bf16.mxu0 %v986
        %1048 = vmatpush1.bf16.msra.mxu0 %v985
        %1049 = vmatprep.subr.bf16.mxu0 0
        %1050 = vmatpush2.bf16.msra.mxu0 0
        %1051 = vmatprep.subr.bf16.mxu0 0
        %1052 = vmatpush2.bf16.msra.mxu0 0
        %1053 = vmatprep.subr.bf16.mxu0 0
        %1054 = vmatpush2.bf16.msra.mxu0 0
        %1055 = vmatprep.subr.bf16.mxu0 0
        %1056 = vmatpush2.bf16.msra.mxu0 0
        %1057 = vmatprep.subr.bf16.mxu0 0
        %1058 = vmatpush2.bf16.msra.mxu0 0
        %1059 = vmatprep.subr.bf16.mxu0 0
        %1060 = vmatpush2.bf16.msra.mxu0 0
        %1061 = vmatprep.subr.bf16.mxu0 0
        %1062 = vmatpush2.bf16.msra.mxu0 0
        %1063 = vmatprep.subr.bf16.mxu0 0
        %1064 = vmatpush2.bf16.msra.mxu0 0
        %1065 = vmatprep.mubr.bf16.mxu0 0
        %1066 = vmatmul.mubr.bf16.gmra.mxu0 %v871
        %v1067 = vpop.f32.mrf.mxu0
        %v1068 = vadd.f32 0.0, %v1067
        %v1069 = vpop.f32.mrf.mxu0
        %v1070 = vadd.f32 0.0, %v1069
        %v1071 = vpop.f32.mrf.mxu0
        %v1072 = vadd.f32 0.0, %v1071
        %v1073 = vpop.f32.mrf.mxu0
        %v1074 = vadd.f32 0.0, %v1073
        %1075 = vmatprep.mubr.bf16.mxu0 0
        %1076 = vmatmul.mubr.bf16.gmra.mxu0 %v872
        %v1077 = vpop.f32.mrf.mxu0
        %v1078 = vadd.f32 0.0, %v1077
        %v1079 = vpop.f32.mrf.mxu0
        %v1080 = vadd.f32 0.0, %v1079
        %v1081 = vpop.f32.mrf.mxu0
        %v1082 = vadd.f32 0.0, %v1081
        %v1083 = vpop.f32.mrf.mxu0
        %v1084 = vadd.f32 0.0, %v1083
        %1085 = vdwg.mxu0
        %1086 = vmatprep.subr.bf16.mxu0 0
        %1087 = vmatpush1.bf16.msra.mxu0 %v1008
        %1088 = vmatprep.subr.bf16.mxu0 0
        %1089 = vmatpush1.bf16.msra.mxu0 %v1005
        %1090 = vmatprep.subr.bf16.mxu0 0
        %1091 = vmatpush1.bf16.msra.mxu0 %v1002
        %1092 = vmatprep.subr.bf16.mxu0 0
        %1093 = vmatpush1.bf16.msra.mxu0 %v999
        %1094 = vmatprep.subr.bf16.mxu0 0
        %1095 = vmatpush1.bf16.msra.mxu0 %v996
        %1096 = vmatprep.subr.bf16.mxu0 0
        %1097 = vmatpush1.bf16.msra.mxu0 %v993
        %1098 = vmatprep.subr.bf16.mxu0 0
        %1099 = vmatpush1.bf16.msra.mxu0 %v990
        %1100 = vmatprep.subr.bf16.mxu0 0
        %1101 = vmatpush1.bf16.msra.mxu0 %v987
        %1102 = vmatprep.subr.bf16.mxu0 0
        %1103 = vmatpush2.bf16.msra.mxu0 0
        %1104 = vmatprep.subr.bf16.mxu0 0
        %1105 = vmatpush2.bf16.msra.mxu0 0
        %1106 = vmatprep.subr.bf16.mxu0 0
        %1107 = vmatpush2.bf16.msra.mxu0 0
        %1108 = vmatprep.subr.bf16.mxu0 0
        %1109 = vmatpush2.bf16.msra.mxu0 0
        %1110 = vmatprep.subr.bf16.mxu0 0
        %1111 = vmatpush2.bf16.msra.mxu0 0
        %1112 = vmatprep.subr.bf16.mxu0 0
        %1113 = vmatpush2.bf16.msra.mxu0 0
        %1114 = vmatprep.subr.bf16.mxu0 0
        %1115 = vmatpush2.bf16.msra.mxu0 0
        %1116 = vmatprep.subr.bf16.mxu0 0
        %1117 = vmatpush2.bf16.msra.mxu0 0
        %1118 = vmatprep.mubr.bf16.mxu0 0
        %1119 = vmatmul.mubr.bf16.gmra.mxu0 %v871
        %v1120 = vpop.f32.mrf.mxu0
        %v1121 = vadd.f32 0.0, %v1120
        %v1122 = vpop.f32.mrf.mxu0
        %v1123 = vpop.f32.mrf.mxu0
        %v1124 = vadd.f32 0.0, %v1123
        %v1125 = vpop.f32.mrf.mxu0
        %1126 = vmatprep.mubr.bf16.mxu0 0
        %1127 = vmatmul.mubr.bf16.gmra.mxu0 %v872
        %v1128 = vpop.f32.mrf.mxu0
        %v1129 = vadd.f32 0.0, %v1128
        %v1130 = vpop.f32.mrf.mxu0
        %v1131 = vpop.f32.mrf.mxu0
        %v1132 = vadd.f32 0.0, %v1131
        %v1133 = vpop.f32.mrf.mxu0
        %1134 = vdwg.mxu0
        %v1135 = vmul.f32 %v1068, 0.17677669
        %v1136 = vmul.f32 %v1072, 0.17677669
        %1139 = vrot.lane.b32.xlu0 %v1135, 96
        %v1140 = vpop.permute.xlu0 %1139
        %1141 = vrot.lane.b32.xlu0 %v1136, 96
        %v1142 = vpop.permute.xlu0 %1141
        %1145 = vrot.lane.b32.xlu0 %v1135, 64
        %v1146 = vpop.permute.xlu0 %1145
        %1147 = vrot.lane.b32.xlu0 %v1136, 64
        %v1148 = vpop.permute.xlu0 %1147
        %1151 = vrot.lane.b32.xlu0 %v1135, 32
        %v1152 = vpop.permute.xlu0 %1151
        %1153 = vrot.lane.b32.xlu0 %v1136, 32
        %v1154 = vpop.permute.xlu0 %1153
        %v1157 = vpack.c.bf16 %v1136, %v1135
        %v1158 = vpack.c.bf16 %v1142, %v1140
        %v1159 = vpack.c.bf16 %v1148, %v1146
        %v1160 = vpack.c.bf16 %v1154, %v1152
        %1163 = vrot.lane.b32.xlu0 %v1070, 96
        %v1164 = vpop.permute.xlu0 %1163
        %1165 = vrot.lane.b32.xlu0 %v1074, 96
        %v1166 = vpop.permute.xlu0 %1165
        %1169 = vrot.lane.b32.xlu0 %v1070, 64
        %v1170 = vpop.permute.xlu0 %1169
        %1171 = vrot.lane.b32.xlu0 %v1074, 64
        %v1172 = vpop.permute.xlu0 %1171
        %1175 = vrot.lane.b32.xlu0 %v1070, 32
        %v1176 = vpop.permute.xlu0 %1175
        %1177 = vrot.lane.b32.xlu0 %v1074, 32
        %v1178 = vpop.permute.xlu0 %1177
        %v1181 = vpack.c.bf16 %v1074, %v1070
        %v1182 = vpack.c.bf16 %v1166, %v1164
        %v1183 = vpack.c.bf16 %v1172, %v1170
        %v1184 = vpack.c.bf16 %v1178, %v1176
        %1187 = vrot.lane.b32.xlu0 %v1121, 96
        %v1188 = vpop.permute.xlu0 %1187
        %1189 = vrot.lane.b32.xlu0 %v1124, 96
        %v1190 = vpop.permute.xlu0 %1189
        %1193 = vrot.lane.b32.xlu0 %v1121, 64
        %v1194 = vpop.permute.xlu0 %1193
        %1195 = vrot.lane.b32.xlu0 %v1124, 64
        %v1196 = vpop.permute.xlu0 %1195
        %1199 = vrot.lane.b32.xlu0 %v1121, 32
        %v1200 = vpop.permute.xlu0 %1199
        %1201 = vrot.lane.b32.xlu0 %v1124, 32
        %v1202 = vpop.permute.xlu0 %1201
        %v1205 = vpack.c.bf16 %v1124, %v1121
        %v1206 = vpack.c.bf16 %v1190, %v1188
        %v1207 = vpack.c.bf16 %v1196, %v1194
        %v1208 = vpack.c.bf16 %v1202, %v1200
        %1210 = vset.pattern.permute.xlu0 0
        %1211 = vperm.xlu0 %1210, %v800
        %v1212 = vpop.permute.xlu0 %1211
        %1215 = vset.pattern.permute.xlu0 0
        %1216 = vperm.xlu0 %1215, %v801
        %v1217 = vpop.permute.xlu0 %1216
        %v1220 = vlaneseq
        %v1221 = vshrl.u32 %v1220, 7
        %v1222 = vsub.s32 0, %v1221
        %v1223 = vrot.slane %v798, %v1222
        %v1225 = vmul.f32 %v1212, %v1223
        %v1226 = vmul.f32 %v1217, %v1223
        %v1227 = vsub.f32 %v1225, 1.0
        %v1228 = vsub.f32 %v1226, 1.0
        %v1229 = vmul.f32 %v1227, 1e+09
        %v1230 = vmul.f32 %v1228, 1e+09
        %vm1231 = vcmask 261120
        %v1233 = vsel %vm1231, %v1157, 0
        %v1236 = vsel %vm1231, %v1181, 0
        %1238 = vmatprep.subr.bf16.mxu0 0
        %1239 = vmatpush1.bf16.xpose.msra.mxu0 0
        %1240 = vmatprep.subr.bf16.mxu0 0
        %1241 = vmatpush1.bf16.xpose.msra.mxu0 0
        %1242 = vmatprep.subr.bf16.mxu0 0
        %1243 = vmatpush1.bf16.xpose.msra.mxu0 0
        %1244 = vmatprep.subr.bf16.mxu0 0
        %1245 = vmatpush1.bf16.xpose.msra.mxu0 0
        %1246 = vmatprep.subr.bf16.mxu0 0
        %1247 = vmatpush1.bf16.xpose.msra.mxu0 0
        %1248 = vmatprep.subr.bf16.mxu0 0
        %1249 = vmatpush1.bf16.xpose.msra.mxu0 0
        %1250 = vmatprep.subr.bf16.mxu0 0
        %1251 = vmatpush1.bf16.xpose.msra.mxu0 0
        %1252 = vmatprep.subr.bf16.mxu0 0
        %1253 = vmatpush1.bf16.xpose.msra.mxu0 %v1236
        %1254 = vmatprep.subr.bf16.mxu0 0
        %1255 = vmatpush2.bf16.xpose.msra.mxu0 0
        %1256 = vmatprep.subr.bf16.mxu0 0
        %1257 = vmatpush2.bf16.xpose.msra.mxu0 0
        %1258 = vmatprep.subr.bf16.mxu0 0
        %1259 = vmatpush2.bf16.xpose.msra.mxu0 0
        %1260 = vmatprep.subr.bf16.mxu0 0
        %1261 = vmatpush2.bf16.xpose.msra.mxu0 0
        %1262 = vmatprep.subr.bf16.mxu0 0
        %1263 = vmatpush2.bf16.xpose.msra.mxu0 0
        %1264 = vmatprep.subr.bf16.mxu0 0
        %1265 = vmatpush2.bf16.xpose.msra.mxu0 0
        %1266 = vmatprep.subr.bf16.mxu0 0
        %1267 = vmatpush2.bf16.xpose.msra.mxu0 0
        %1268 = vmatprep.subr.bf16.mxu0 0
        %1269 = vmatpush2.bf16.xpose.msra.mxu0 0
        %1270 = vmatprep.mubr.bf16.mxu0 0
        %1271 = vmatmul.mubr.bf16.gmra.mxu0 %v1233
        %v1272 = vpop.f32.mrf.mxu0
        %v1273 = vadd.f32 %v1229, %v1272
        %v1274 = vpop.f32.mrf.mxu0
        %v1275 = vpop.f32.mrf.mxu0
        %v1276 = vadd.f32 %v1230, %v1275
        %v1277 = vpop.f32.mrf.mxu0
        %1278 = vdwg.mxu0
        %v1280 = vsel %vm1231, %v1158, 0
        %v1283 = vsel %vm1231, %v1182, 0
        %1285 = vmatprep.subr.bf16.mxu0 0
        %1286 = vmatpush1.bf16.xpose.msra.mxu0 0
        %1287 = vmatprep.subr.bf16.mxu0 0
        %1288 = vmatpush1.bf16.xpose.msra.mxu0 0
        %1289 = vmatprep.subr.bf16.mxu0 0
        %1290 = vmatpush1.bf16.xpose.msra.mxu0 0
        %1291 = vmatprep.subr.bf16.mxu0 0
        %1292 = vmatpush1.bf16.xpose.msra.mxu0 0
        %1293 = vmatprep.subr.bf16.mxu0 0
        %1294 = vmatpush1.bf16.xpose.msra.mxu0 0
        %1295 = vmatprep.subr.bf16.mxu0 0
        %1296 = vmatpush1.bf16.xpose.msra.mxu0 0
        %1297 = vmatprep.subr.bf16.mxu0 0
        %1298 = vmatpush1.bf16.xpose.msra.mxu0 0
        %1299 = vmatprep.subr.bf16.mxu0 0
        %1300 = vmatpush1.bf16.xpose.msra.mxu0 %v1283
        %1301 = vmatprep.subr.bf16.mxu0 0
        %1302 = vmatpush2.bf16.xpose.msra.mxu0 0
        %1303 = vmatprep.subr.bf16.mxu0 0
        %1304 = vmatpush2.bf16.xpose.msra.mxu0 0
        %1305 = vmatprep.subr.bf16.mxu0 0
        %1306 = vmatpush2.bf16.xpose.msra.mxu0 0
        %1307 = vmatprep.subr.bf16.mxu0 0
        %1308 = vmatpush2.bf16.xpose.msra.mxu0 0
        %1309 = vmatprep.subr.bf16.mxu0 0
        %1310 = vmatpush2.bf16.xpose.msra.mxu0 0
        %1311 = vmatprep.subr.bf16.mxu0 0
        %1312 = vmatpush2.bf16.xpose.msra.mxu0 0
        %1313 = vmatprep.subr.bf16.mxu0 0
        %1314 = vmatpush2.bf16.xpose.msra.mxu0 0
        %1315 = vmatprep.subr.bf16.mxu0 0
        %1316 = vmatpush2.bf16.xpose.msra.mxu0 0
        %1317 = vmatprep.mubr.bf16.mxu0 0
        %1318 = vmatmul.mubr.bf16.gmra.mxu0 %v1280
        %v1319 = vpop.f32.mrf.mxu0
        %v1320 = vadd.f32 %v1229, %v1319
        %v1321 = vpop.f32.mrf.mxu0
        %v1322 = vpop.f32.mrf.mxu0
        %v1323 = vadd.f32 %v1230, %v1322
        %v1324 = vpop.f32.mrf.mxu0
        %1325 = vdwg.mxu0
        %v1327 = vsel %vm1231, %v1159, 0
        %v1330 = vsel %vm1231, %v1183, 0
        %1332 = vmatprep.subr.bf16.mxu0 0
        %1333 = vmatpush1.bf16.xpose.msra.mxu0 0
        %1334 = vmatprep.subr.bf16.mxu0 0
        %1335 = vmatpush1.bf16.xpose.msra.mxu0 0
        %1336 = vmatprep.subr.bf16.mxu0 0
        %1337 = vmatpush1.bf16.xpose.msra.mxu0 0
        %1338 = vmatprep.subr.bf16.mxu0 0
        %1339 = vmatpush1.bf16.xpose.msra.mxu0 0
        %1340 = vmatprep.subr.bf16.mxu0 0
        %1341 = vmatpush1.bf16.xpose.msra.mxu0 0
        %1342 = vmatprep.subr.bf16.mxu0 0
        %1343 = vmatpush1.bf16.xpose.msra.mxu0 0
        %1344 = vmatprep.subr.bf16.mxu0 0
        %1345 = vmatpush1.bf16.xpose.msra.mxu0 0
        %1346 = vmatprep.subr.bf16.mxu0 0
        %1347 = vmatpush1.bf16.xpose.msra.mxu0 %v1330
        %1348 = vmatprep.subr.bf16.mxu0 0
        %1349 = vmatpush2.bf16.xpose.msra.mxu0 0
        %1350 = vmatprep.subr.bf16.mxu0 0
        %1351 = vmatpush2.bf16.xpose.msra.mxu0 0
        %1352 = vmatprep.subr.bf16.mxu0 0
        %1353 = vmatpush2.bf16.xpose.msra.mxu0 0
        %1354 = vmatprep.subr.bf16.mxu0 0
        %1355 = vmatpush2.bf16.xpose.msra.mxu0 0
        %1356 = vmatprep.subr.bf16.mxu0 0
        %1357 = vmatpush2.bf16.xpose.msra.mxu0 0
        %1358 = vmatprep.subr.bf16.mxu0 0
        %1359 = vmatpush2.bf16.xpose.msra.mxu0 0
        %1360 = vmatprep.subr.bf16.mxu0 0
        %1361 = vmatpush2.bf16.xpose.msra.mxu0 0
        %1362 = vmatprep.subr.bf16.mxu0 0
        %1363 = vmatpush2.bf16.xpose.msra.mxu0 0
        %1364 = vmatprep.mubr.bf16.mxu0 0
        %1365 = vmatmul.mubr.bf16.gmra.mxu0 %v1327
        %v1366 = vpop.f32.mrf.mxu0
        %v1367 = vadd.f32 %v1229, %v1366
        %v1368 = vpop.f32.mrf.mxu0
        %v1369 = vpop.f32.mrf.mxu0
        %v1370 = vadd.f32 %v1230, %v1369
        %v1371 = vpop.f32.mrf.mxu0
        %1372 = vdwg.mxu0
        %v1374 = vsel %vm1231, %v1160, 0
        %v1377 = vsel %vm1231, %v1184, 0
        %1379 = vmatprep.subr.bf16.mxu0 0
        %1380 = vmatpush1.bf16.xpose.msra.mxu0 0
        %1381 = vmatprep.subr.bf16.mxu0 0
        %1382 = vmatpush1.bf16.xpose.msra.mxu0 0
        %1383 = vmatprep.subr.bf16.mxu0 0
        %1384 = vmatpush1.bf16.xpose.msra.mxu0 0
        %1385 = vmatprep.subr.bf16.mxu0 0
        %1386 = vmatpush1.bf16.xpose.msra.mxu0 0
        %1387 = vmatprep.subr.bf16.mxu0 0
        %1388 = vmatpush1.bf16.xpose.msra.mxu0 0
        %1389 = vmatprep.subr.bf16.mxu0 0
        %1390 = vmatpush1.bf16.xpose.msra.mxu0 0
        %1391 = vmatprep.subr.bf16.mxu0 0
        %1392 = vmatpush1.bf16.xpose.msra.mxu0 0
        %1393 = vmatprep.subr.bf16.mxu0 0
        %1394 = vmatpush1.bf16.xpose.msra.mxu0 %v1377
        %1395 = vmatprep.subr.bf16.mxu0 0
        %1396 = vmatpush2.bf16.xpose.msra.mxu0 0
        %1397 = vmatprep.subr.bf16.mxu0 0
        %1398 = vmatpush2.bf16.xpose.msra.mxu0 0
        %1399 = vmatprep.subr.bf16.mxu0 0
        %1400 = vmatpush2.bf16.xpose.msra.mxu0 0
        %1401 = vmatprep.subr.bf16.mxu0 0
        %1402 = vmatpush2.bf16.xpose.msra.mxu0 0
        %1403 = vmatprep.subr.bf16.mxu0 0
        %1404 = vmatpush2.bf16.xpose.msra.mxu0 0
        %1405 = vmatprep.subr.bf16.mxu0 0
        %1406 = vmatpush2.bf16.xpose.msra.mxu0 0
        %1407 = vmatprep.subr.bf16.mxu0 0
        %1408 = vmatpush2.bf16.xpose.msra.mxu0 0
        %1409 = vmatprep.subr.bf16.mxu0 0
        %1410 = vmatpush2.bf16.xpose.msra.mxu0 0
        %1411 = vmatprep.mubr.bf16.mxu0 0
        %1412 = vmatmul.mubr.bf16.gmra.mxu0 %v1374
        %v1413 = vpop.f32.mrf.mxu0
        %v1414 = vadd.f32 %v1229, %v1413
        %v1415 = vpop.f32.mrf.mxu0
        %v1416 = vpop.f32.mrf.mxu0
        %v1417 = vadd.f32 %v1230, %v1416
        %v1418 = vpop.f32.mrf.mxu0
        %1419 = vdwg.mxu0
        %vm1420 = vcmask 130048
        %v1421 = vsel %vm1420, %v1273, -inf
        %1422 = vmax.xlane.f32.xlu0 %v1421
        %v1423 = vpop.xlane.xlu0 %1422
        %v1424 = vsel %vm1420, %v1276, -inf
        %1425 = vmax.xlane.f32.xlu0 %v1424
        %v1426 = vpop.xlane.xlu0 %1425
        %v1427 = vsel %vm1420, %v1320, -inf
        %1428 = vmax.xlane.f32.xlu0 %v1427
        %v1429 = vpop.xlane.xlu0 %1428
        %v1430 = vsel %vm1420, %v1323, -inf
        %1431 = vmax.xlane.f32.xlu0 %v1430
        %v1432 = vpop.xlane.xlu0 %1431
        %v1433 = vsel %vm1420, %v1367, -inf
        %1434 = vmax.xlane.f32.xlu0 %v1433
        %v1435 = vpop.xlane.xlu0 %1434
        %v1436 = vsel %vm1420, %v1370, -inf
        %1437 = vmax.xlane.f32.xlu0 %v1436
        %v1438 = vpop.xlane.xlu0 %1437
        %v1439 = vsel %vm1420, %v1414, -inf
        %1440 = vmax.xlane.f32.xlu0 %v1439
        %v1441 = vpop.xlane.xlu0 %1440
        %v1442 = vsel %vm1420, %v1417, -inf
        %1443 = vmax.xlane.f32.xlu0 %v1442
        %v1444 = vpop.xlane.xlu0 %1443
        %v1445 = vsub.f32 %v1273, %v1423
        %v1446 = vsub.f32 %v1276, %v1426
        %v1447 = vsub.f32 %v1320, %v1429
        %v1448 = vsub.f32 %v1323, %v1432
        %v1449 = vsub.f32 %v1367, %v1435
        %v1450 = vsub.f32 %v1370, %v1438
        %v1451 = vsub.f32 %v1414, %v1441
        %v1452 = vsub.f32 %v1417, %v1444
        %v1453 = vmul.f32 %v1445, 1.442695
        %v1454 = vpow.pop %v1453
        %v1455 = vmul.f32 %v1446, 1.442695
        %v1456 = vpow.pop %v1455
        %v1457 = vmul.f32 %v1447, 1.442695
        %v1458 = vpow.pop %v1457
        %v1459 = vmul.f32 %v1448, 1.442695
        %v1460 = vpow.pop %v1459
        %v1461 = vmul.f32 %v1449, 1.442695
        %v1462 = vpow.pop %v1461
        %v1463 = vmul.f32 %v1450, 1.442695
        %v1464 = vpow.pop %v1463
        %v1465 = vmul.f32 %v1451, 1.442695
        %v1466 = vpow.pop %v1465
        %v1467 = vmul.f32 %v1452, 1.442695
        %v1468 = vpow.pop %v1467
        %v1469 = vsel %vm1420, %v1454, 0.0
        %1470 = vadd.xlane.f32.xlu0 %v1469
        %v1471 = vpop.xlane.xlu0 %1470
        %v1472 = vsel %vm1420, %v1456, 0.0
        %1473 = vadd.xlane.f32.xlu0 %v1472
        %v1474 = vpop.xlane.xlu0 %1473
        %v1475 = vsel %vm1420, %v1458, 0.0
        %1476 = vadd.xlane.f32.xlu0 %v1475
        %v1477 = vpop.xlane.xlu0 %1476
        %v1478 = vsel %vm1420, %v1460, 0.0
        %1479 = vadd.xlane.f32.xlu0 %v1478
        %v1480 = vpop.xlane.xlu0 %1479
        %v1481 = vsel %vm1420, %v1462, 0.0
        %1482 = vadd.xlane.f32.xlu0 %v1481
        %v1483 = vpop.xlane.xlu0 %1482
        %v1484 = vsel %vm1420, %v1464, 0.0
        %1485 = vadd.xlane.f32.xlu0 %v1484
        %v1486 = vpop.xlane.xlu0 %1485
        %v1487 = vsel %vm1420, %v1466, 0.0
        %1488 = vadd.xlane.f32.xlu0 %v1487
        %v1489 = vpop.xlane.xlu0 %1488
        %v1490 = vsel %vm1420, %v1468, 0.0
        %1491 = vadd.xlane.f32.xlu0 %v1490
        %v1492 = vpop.xlane.xlu0 %1491
        %v1493 = vrcp.pop %v1471
        %v1494 = vrcp.pop %v1474
        %v1495 = vrcp.pop %v1477
        %v1496 = vrcp.pop %v1480
        %v1497 = vrcp.pop %v1483
        %v1498 = vrcp.pop %v1486
        %v1499 = vrcp.pop %v1489
        %v1500 = vrcp.pop %v1492
        %v1501 = vmul.f32 %v1454, %v1493
        %v1502 = vmul.f32 %v1456, %v1494
        %v1503 = vmul.f32 %v1458, %v1495
        %v1504 = vmul.f32 %v1460, %v1496
        %v1505 = vmul.f32 %v1462, %v1497
        %v1506 = vmul.f32 %v1464, %v1498
        %v1507 = vmul.f32 %v1466, %v1499
        %v1508 = vmul.f32 %v1468, %v1500
        %v1509 = vpack.c.bf16 %v1502, %v1501
        %v1510 = vpack.c.bf16 %v1504, %v1503
        %v1511 = vpack.c.bf16 %v1506, %v1505
        %v1512 = vpack.c.bf16 %v1508, %v1507
        %v1514 = vsel %vm1420, %v1509, 0
        %1516 = vmatprep.subr.bf16.mxu0 0
        %1517 = vmatpush1.bf16.msra.mxu0 0
        %1518 = vmatprep.subr.bf16.mxu0 0
        %1519 = vmatpush1.bf16.msra.mxu0 0
        %1520 = vmatprep.subr.bf16.mxu0 0
        %1521 = vmatpush1.bf16.msra.mxu0 0
        %1522 = vmatprep.subr.bf16.mxu0 0
        %1523 = vmatpush1.bf16.msra.mxu0 0
        %1524 = vmatprep.subr.bf16.mxu0 0
        %1525 = vmatpush1.bf16.msra.mxu0 0
        %1526 = vmatprep.subr.bf16.mxu0 0
        %1527 = vmatpush1.bf16.msra.mxu0 0
        %1528 = vmatprep.subr.bf16.mxu0 0
        %1529 = vmatpush1.bf16.msra.mxu0 0
        %1530 = vmatprep.subr.bf16.mxu0 0
        %1531 = vmatpush1.bf16.msra.mxu0 %v1205
        %1532 = vmatprep.subr.bf16.mxu0 0
        %1533 = vmatpush2.bf16.msra.mxu0 0
        %1534 = vmatprep.subr.bf16.mxu0 0
        %1535 = vmatpush2.bf16.msra.mxu0 0
        %1536 = vmatprep.subr.bf16.mxu0 0
        %1537 = vmatpush2.bf16.msra.mxu0 0
        %1538 = vmatprep.subr.bf16.mxu0 0
        %1539 = vmatpush2.bf16.msra.mxu0 0
        %1540 = vmatprep.subr.bf16.mxu0 0
        %1541 = vmatpush2.bf16.msra.mxu0 0
        %1542 = vmatprep.subr.bf16.mxu0 0
        %1543 = vmatpush2.bf16.msra.mxu0 0
        %1544 = vmatprep.subr.bf16.mxu0 0
        %1545 = vmatpush2.bf16.msra.mxu0 0
        %1546 = vmatprep.subr.bf16.mxu0 0
        %1547 = vmatpush2.bf16.msra.mxu0 0
        %1548 = vmatprep.mubr.bf16.mxu0 0
        %1549 = vmatmul.mubr.bf16.gmra.mxu0 %v1514
        %v1550 = vpop.f32.mrf.mxu0
        %v1551 = vadd.f32 0.0, %v1550
        %v1552 = vpop.f32.mrf.mxu0
        %v1553 = vpop.f32.mrf.mxu0
        %v1554 = vadd.f32 0.0, %v1553
        %v1555 = vpop.f32.mrf.mxu0
        %1556 = vdwg.mxu0
        %v1558 = vsel %vm1420, %v1510, 0
        %1560 = vmatprep.subr.bf16.mxu0 0
        %1561 = vmatpush1.bf16.msra.mxu0 0
        %1562 = vmatprep.subr.bf16.mxu0 0
        %1563 = vmatpush1.bf16.msra.mxu0 0
        %1564 = vmatprep.subr.bf16.mxu0 0
        %1565 = vmatpush1.bf16.msra.mxu0 0
        %1566 = vmatprep.subr.bf16.mxu0 0
        %1567 = vmatpush1.bf16.msra.mxu0 0
        %1568 = vmatprep.subr.bf16.mxu0 0
        %1569 = vmatpush1.bf16.msra.mxu0 0
        %1570 = vmatprep.subr.bf16.mxu0 0
        %1571 = vmatpush1.bf16.msra.mxu0 0
        %1572 = vmatprep.subr.bf16.mxu0 0
        %1573 = vmatpush1.bf16.msra.mxu0 0
        %1574 = vmatprep.subr.bf16.mxu0 0
        %1575 = vmatpush1.bf16.msra.mxu0 %v1206
        %1576 = vmatprep.subr.bf16.mxu0 0
        %1577 = vmatpush2.bf16.msra.mxu0 0
        %1578 = vmatprep.subr.bf16.mxu0 0
        %1579 = vmatpush2.bf16.msra.mxu0 0
        %1580 = vmatprep.subr.bf16.mxu0 0
        %1581 = vmatpush2.bf16.msra.mxu0 0
        %1582 = vmatprep.subr.bf16.mxu0 0
        %1583 = vmatpush2.bf16.msra.mxu0 0
        %1584 = vmatprep.subr.bf16.mxu0 0
        %1585 = vmatpush2.bf16.msra.mxu0 0
        %1586 = vmatprep.subr.bf16.mxu0 0
        %1587 = vmatpush2.bf16.msra.mxu0 0
        %1588 = vmatprep.subr.bf16.mxu0 0
        %1589 = vmatpush2.bf16.msra.mxu0 0
        %1590 = vmatprep.subr.bf16.mxu0 0
        %1591 = vmatpush2.bf16.msra.mxu0 0
        %1592 = vmatprep.mubr.bf16.mxu0 0
        %1593 = vmatmul.mubr.bf16.gmra.mxu0 %v1558
        %v1594 = vpop.f32.mrf.mxu0
        %v1595 = vadd.f32 0.0, %v1594
        %v1596 = vpop.f32.mrf.mxu0
        %v1597 = vpop.f32.mrf.mxu0
        %v1598 = vadd.f32 0.0, %v1597
        %v1599 = vpop.f32.mrf.mxu0
        %1600 = vdwg.mxu0
        %v1602 = vsel %vm1420, %v1511, 0
        %1604 = vmatprep.subr.bf16.mxu0 0
        %1605 = vmatpush1.bf16.msra.mxu0 0
        %1606 = vmatprep.subr.bf16.mxu0 0
        %1607 = vmatpush1.bf16.msra.mxu0 0
        %1608 = vmatprep.subr.bf16.mxu0 0
        %1609 = vmatpush1.bf16.msra.mxu0 0
        %1610 = vmatprep.subr.bf16.mxu0 0
        %1611 = vmatpush1.bf16.msra.mxu0 0
        %1612 = vmatprep.subr.bf16.mxu0 0
        %1613 = vmatpush1.bf16.msra.mxu0 0
        %1614 = vmatprep.subr.bf16.mxu0 0
        %1615 = vmatpush1.bf16.msra.mxu0 0
        %1616 = vmatprep.subr.bf16.mxu0 0
        %1617 = vmatpush1.bf16.msra.mxu0 0
        %1618 = vmatprep.subr.bf16.mxu0 0
        %1619 = vmatpush1.bf16.msra.mxu0 %v1207
        %1620 = vmatprep.subr.bf16.mxu0 0
        %1621 = vmatpush2.bf16.msra.mxu0 0
        %1622 = vmatprep.subr.bf16.mxu0 0
        %1623 = vmatpush2.bf16.msra.mxu0 0
        %1624 = vmatprep.subr.bf16.mxu0 0
        %1625 = vmatpush2.bf16.msra.mxu0 0
        %1626 = vmatprep.subr.bf16.mxu0 0
        %1627 = vmatpush2.bf16.msra.mxu0 0
        %1628 = vmatprep.subr.bf16.mxu0 0
        %1629 = vmatpush2.bf16.msra.mxu0 0
        %1630 = vmatprep.subr.bf16.mxu0 0
        %1631 = vmatpush2.bf16.msra.mxu0 0
        %1632 = vmatprep.subr.bf16.mxu0 0
        %1633 = vmatpush2.bf16.msra.mxu0 0
        %1634 = vmatprep.subr.bf16.mxu0 0
        %1635 = vmatpush2.bf16.msra.mxu0 0
        %1636 = vmatprep.mubr.bf16.mxu0 0
        %1637 = vmatmul.mubr.bf16.gmra.mxu0 %v1602
        %v1638 = vpop.f32.mrf.mxu0
        %v1639 = vadd.f32 0.0, %v1638
        %v1640 = vpop.f32.mrf.mxu0
        %v1641 = vpop.f32.mrf.mxu0
        %v1642 = vadd.f32 0.0, %v1641
        %v1643 = vpop.f32.mrf.mxu0
        %1644 = vdwg.mxu0
        %v1646 = vsel %vm1420, %v1512, 0
        %1648 = vmatprep.subr.bf16.mxu0 0
        %1649 = vmatpush1.bf16.msra.mxu0 0
        %1650 = vmatprep.subr.bf16.mxu0 0
        %1651 = vmatpush1.bf16.msra.mxu0 0
        %1652 = vmatprep.subr.bf16.mxu0 0
        %1653 = vmatpush1.bf16.msra.mxu0 0
        %1654 = vmatprep.subr.bf16.mxu0 0
        %1655 = vmatpush1.bf16.msra.mxu0 0
        %1656 = vmatprep.subr.bf16.mxu0 0
        %1657 = vmatpush1.bf16.msra.mxu0 0
        %1658 = vmatprep.subr.bf16.mxu0 0
        %1659 = vmatpush1.bf16.msra.mxu0 0
        %1660 = vmatprep.subr.bf16.mxu0 0
        %1661 = vmatpush1.bf16.msra.mxu0 0
        %1662 = vmatprep.subr.bf16.mxu0 0
        %1663 = vmatpush1.bf16.msra.mxu0 %v1208
        %1664 = vmatprep.subr.bf16.mxu0 0
        %1665 = vmatpush2.bf16.msra.mxu0 0
        %1666 = vmatprep.subr.bf16.mxu0 0
        %1667 = vmatpush2.bf16.msra.mxu0 0
        %1668 = vmatprep.subr.bf16.mxu0 0
        %1669 = vmatpush2.bf16.msra.mxu0 0
        %1670 = vmatprep.subr.bf16.mxu0 0
        %1671 = vmatpush2.bf16.msra.mxu0 0
        %1672 = vmatprep.subr.bf16.mxu0 0
        %1673 = vmatpush2.bf16.msra.mxu0 0
        %1674 = vmatprep.subr.bf16.mxu0 0
        %1675 = vmatpush2.bf16.msra.mxu0 0
        %1676 = vmatprep.subr.bf16.mxu0 0
        %1677 = vmatpush2.bf16.msra.mxu0 0
        %1678 = vmatprep.subr.bf16.mxu0 0
        %1679 = vmatpush2.bf16.msra.mxu0 0
        %1680 = vmatprep.mubr.bf16.mxu0 0
        %1681 = vmatmul.mubr.bf16.gmra.mxu0 %v1646
        %v1682 = vpop.f32.mrf.mxu0
        %v1683 = vadd.f32 0.0, %v1682
        %v1684 = vpop.f32.mrf.mxu0
        %v1685 = vpop.f32.mrf.mxu0
        %v1686 = vadd.f32 0.0, %v1685
        %v1687 = vpop.f32.mrf.mxu0
        %1688 = vdwg.mxu0
        %1691 = vrot.lane.b32.xlu0 %v1595, 32
        %v1692 = vpop.permute.xlu0 %1691
        %1693 = vrot.lane.b32.xlu0 %v1598, 32
        %v1694 = vpop.permute.xlu0 %1693
        %1699 = vrot.lane.b32.xlu0 %v1639, 64
        %v1700 = vpop.permute.xlu0 %1699
        %1701 = vrot.lane.b32.xlu0 %v1642, 64
        %v1702 = vpop.permute.xlu0 %1701
        %1707 = vrot.lane.b32.xlu0 %v1683, 96
        %v1708 = vpop.permute.xlu0 %1707
        %1709 = vrot.lane.b32.xlu0 %v1686, 96
        %v1710 = vpop.permute.xlu0 %1709
        %v1713 = vsel %vm1231, %v1551, %v1692
        %v1714 = vsel %vm1231, %v1554, %v1694
        %vm1715 = vcmask 523264
        %v1716 = vsel %vm1715, %v1713, %v1700
        %v1717 = vsel %vm1715, %v1714, %v1702
        %vm1718 = vcmask 785408
        %v1719 = vsel %vm1718, %v1716, %v1708
        %v1720 = vsel %vm1718, %v1717, %v1710
        %vm1721 = vcmask 122880
        %v1722 = vsel %vm1721, %v798, 0.0
        %1723 = vadd.xlane.f32.xlu0 %v1722
        %v1724 = vpop.xlane.xlu0 %1723
        %v1725 = vlaneseq
        %v1726 = vshrl.u32 %v1725, 7
        %v1727 = vsub.s32 0, %v1726
        %v1728 = vrot.slane %v1724, %v1727
        %v1729 = vmul.f32 %v800, %v1728
        %v1730 = vmul.f32 %v801, %v1728
        %vm1731 = vcmp.gt.f32.partialorder %v1729, 0.0
        %vm1732 = vcmp.gt.f32.partialorder %v1730, 0.0
        %v1733 = vsel %vm1731, 1, 0
        %v1734 = vsel %vm1732, 1, 0
        %1735 = vset.pattern.permute.xlu0 0
        %1736 = vperm.xlu0 %1735, %v1733
        %v1737 = vpop.permute.xlu0 %1736
        %1738 = vset.pattern.permute.xlu0 0
        %1739 = vperm.xlu0 %1738, %v1734
        %v1740 = vpop.permute.xlu0 %1739
        %vm1741 = vcmp.eq.s32.totalorder %v1737, 1
        %vm1742 = vcmp.eq.s32.totalorder %v1740, 1
        %v1743 = vsel %vm1741, %v1719, 0.0
        %v1744 = vsel %vm1742, %v1720, 0.0
        %v1745 = vmul.f32 %v1078, 0.17677669
        %v1746 = vmul.f32 %v1082, 0.17677669
        %1749 = vrot.lane.b32.xlu0 %v1745, 96
        %v1750 = vpop.permute.xlu0 %1749
        %1751 = vrot.lane.b32.xlu0 %v1746, 96
        %v1752 = vpop.permute.xlu0 %1751
        %1755 = vrot.lane.b32.xlu0 %v1745, 64
        %v1756 = vpop.permute.xlu0 %1755
        %1757 = vrot.lane.b32.xlu0 %v1746, 64
        %v1758 = vpop.permute.xlu0 %1757
        %1761 = vrot.lane.b32.xlu0 %v1745, 32
        %v1762 = vpop.permute.xlu0 %1761
        %1763 = vrot.lane.b32.xlu0 %v1746, 32
        %v1764 = vpop.permute.xlu0 %1763
        %v1767 = vpack.c.bf16 %v1746, %v1745
        %v1768 = vpack.c.bf16 %v1752, %v1750
        %v1769 = vpack.c.bf16 %v1758, %v1756
        %v1770 = vpack.c.bf16 %v1764, %v1762
        %1773 = vrot.lane.b32.xlu0 %v1080, 96
        %v1774 = vpop.permute.xlu0 %1773
        %1775 = vrot.lane.b32.xlu0 %v1084, 96
        %v1776 = vpop.permute.xlu0 %1775
        %1779 = vrot.lane.b32.xlu0 %v1080, 64
        %v1780 = vpop.permute.xlu0 %1779
        %1781 = vrot.lane.b32.xlu0 %v1084, 64
        %v1782 = vpop.permute.xlu0 %1781
        %1785 = vrot.lane.b32.xlu0 %v1080, 32
        %v1786 = vpop.permute.xlu0 %1785
        %1787 = vrot.lane.b32.xlu0 %v1084, 32
        %v1788 = vpop.permute.xlu0 %1787
        %v1791 = vpack.c.bf16 %v1084, %v1080
        %v1792 = vpack.c.bf16 %v1776, %v1774
        %v1793 = vpack.c.bf16 %v1782, %v1780
        %v1794 = vpack.c.bf16 %v1788, %v1786
        %1797 = vrot.lane.b32.xlu0 %v1129, 96
        %v1798 = vpop.permute.xlu0 %1797
        %1799 = vrot.lane.b32.xlu0 %v1132, 96
        %v1800 = vpop.permute.xlu0 %1799
        %1803 = vrot.lane.b32.xlu0 %v1129, 64
        %v1804 = vpop.permute.xlu0 %1803
        %1805 = vrot.lane.b32.xlu0 %v1132, 64
        %v1806 = vpop.permute.xlu0 %1805
        %1809 = vrot.lane.b32.xlu0 %v1129, 32
        %v1810 = vpop.permute.xlu0 %1809
        %1811 = vrot.lane.b32.xlu0 %v1132, 32
        %v1812 = vpop.permute.xlu0 %1811
        %v1815 = vpack.c.bf16 %v1132, %v1129
        %v1816 = vpack.c.bf16 %v1800, %v1798
        %v1817 = vpack.c.bf16 %v1806, %v1804
        %v1818 = vpack.c.bf16 %v1812, %v1810
        %1820 = vset.pattern.permute.xlu0 0
        %1821 = vperm.xlu0 %1820, %v802
        %v1822 = vpop.permute.xlu0 %1821
        %1825 = vset.pattern.permute.xlu0 0
        %1826 = vperm.xlu0 %1825, %v803
        %v1827 = vpop.permute.xlu0 %1826
        %v1830 = vlaneseq
        %v1831 = vshrl.u32 %v1830, 7
        %v1832 = vsub.s32 0, %v1831
        %v1833 = vrot.slane %v799, %v1832
        %v1835 = vmul.f32 %v1822, %v1833
        %v1836 = vmul.f32 %v1827, %v1833
        %v1837 = vsub.f32 %v1835, 1.0
        %v1838 = vsub.f32 %v1836, 1.0
        %v1839 = vmul.f32 %v1837, 1e+09
        %v1840 = vmul.f32 %v1838, 1e+09
        %v1842 = vsel %vm1231, %v1767, 0
        %v1845 = vsel %vm1231, %v1791, 0
        %1847 = vmatprep.subr.bf16.mxu0 0
        %1848 = vmatpush1.bf16.xpose.msra.mxu0 0
        %1849 = vmatprep.subr.bf16.mxu0 0
        %1850 = vmatpush1.bf16.xpose.msra.mxu0 0
        %1851 = vmatprep.subr.bf16.mxu0 0
        %1852 = vmatpush1.bf16.xpose.msra.mxu0 0
        %1853 = vmatprep.subr.bf16.mxu0 0
        %1854 = vmatpush1.bf16.xpose.msra.mxu0 0
        %1855 = vmatprep.subr.bf16.mxu0 0
        %1856 = vmatpush1.bf16.xpose.msra.mxu0 0
        %1857 = vmatprep.subr.bf16.mxu0 0
        %1858 = vmatpush1.bf16.xpose.msra.mxu0 0
        %1859 = vmatprep.subr.bf16.mxu0 0
        %1860 = vmatpush1.bf16.xpose.msra.mxu0 0
        %1861 = vmatprep.subr.bf16.mxu0 0
        %1862 = vmatpush1.bf16.xpose.msra.mxu0 %v1845
        %1863 = vmatprep.subr.bf16.mxu0 0
        %1864 = vmatpush2.bf16.xpose.msra.mxu0 0
        %1865 = vmatprep.subr.bf16.mxu0 0
        %1866 = vmatpush2.bf16.xpose.msra.mxu0 0
        %1867 = vmatprep.subr.bf16.mxu0 0
        %1868 = vmatpush2.bf16.xpose.msra.mxu0 0
        %1869 = vmatprep.subr.bf16.mxu0 0
        %1870 = vmatpush2.bf16.xpose.msra.mxu0 0
        %1871 = vmatprep.subr.bf16.mxu0 0
        %1872 = vmatpush2.bf16.xpose.msra.mxu0 0
        %1873 = vmatprep.subr.bf16.mxu0 0
        %1874 = vmatpush2.bf16.xpose.msra.mxu0 0
        %1875 = vmatprep.subr.bf16.mxu0 0
        %1876 = vmatpush2.bf16.xpose.msra.mxu0 0
        %1877 = vmatprep.subr.bf16.mxu0 0
        %1878 = vmatpush2.bf16.xpose.msra.mxu0 0
        %1879 = vmatprep.mubr.bf16.mxu0 0
        %1880 = vmatmul.mubr.bf16.gmra.mxu0 %v1842
        %v1881 = vpop.f32.mrf.mxu0
        %v1882 = vadd.f32 %v1839, %v1881
        %v1883 = vpop.f32.mrf.mxu0
        %v1884 = vpop.f32.mrf.mxu0
        %v1885 = vadd.f32 %v1840, %v1884
        %v1886 = vpop.f32.mrf.mxu0
        %1887 = vdwg.mxu0
        %v1889 = vsel %vm1231, %v1768, 0
        %v1892 = vsel %vm1231, %v1792, 0
        %1894 = vmatprep.subr.bf16.mxu0 0
        %1895 = vmatpush1.bf16.xpose.msra.mxu0 0
        %1896 = vmatprep.subr.bf16.mxu0 0
        %1897 = vmatpush1.bf16.xpose.msra.mxu0 0
        %1898 = vmatprep.subr.bf16.mxu0 0
        %1899 = vmatpush1.bf16.xpose.msra.mxu0 0
        %1900 = vmatprep.subr.bf16.mxu0 0
        %1901 = vmatpush1.bf16.xpose.msra.mxu0 0
        %1902 = vmatprep.subr.bf16.mxu0 0
        %1903 = vmatpush1.bf16.xpose.msra.mxu0 0
        %1904 = vmatprep.subr.bf16.mxu0 0
        %1905 = vmatpush1.bf16.xpose.msra.mxu0 0
        %1906 = vmatprep.subr.bf16.mxu0 0
        %1907 = vmatpush1.bf16.xpose.msra.mxu0 0
        %1908 = vmatprep.subr.bf16.mxu0 0
        %1909 = vmatpush1.bf16.xpose.msra.mxu0 %v1892
        %1910 = vmatprep.subr.bf16.mxu0 0
        %1911 = vmatpush2.bf16.xpose.msra.mxu0 0
        %1912 = vmatprep.subr.bf16.mxu0 0
        %1913 = vmatpush2.bf16.xpose.msra.mxu0 0
        %1914 = vmatprep.subr.bf16.mxu0 0
        %1915 = vmatpush2.bf16.xpose.msra.mxu0 0
        %1916 = vmatprep.subr.bf16.mxu0 0
        %1917 = vmatpush2.bf16.xpose.msra.mxu0 0
        %1918 = vmatprep.subr.bf16.mxu0 0
        %1919 = vmatpush2.bf16.xpose.msra.mxu0 0
        %1920 = vmatprep.subr.bf16.mxu0 0
        %1921 = vmatpush2.bf16.xpose.msra.mxu0 0
        %1922 = vmatprep.subr.bf16.mxu0 0
        %1923 = vmatpush2.bf16.xpose.msra.mxu0 0
        %1924 = vmatprep.subr.bf16.mxu0 0
        %1925 = vmatpush2.bf16.xpose.msra.mxu0 0
        %1926 = vmatprep.mubr.bf16.mxu0 0
        %1927 = vmatmul.mubr.bf16.gmra.mxu0 %v1889
        %v1928 = vpop.f32.mrf.mxu0
        %v1929 = vadd.f32 %v1839, %v1928
        %v1930 = vpop.f32.mrf.mxu0
        %v1931 = vpop.f32.mrf.mxu0
        %v1932 = vadd.f32 %v1840, %v1931
        %v1933 = vpop.f32.mrf.mxu0
        %1934 = vdwg.mxu0
        %v1936 = vsel %vm1231, %v1769, 0
        %v1939 = vsel %vm1231, %v1793, 0
        %1941 = vmatprep.subr.bf16.mxu0 0
        %1942 = vmatpush1.bf16.xpose.msra.mxu0 0
        %1943 = vmatprep.subr.bf16.mxu0 0
        %1944 = vmatpush1.bf16.xpose.msra.mxu0 0
        %1945 = vmatprep.subr.bf16.mxu0 0
        %1946 = vmatpush1.bf16.xpose.msra.mxu0 0
        %1947 = vmatprep.subr.bf16.mxu0 0
        %1948 = vmatpush1.bf16.xpose.msra.mxu0 0
        %1949 = vmatprep.subr.bf16.mxu0 0
        %1950 = vmatpush1.bf16.xpose.msra.mxu0 0
        %1951 = vmatprep.subr.bf16.mxu0 0
        %1952 = vmatpush1.bf16.xpose.msra.mxu0 0
        %1953 = vmatprep.subr.bf16.mxu0 0
        %1954 = vmatpush1.bf16.xpose.msra.mxu0 0
        %1955 = vmatprep.subr.bf16.mxu0 0
        %1956 = vmatpush1.bf16.xpose.msra.mxu0 %v1939
        %1957 = vmatprep.subr.bf16.mxu0 0
        %1958 = vmatpush2.bf16.xpose.msra.mxu0 0
        %1959 = vmatprep.subr.bf16.mxu0 0
        %1960 = vmatpush2.bf16.xpose.msra.mxu0 0
        %1961 = vmatprep.subr.bf16.mxu0 0
        %1962 = vmatpush2.bf16.xpose.msra.mxu0 0
        %1963 = vmatprep.subr.bf16.mxu0 0
        %1964 = vmatpush2.bf16.xpose.msra.mxu0 0
        %1965 = vmatprep.subr.bf16.mxu0 0
        %1966 = vmatpush2.bf16.xpose.msra.mxu0 0
        %1967 = vmatprep.subr.bf16.mxu0 0
        %1968 = vmatpush2.bf16.xpose.msra.mxu0 0
        %1969 = vmatprep.subr.bf16.mxu0 0
        %1970 = vmatpush2.bf16.xpose.msra.mxu0 0
        %1971 = vmatprep.subr.bf16.mxu0 0
        %1972 = vmatpush2.bf16.xpose.msra.mxu0 0
        %1973 = vmatprep.mubr.bf16.mxu0 0
        %1974 = vmatmul.mubr.bf16.gmra.mxu0 %v1936
        %v1975 = vpop.f32.mrf.mxu0
        %v1976 = vadd.f32 %v1839, %v1975
        %v1977 = vpop.f32.mrf.mxu0
        %v1978 = vpop.f32.mrf.mxu0
        %v1979 = vadd.f32 %v1840, %v1978
        %v1980 = vpop.f32.mrf.mxu0
        %1981 = vdwg.mxu0
        %v1983 = vsel %vm1231, %v1770, 0
        %v1986 = vsel %vm1231, %v1794, 0
        %1988 = vmatprep.subr.bf16.mxu0 0
        %1989 = vmatpush1.bf16.xpose.msra.mxu0 0
        %1990 = vmatprep.subr.bf16.mxu0 0
        %1991 = vmatpush1.bf16.xpose.msra.mxu0 0
        %1992 = vmatprep.subr.bf16.mxu0 0
        %1993 = vmatpush1.bf16.xpose.msra.mxu0 0
        %1994 = vmatprep.subr.bf16.mxu0 0
        %1995 = vmatpush1.bf16.xpose.msra.mxu0 0
        %1996 = vmatprep.subr.bf16.mxu0 0
        %1997 = vmatpush1.bf16.xpose.msra.mxu0 0
        %1998 = vmatprep.subr.bf16.mxu0 0
        %1999 = vmatpush1.bf16.xpose.msra.mxu0 0
        %2000 = vmatprep.subr.bf16.mxu0 0
        %2001 = vmatpush1.bf16.xpose.msra.mxu0 0
        %2002 = vmatprep.subr.bf16.mxu0 0
        %2003 = vmatpush1.bf16.xpose.msra.mxu0 %v1986
        %2004 = vmatprep.subr.bf16.mxu0 0
        %2005 = vmatpush2.bf16.xpose.msra.mxu0 0
        %2006 = vmatprep.subr.bf16.mxu0 0
        %2007 = vmatpush2.bf16.xpose.msra.mxu0 0
        %2008 = vmatprep.subr.bf16.mxu0 0
        %2009 = vmatpush2.bf16.xpose.msra.mxu0 0
        %2010 = vmatprep.subr.bf16.mxu0 0
        %2011 = vmatpush2.bf16.xpose.msra.mxu0 0
        %2012 = vmatprep.subr.bf16.mxu0 0
        %2013 = vmatpush2.bf16.xpose.msra.mxu0 0
        %2014 = vmatprep.subr.bf16.mxu0 0
        %2015 = vmatpush2.bf16.xpose.msra.mxu0 0
        %2016 = vmatprep.subr.bf16.mxu0 0
        %2017 = vmatpush2.bf16.xpose.msra.mxu0 0
        %2018 = vmatprep.subr.bf16.mxu0 0
        %2019 = vmatpush2.bf16.xpose.msra.mxu0 0
        %2020 = vmatprep.mubr.bf16.mxu0 0
        %2021 = vmatmul.mubr.bf16.gmra.mxu0 %v1983
        %v2022 = vpop.f32.mrf.mxu0
        %v2023 = vadd.f32 %v1839, %v2022
        %v2024 = vpop.f32.mrf.mxu0
        %v2025 = vpop.f32.mrf.mxu0
        %v2026 = vadd.f32 %v1840, %v2025
        %v2027 = vpop.f32.mrf.mxu0
        %2028 = vdwg.mxu0
        %v2029 = vsel %vm1420, %v1882, -inf
        %2030 = vmax.xlane.f32.xlu0 %v2029
        %v2031 = vpop.xlane.xlu0 %2030
        %v2032 = vsel %vm1420, %v1885, -inf
        %2033 = vmax.xlane.f32.xlu0 %v2032
        %v2034 = vpop.xlane.xlu0 %2033
        %v2035 = vsel %vm1420, %v1929, -inf
        %2036 = vmax.xlane.f32.xlu0 %v2035
        %v2037 = vpop.xlane.xlu0 %2036
        %v2038 = vsel %vm1420, %v1932, -inf
        %2039 = vmax.xlane.f32.xlu0 %v2038
        %v2040 = vpop.xlane.xlu0 %2039
        %v2041 = vsel %vm1420, %v1976, -inf
        %2042 = vmax.xlane.f32.xlu0 %v2041
        %v2043 = vpop.xlane.xlu0 %2042
        %v2044 = vsel %vm1420, %v1979, -inf
        %2045 = vmax.xlane.f32.xlu0 %v2044
        %v2046 = vpop.xlane.xlu0 %2045
        %v2047 = vsel %vm1420, %v2023, -inf
        %2048 = vmax.xlane.f32.xlu0 %v2047
        %v2049 = vpop.xlane.xlu0 %2048
        %v2050 = vsel %vm1420, %v2026, -inf
        %2051 = vmax.xlane.f32.xlu0 %v2050
        %v2052 = vpop.xlane.xlu0 %2051
        %v2053 = vsub.f32 %v1882, %v2031
        %v2054 = vsub.f32 %v1885, %v2034
        %v2055 = vsub.f32 %v1929, %v2037
        %v2056 = vsub.f32 %v1932, %v2040
        %v2057 = vsub.f32 %v1976, %v2043
        %v2058 = vsub.f32 %v1979, %v2046
        %v2059 = vsub.f32 %v2023, %v2049
        %v2060 = vsub.f32 %v2026, %v2052
        %v2061 = vmul.f32 %v2053, 1.442695
        %v2062 = vpow.pop %v2061
        %v2063 = vmul.f32 %v2054, 1.442695
        %v2064 = vpow.pop %v2063
        %v2065 = vmul.f32 %v2055, 1.442695
        %v2066 = vpow.pop %v2065
        %v2067 = vmul.f32 %v2056, 1.442695
        %v2068 = vpow.pop %v2067
        %v2069 = vmul.f32 %v2057, 1.442695
        %v2070 = vpow.pop %v2069
        %v2071 = vmul.f32 %v2058, 1.442695
        %v2072 = vpow.pop %v2071
        %v2073 = vmul.f32 %v2059, 1.442695
        %v2074 = vpow.pop %v2073
        %v2075 = vmul.f32 %v2060, 1.442695
        %v2076 = vpow.pop %v2075
        %v2077 = vsel %vm1420, %v2062, 0.0
        %2078 = vadd.xlane.f32.xlu0 %v2077
        %v2079 = vpop.xlane.xlu0 %2078
        %v2080 = vsel %vm1420, %v2064, 0.0
        %2081 = vadd.xlane.f32.xlu0 %v2080
        %v2082 = vpop.xlane.xlu0 %2081
        %v2083 = vsel %vm1420, %v2066, 0.0
        %2084 = vadd.xlane.f32.xlu0 %v2083
        %v2085 = vpop.xlane.xlu0 %2084
        %v2086 = vsel %vm1420, %v2068, 0.0
        %2087 = vadd.xlane.f32.xlu0 %v2086
        %v2088 = vpop.xlane.xlu0 %2087
        %v2089 = vsel %vm1420, %v2070, 0.0
        %2090 = vadd.xlane.f32.xlu0 %v2089
        %v2091 = vpop.xlane.xlu0 %2090
        %v2092 = vsel %vm1420, %v2072, 0.0
        %2093 = vadd.xlane.f32.xlu0 %v2092
        %v2094 = vpop.xlane.xlu0 %2093
        %v2095 = vsel %vm1420, %v2074, 0.0
        %2096 = vadd.xlane.f32.xlu0 %v2095
        %v2097 = vpop.xlane.xlu0 %2096
        %v2098 = vsel %vm1420, %v2076, 0.0
        %2099 = vadd.xlane.f32.xlu0 %v2098
        %v2100 = vpop.xlane.xlu0 %2099
        %v2101 = vrcp.pop %v2079
        %v2102 = vrcp.pop %v2082
        %v2103 = vrcp.pop %v2085
        %v2104 = vrcp.pop %v2088
        %v2105 = vrcp.pop %v2091
        %v2106 = vrcp.pop %v2094
        %v2107 = vrcp.pop %v2097
        %v2108 = vrcp.pop %v2100
        %v2109 = vmul.f32 %v2062, %v2101
        %v2110 = vmul.f32 %v2064, %v2102
        %v2111 = vmul.f32 %v2066, %v2103
        %v2112 = vmul.f32 %v2068, %v2104
        %v2113 = vmul.f32 %v2070, %v2105
        %v2114 = vmul.f32 %v2072, %v2106
        %v2115 = vmul.f32 %v2074, %v2107
        %v2116 = vmul.f32 %v2076, %v2108
        %v2117 = vpack.c.bf16 %v2110, %v2109
        %v2118 = vpack.c.bf16 %v2112, %v2111
        %v2119 = vpack.c.bf16 %v2114, %v2113
        %v2120 = vpack.c.bf16 %v2116, %v2115
        %v2122 = vsel %vm1420, %v2117, 0
        %2124 = vmatprep.subr.bf16.mxu0 0
        %2125 = vmatpush1.bf16.msra.mxu0 0
        %2126 = vmatprep.subr.bf16.mxu0 0
        %2127 = vmatpush1.bf16.msra.mxu0 0
        %2128 = vmatprep.subr.bf16.mxu0 0
        %2129 = vmatpush1.bf16.msra.mxu0 0
        %2130 = vmatprep.subr.bf16.mxu0 0
        %2131 = vmatpush1.bf16.msra.mxu0 0
        %2132 = vmatprep.subr.bf16.mxu0 0
        %2133 = vmatpush1.bf16.msra.mxu0 0
        %2134 = vmatprep.subr.bf16.mxu0 0
        %2135 = vmatpush1.bf16.msra.mxu0 0
        %2136 = vmatprep.subr.bf16.mxu0 0
        %2137 = vmatpush1.bf16.msra.mxu0 0
        %2138 = vmatprep.subr.bf16.mxu0 0
        %2139 = vmatpush1.bf16.msra.mxu0 %v1815
        %2140 = vmatprep.subr.bf16.mxu0 0
        %2141 = vmatpush2.bf16.msra.mxu0 0
        %2142 = vmatprep.subr.bf16.mxu0 0
        %2143 = vmatpush2.bf16.msra.mxu0 0
        %2144 = vmatprep.subr.bf16.mxu0 0
        %2145 = vmatpush2.bf16.msra.mxu0 0
        %2146 = vmatprep.subr.bf16.mxu0 0
        %2147 = vmatpush2.bf16.msra.mxu0 0
        %2148 = vmatprep.subr.bf16.mxu0 0
        %2149 = vmatpush2.bf16.msra.mxu0 0
        %2150 = vmatprep.subr.bf16.mxu0 0
        %2151 = vmatpush2.bf16.msra.mxu0 0
        %2152 = vmatprep.subr.bf16.mxu0 0
        %2153 = vmatpush2.bf16.msra.mxu0 0
        %2154 = vmatprep.subr.bf16.mxu0 0
        %2155 = vmatpush2.bf16.msra.mxu0 0
        %2156 = vmatprep.mubr.bf16.mxu0 0
        %2157 = vmatmul.mubr.bf16.gmra.mxu0 %v2122
        %v2158 = vpop.f32.mrf.mxu0
        %v2159 = vadd.f32 0.0, %v2158
        %v2160 = vpop.f32.mrf.mxu0
        %v2161 = vpop.f32.mrf.mxu0
        %v2162 = vadd.f32 0.0, %v2161
        %v2163 = vpop.f32.mrf.mxu0
        %2164 = vdwg.mxu0
        %v2166 = vsel %vm1420, %v2118, 0
        %2168 = vmatprep.subr.bf16.mxu0 0
        %2169 = vmatpush1.bf16.msra.mxu0 0
        %2170 = vmatprep.subr.bf16.mxu0 0
        %2171 = vmatpush1.bf16.msra.mxu0 0
        %2172 = vmatprep.subr.bf16.mxu0 0
        %2173 = vmatpush1.bf16.msra.mxu0 0
        %2174 = vmatprep.subr.bf16.mxu0 0
        %2175 = vmatpush1.bf16.msra.mxu0 0
        %2176 = vmatprep.subr.bf16.mxu0 0
        %2177 = vmatpush1.bf16.msra.mxu0 0
        %2178 = vmatprep.subr.bf16.mxu0 0
        %2179 = vmatpush1.bf16.msra.mxu0 0
        %2180 = vmatprep.subr.bf16.mxu0 0
        %2181 = vmatpush1.bf16.msra.mxu0 0
        %2182 = vmatprep.subr.bf16.mxu0 0
        %2183 = vmatpush1.bf16.msra.mxu0 %v1816
        %2184 = vmatprep.subr.bf16.mxu0 0
        %2185 = vmatpush2.bf16.msra.mxu0 0
        %2186 = vmatprep.subr.bf16.mxu0 0
        %2187 = vmatpush2.bf16.msra.mxu0 0
        %2188 = vmatprep.subr.bf16.mxu0 0
        %2189 = vmatpush2.bf16.msra.mxu0 0
        %2190 = vmatprep.subr.bf16.mxu0 0
        %2191 = vmatpush2.bf16.msra.mxu0 0
        %2192 = vmatprep.subr.bf16.mxu0 0
        %2193 = vmatpush2.bf16.msra.mxu0 0
        %2194 = vmatprep.subr.bf16.mxu0 0
        %2195 = vmatpush2.bf16.msra.mxu0 0
        %2196 = vmatprep.subr.bf16.mxu0 0
        %2197 = vmatpush2.bf16.msra.mxu0 0
        %2198 = vmatprep.subr.bf16.mxu0 0
        %2199 = vmatpush2.bf16.msra.mxu0 0
        %2200 = vmatprep.mubr.bf16.mxu0 0
        %2201 = vmatmul.mubr.bf16.gmra.mxu0 %v2166
        %v2202 = vpop.f32.mrf.mxu0
        %v2203 = vadd.f32 0.0, %v2202
        %v2204 = vpop.f32.mrf.mxu0
        %v2205 = vpop.f32.mrf.mxu0
        %v2206 = vadd.f32 0.0, %v2205
        %v2207 = vpop.f32.mrf.mxu0
        %2208 = vdwg.mxu0
        %v2210 = vsel %vm1420, %v2119, 0
        %2212 = vmatprep.subr.bf16.mxu0 0
        %2213 = vmatpush1.bf16.msra.mxu0 0
        %2214 = vmatprep.subr.bf16.mxu0 0
        %2215 = vmatpush1.bf16.msra.mxu0 0
        %2216 = vmatprep.subr.bf16.mxu0 0
        %2217 = vmatpush1.bf16.msra.mxu0 0
        %2218 = vmatprep.subr.bf16.mxu0 0
        %2219 = vmatpush1.bf16.msra.mxu0 0
        %2220 = vmatprep.subr.bf16.mxu0 0
        %2221 = vmatpush1.bf16.msra.mxu0 0
        %2222 = vmatprep.subr.bf16.mxu0 0
        %2223 = vmatpush1.bf16.msra.mxu0 0
        %2224 = vmatprep.subr.bf16.mxu0 0
        %2225 = vmatpush1.bf16.msra.mxu0 0
        %2226 = vmatprep.subr.bf16.mxu0 0
        %2227 = vmatpush1.bf16.msra.mxu0 %v1817
        %2228 = vmatprep.subr.bf16.mxu0 0
        %2229 = vmatpush2.bf16.msra.mxu0 0
        %2230 = vmatprep.subr.bf16.mxu0 0
        %2231 = vmatpush2.bf16.msra.mxu0 0
        %2232 = vmatprep.subr.bf16.mxu0 0
        %2233 = vmatpush2.bf16.msra.mxu0 0
        %2234 = vmatprep.subr.bf16.mxu0 0
        %2235 = vmatpush2.bf16.msra.mxu0 0
        %2236 = vmatprep.subr.bf16.mxu0 0
        %2237 = vmatpush2.bf16.msra.mxu0 0
        %2238 = vmatprep.subr.bf16.mxu0 0
        %2239 = vmatpush2.bf16.msra.mxu0 0
        %2240 = vmatprep.subr.bf16.mxu0 0
        %2241 = vmatpush2.bf16.msra.mxu0 0
        %2242 = vmatprep.subr.bf16.mxu0 0
        %2243 = vmatpush2.bf16.msra.mxu0 0
        %2244 = vmatprep.mubr.bf16.mxu0 0
        %2245 = vmatmul.mubr.bf16.gmra.mxu0 %v2210
        %v2246 = vpop.f32.mrf.mxu0
        %v2247 = vadd.f32 0.0, %v2246
        %v2248 = vpop.f32.mrf.mxu0
        %v2249 = vpop.f32.mrf.mxu0
        %v2250 = vadd.f32 0.0, %v2249
        %v2251 = vpop.f32.mrf.mxu0
        %2252 = vdwg.mxu0
        %v2254 = vsel %vm1420, %v2120, 0
        %2256 = vmatprep.subr.bf16.mxu0 0
        %2257 = vmatpush1.bf16.msra.mxu0 0
        %2258 = vmatprep.subr.bf16.mxu0 0
        %2259 = vmatpush1.bf16.msra.mxu0 0
        %2260 = vmatprep.subr.bf16.mxu0 0
        %2261 = vmatpush1.bf16.msra.mxu0 0
        %2262 = vmatprep.subr.bf16.mxu0 0
        %2263 = vmatpush1.bf16.msra.mxu0 0
        %2264 = vmatprep.subr.bf16.mxu0 0
        %2265 = vmatpush1.bf16.msra.mxu0 0
        %2266 = vmatprep.subr.bf16.mxu0 0
        %2267 = vmatpush1.bf16.msra.mxu0 0
        %2268 = vmatprep.subr.bf16.mxu0 0
        %2269 = vmatpush1.bf16.msra.mxu0 0
        %2270 = vmatprep.subr.bf16.mxu0 0
        %2271 = vmatpush1.bf16.msra.mxu0 %v1818
        %2272 = vmatprep.subr.bf16.mxu0 0
        %2273 = vmatpush2.bf16.msra.mxu0 0
        %2274 = vmatprep.subr.bf16.mxu0 0
        %2275 = vmatpush2.bf16.msra.mxu0 0
        %2276 = vmatprep.subr.bf16.mxu0 0
        %2277 = vmatpush2.bf16.msra.mxu0 0
        %2278 = vmatprep.subr.bf16.mxu0 0
        %2279 = vmatpush2.bf16.msra.mxu0 0
        %2280 = vmatprep.subr.bf16.mxu0 0
        %2281 = vmatpush2.bf16.msra.mxu0 0
        %2282 = vmatprep.subr.bf16.mxu0 0
        %2283 = vmatpush2.bf16.msra.mxu0 0
        %2284 = vmatprep.subr.bf16.mxu0 0
        %2285 = vmatpush2.bf16.msra.mxu0 0
        %2286 = vmatprep.subr.bf16.mxu0 0
        %2287 = vmatpush2.bf16.msra.mxu0 0
        %2288 = vmatprep.mubr.bf16.mxu0 0
        %2289 = vmatmul.mubr.bf16.gmra.mxu0 %v2254
        %v2290 = vpop.f32.mrf.mxu0
        %v2291 = vadd.f32 0.0, %v2290
        %v2292 = vpop.f32.mrf.mxu0
        %v2293 = vpop.f32.mrf.mxu0
        %v2294 = vadd.f32 0.0, %v2293
        %v2295 = vpop.f32.mrf.mxu0
        %2296 = vdwg.mxu0
        %2299 = vrot.lane.b32.xlu0 %v2203, 32
        %v2300 = vpop.permute.xlu0 %2299
        %2301 = vrot.lane.b32.xlu0 %v2206, 32
        %v2302 = vpop.permute.xlu0 %2301
        %2307 = vrot.lane.b32.xlu0 %v2247, 64
        %v2308 = vpop.permute.xlu0 %2307
        %2309 = vrot.lane.b32.xlu0 %v2250, 64
        %v2310 = vpop.permute.xlu0 %2309
        %2315 = vrot.lane.b32.xlu0 %v2291, 96
        %v2316 = vpop.permute.xlu0 %2315
        %2317 = vrot.lane.b32.xlu0 %v2294, 96
        %v2318 = vpop.permute.xlu0 %2317
        %v2321 = vsel %vm1231, %v2159, %v2300
        %v2322 = vsel %vm1231, %v2162, %v2302
        %v2323 = vsel %vm1715, %v2321, %v2308
        %v2324 = vsel %vm1715, %v2322, %v2310
        %v2325 = vsel %vm1718, %v2323, %v2316
        %v2326 = vsel %vm1718, %v2324, %v2318
        %v2327 = vsel %vm1721, %v799, 0.0
        %2328 = vadd.xlane.f32.xlu0 %v2327
        %v2329 = vpop.xlane.xlu0 %2328
        %v2330 = vlaneseq
        %v2331 = vshrl.u32 %v2330, 7
        %v2332 = vsub.s32 0, %v2331
        %v2333 = vrot.slane %v2329, %v2332
        %v2334 = vmul.f32 %v802, %v2333
        %v2335 = vmul.f32 %v803, %v2333
        %vm2336 = vcmp.gt.f32.partialorder %v2334, 0.0
        %vm2337 = vcmp.gt.f32.partialorder %v2335, 0.0
        %v2338 = vsel %vm2336, 1, 0
        %v2339 = vsel %vm2337, 1, 0
        %2340 = vset.pattern.permute.xlu0 0
        %2341 = vperm.xlu0 %2340, %v2338
        %v2342 = vpop.permute.xlu0 %2341
        %2343 = vset.pattern.permute.xlu0 0
        %2344 = vperm.xlu0 %2343, %v2339
        %v2345 = vpop.permute.xlu0 %2344
        %vm2346 = vcmp.eq.s32.totalorder %v2342, 1
        %vm2347 = vcmp.eq.s32.totalorder %v2345, 1
        %v2348 = vsel %vm2346, %v2325, 0.0
        %v2349 = vsel %vm2347, %v2326, 0.0
        %v2350 = vpack.c.bf16 %v1744, %v1743
        %v2351 = vpack.c.bf16 %v2349, %v2348
        %v2352 = vld [vmem:[%s638] sm:$0xf]
        %v2353 = vld [vmem:[%s638 + $0x4] sm:$0xf]
        %v2354 = vld [vmem:[%s638 + $0x8] sm:$0xf]
        %v2355 = vld [vmem:[%s638 + $0xc] sm:$0xf]
        %v2356 = vld [vmem:[%s638 + $0x10] sm:$0xf]
        %v2357 = vld [vmem:[%s638 + $0x14] sm:$0xf]
        %v2358 = vld [vmem:[%s638 + $0x18] sm:$0xf]
        %v2359 = vld [vmem:[%s638 + $0x1c] sm:$0xf]
        %v2360 = vld [vmem:[%s638 + $0x20] sm:$0xf]
        %v2361 = vld [vmem:[%s638 + $0x24] sm:$0xf]
        %v2362 = vld [vmem:[%s638 + $0x28] sm:$0xf]
        %v2363 = vld [vmem:[%s638 + $0x2c] sm:$0xf]
        %v2364 = vld [vmem:[%s638 + $0x30] sm:$0xf]
        %v2365 = vld [vmem:[%s638 + $0x34] sm:$0xf]
        %v2366 = vld [vmem:[%s638 + $0x38] sm:$0xf]
        %v2367 = vld [vmem:[%s638 + $0x3c] sm:$0xf]
        %v2384 = vunpack.c.l.b16 %v2352
        %v2385 = vunpack.c.l.b16 %v2353
        %v2386 = vunpack.c.l.b16 %v2354
        %v2387 = vunpack.c.l.b16 %v2355
        %v2388 = vunpack.c.l.b16 %v2356
        %v2389 = vunpack.c.l.b16 %v2357
        %v2390 = vunpack.c.l.b16 %v2358
        %v2391 = vunpack.c.l.b16 %v2359
        %v2392 = vunpack.c.l.b16 %v2360
        %v2393 = vunpack.c.l.b16 %v2361
        %v2394 = vunpack.c.l.b16 %v2362
        %v2395 = vunpack.c.l.b16 %v2363
        %v2396 = vunpack.c.l.b16 %v2364
        %v2397 = vunpack.c.l.b16 %v2365
        %v2398 = vunpack.c.l.b16 %v2366
        %v2399 = vunpack.c.l.b16 %v2367
        %v2400 = vpack.c.b16 %v2385, %v2384
        %v2401 = vpack.c.b16 %v2387, %v2386
        %v2402 = vpack.c.b16 %v2389, %v2388
        %v2403 = vpack.c.b16 %v2391, %v2390
        %v2404 = vpack.c.b16 %v2393, %v2392
        %v2405 = vpack.c.b16 %v2395, %v2394
        %v2406 = vpack.c.b16 %v2397, %v2396
        %v2407 = vpack.c.b16 %v2399, %v2398
        %2416 = vmatprep.subr.bf16.mxu0 0
        %2417 = vmatpush1.bf16.msra.mxu0 %v2407
        %2418 = vmatprep.subr.bf16.mxu0 0
        %2419 = vmatpush1.bf16.msra.mxu0 %v2406
        %2420 = vmatprep.subr.bf16.mxu0 0
        %2421 = vmatpush1.bf16.msra.mxu0 %v2405
        %2422 = vmatprep.subr.bf16.mxu0 0
        %2423 = vmatpush1.bf16.msra.mxu0 %v2404
        %2424 = vmatprep.subr.bf16.mxu0 0
        %2425 = vmatpush1.bf16.msra.mxu0 %v2403
        %2426 = vmatprep.subr.bf16.mxu0 0
        %2427 = vmatpush1.bf16.msra.mxu0 %v2402
        %2428 = vmatprep.subr.bf16.mxu0 0
        %2429 = vmatpush1.bf16.msra.mxu0 %v2401
        %2430 = vmatprep.subr.bf16.mxu0 0
        %2431 = vmatpush1.bf16.msra.mxu0 %v2400
        %2432 = vmatprep.subr.bf16.mxu0 0
        %2433 = vmatpush2.bf16.msra.mxu0 0
        %2434 = vmatprep.subr.bf16.mxu0 0
        %2435 = vmatpush2.bf16.msra.mxu0 0
        %2436 = vmatprep.subr.bf16.mxu0 0
        %2437 = vmatpush2.bf16.msra.mxu0 0
        %2438 = vmatprep.subr.bf16.mxu0 0
        %2439 = vmatpush2.bf16.msra.mxu0 0
        %2440 = vmatprep.subr.bf16.mxu0 0
        %2441 = vmatpush2.bf16.msra.mxu0 0
        %2442 = vmatprep.subr.bf16.mxu0 0
        %2443 = vmatpush2.bf16.msra.mxu0 0
        %2444 = vmatprep.subr.bf16.mxu0 0
        %2445 = vmatpush2.bf16.msra.mxu0 0
        %2446 = vmatprep.subr.bf16.mxu0 0
        %2447 = vmatpush2.bf16.msra.mxu0 0
        %2448 = vmatprep.mubr.bf16.mxu0 0
        %2449 = vmatmul.mubr.bf16.gmra.mxu0 %v2350
        %v2450 = vpop.f32.mrf.mxu0
        %v2451 = vadd.f32 0.0, %v2450
        %v2452 = vpop.f32.mrf.mxu0
        %v2453 = vpop.f32.mrf.mxu0
        %v2454 = vadd.f32 0.0, %v2453
        %v2455 = vpop.f32.mrf.mxu0
        %2456 = vmatprep.mubr.bf16.mxu0 0
        %2457 = vmatmul.mubr.bf16.gmra.mxu0 %v2351
        %v2458 = vpop.f32.mrf.mxu0
        %v2459 = vadd.f32 0.0, %v2458
        %v2460 = vpop.f32.mrf.mxu0
        %v2461 = vpop.f32.mrf.mxu0
        %v2462 = vadd.f32 0.0, %v2461
        %v2463 = vpop.f32.mrf.mxu0
        %2464 = vdwg.mxu0
        %v2465 = vadd.f32 %v794, %v2451
        %v2466 = vadd.f32 %v795, %v2454
        %v2467 = vadd.f32 %v796, %v2459
        %v2468 = vadd.f32 %v797, %v2462
        %v2469 = vld [vmem:[%s769] sm:$0x1]
        %v2470 = vld [vmem:[%s772] sm:$0x1]
        %2471 = vadd.xlane.f32.xlu0 %v2465
        %v2472 = vpop.xlane.xlu0 %2471
        %2473 = vadd.xlane.f32.xlu0 %v2466
        %v2474 = vpop.xlane.xlu0 %2473
        %2475 = vadd.xlane.f32.xlu0 %v2467
        %v2476 = vpop.xlane.xlu0 %2475
        %2477 = vadd.xlane.f32.xlu0 %v2468
        %v2478 = vpop.xlane.xlu0 %2477
        %v2479 = vmul.f32 %v2472, %v814
        %v2480 = vmul.f32 %v2474, %v814
        %v2481 = vmul.f32 %v2476, %v814
        %v2482 = vmul.f32 %v2478, %v814
        %v2483 = vsub.f32 %v2465, %v2479
        %v2484 = vsub.f32 %v2466, %v2480
        %v2485 = vsub.f32 %v2467, %v2481
        %v2486 = vsub.f32 %v2468, %v2482
        %v2487 = vmul.f32 %v2483, %v2483
        %v2488 = vmul.f32 %v2484, %v2484
        %v2489 = vmul.f32 %v2485, %v2485
        %v2490 = vmul.f32 %v2486, %v2486
        %2491 = vadd.xlane.f32.xlu0 %v2487
        %v2492 = vpop.xlane.xlu0 %2491
        %2493 = vadd.xlane.f32.xlu0 %v2488
        %v2494 = vpop.xlane.xlu0 %2493
        %2495 = vadd.xlane.f32.xlu0 %v2489
        %v2496 = vpop.xlane.xlu0 %2495
        %2497 = vadd.xlane.f32.xlu0 %v2490
        %v2498 = vpop.xlane.xlu0 %2497
        %v2499 = vmul.f32 %v2492, %v814
        %v2500 = vmul.f32 %v2494, %v814
        %v2501 = vmul.f32 %v2496, %v814
        %v2502 = vmul.f32 %v2498, %v814
        %v2503 = vadd.f32 %v2499, 1e-05
        %v2504 = vadd.f32 %v2500, 1e-05
        %v2505 = vadd.f32 %v2501, 1e-05
        %v2506 = vadd.f32 %v2502, 1e-05
        %v2507 = vrsqrt.pop %v2503
        %v2508 = vrsqrt.pop %v2504
        %v2509 = vrsqrt.pop %v2505
        %v2510 = vrsqrt.pop %v2506
        %v2511 = vmul.f32 %v2483, %v2507
        %v2512 = vmul.f32 %v2484, %v2508
        %v2513 = vmul.f32 %v2485, %v2509
        %v2514 = vmul.f32 %v2486, %v2510
        %v2516 = vlaneseq
        %v2517 = vshrl.u32 %v2516, 7
        %v2518 = vsub.s32 0, %v2517
        %v2519 = vrot.slane %v2469, %v2518
        %v2521 = vmul.f32 %v2511, %v2519
        %v2522 = vmul.f32 %v2512, %v2519
        %v2523 = vmul.f32 %v2513, %v2519
        %v2524 = vmul.f32 %v2514, %v2519
        %v2526 = vlaneseq
        %v2527 = vshrl.u32 %v2526, 7
        %v2528 = vsub.s32 0, %v2527
        %v2529 = vrot.slane %v2470, %v2528
        %v2531 = vadd.f32 %v2521, %v2529
        %v2532 = vadd.f32 %v2522, %v2529
        %v2533 = vadd.f32 %v2523, %v2529
        %v2534 = vadd.f32 %v2524, %v2529
        %v2535 = vpack.c.bf16 %v2532, %v2531
        %v2536 = vpack.c.bf16 %v2534, %v2533
        %v2537 = vld [vmem:[%s647] sm:$0xff]
        %v2538 = vld [vmem:[%s647 + $0x8] sm:$0xff]
        %v2539 = vld [vmem:[%s647 + $0x10] sm:$0xff]
        %v2540 = vld [vmem:[%s647 + $0x18] sm:$0xff]
        %v2541 = vld [vmem:[%s647 + $0x20] sm:$0xff]
        %v2542 = vld [vmem:[%s647 + $0x28] sm:$0xff]
        %v2543 = vld [vmem:[%s647 + $0x30] sm:$0xff]
        %v2544 = vld [vmem:[%s647 + $0x38] sm:$0xff]
        %v2545 = vld [vmem:[%s647 + $0x40] sm:$0xff]
        %v2546 = vld [vmem:[%s647 + $0x48] sm:$0xff]
        %v2547 = vld [vmem:[%s647 + $0x50] sm:$0xff]
        %v2548 = vld [vmem:[%s647 + $0x58] sm:$0xff]
        %v2549 = vld [vmem:[%s647 + $0x60] sm:$0xff]
        %v2550 = vld [vmem:[%s647 + $0x68] sm:$0xff]
        %v2551 = vld [vmem:[%s647 + $0x70] sm:$0xff]
        %v2552 = vld [vmem:[%s647 + $0x78] sm:$0xff]
        %v2553 = vld [vmem:[%s647 + $0x80] sm:$0xff]
        %v2554 = vld [vmem:[%s647 + $0x88] sm:$0xff]
        %v2555 = vld [vmem:[%s647 + $0x90] sm:$0xff]
        %v2556 = vld [vmem:[%s647 + $0x98] sm:$0xff]
        %v2557 = vld [vmem:[%s647 + $0xa0] sm:$0xff]
        %v2558 = vld [vmem:[%s647 + $0xa8] sm:$0xff]
        %v2559 = vld [vmem:[%s647 + $0xb0] sm:$0xff]
        %v2560 = vld [vmem:[%s647 + $0xb8] sm:$0xff]
        %v2561 = vld [vmem:[%s647 + $0xc0] sm:$0xff]
        %v2562 = vld [vmem:[%s647 + $0xc8] sm:$0xff]
        %v2563 = vld [vmem:[%s647 + $0xd0] sm:$0xff]
        %v2564 = vld [vmem:[%s647 + $0xd8] sm:$0xff]
        %v2565 = vld [vmem:[%s647 + $0xe0] sm:$0xff]
        %v2566 = vld [vmem:[%s647 + $0xe8] sm:$0xff]
        %v2567 = vld [vmem:[%s647 + $0xf0] sm:$0xff]
        %v2568 = vld [vmem:[%s647 + $0xf8] sm:$0xff]
        %v2569 = vld [vmem:[%s776] sm:$0xf]
        %v2571 = vlaneseq
        %v2572 = vshrl.u32 %v2571, 7
        %v2573 = vsub.s32 0, %v2572
        %v2574 = vrot.slane %v2569, %v2573
        %v2575 = vlaneseq
        %v2576 = vshrl.u32 %v2575, 7
        %v2577 = vsub.s32 1, %v2576
        %v2578 = vrot.slane %v2569, %v2577
        %v2579 = vlaneseq
        %v2580 = vshrl.u32 %v2579, 7
        %v2581 = vsub.s32 2, %v2580
        %v2582 = vrot.slane %v2569, %v2581
        %v2583 = vlaneseq
        %v2584 = vshrl.u32 %v2583, 7
        %v2585 = vsub.s32 3, %v2584
        %v2586 = vrot.slane %v2569, %v2585
        %v2623 = vunpack.c.l.b16 %v2537
        %v2624 = vunpack.c.h.b16 %v2537
        %v2625 = vunpack.c.l.b16 %v2538
        %v2626 = vunpack.c.h.b16 %v2538
        %v2627 = vunpack.c.l.b16 %v2539
        %v2628 = vunpack.c.h.b16 %v2539
        %v2629 = vunpack.c.l.b16 %v2540
        %v2630 = vunpack.c.h.b16 %v2540
        %v2631 = vunpack.c.l.b16 %v2541
        %v2632 = vunpack.c.h.b16 %v2541
        %v2633 = vunpack.c.l.b16 %v2542
        %v2634 = vunpack.c.h.b16 %v2542
        %v2635 = vunpack.c.l.b16 %v2543
        %v2636 = vunpack.c.h.b16 %v2543
        %v2637 = vunpack.c.l.b16 %v2544
        %v2638 = vunpack.c.h.b16 %v2544
        %v2639 = vunpack.c.l.b16 %v2545
        %v2640 = vunpack.c.h.b16 %v2545
        %v2641 = vunpack.c.l.b16 %v2546
        %v2642 = vunpack.c.h.b16 %v2546
        %v2643 = vunpack.c.l.b16 %v2547
        %v2644 = vunpack.c.h.b16 %v2547
        %v2645 = vunpack.c.l.b16 %v2548
        %v2646 = vunpack.c.h.b16 %v2548
        %v2647 = vunpack.c.l.b16 %v2549
        %v2648 = vunpack.c.h.b16 %v2549
        %v2649 = vunpack.c.l.b16 %v2550
        %v2650 = vunpack.c.h.b16 %v2550
        %v2651 = vunpack.c.l.b16 %v2551
        %v2652 = vunpack.c.h.b16 %v2551
        %v2653 = vunpack.c.l.b16 %v2552
        %v2654 = vunpack.c.h.b16 %v2552
        %v2655 = vunpack.c.l.b16 %v2553
        %v2656 = vunpack.c.h.b16 %v2553
        %v2657 = vunpack.c.l.b16 %v2554
        %v2658 = vunpack.c.h.b16 %v2554
        %v2659 = vunpack.c.l.b16 %v2555
        %v2660 = vunpack.c.h.b16 %v2555
        %v2661 = vunpack.c.l.b16 %v2556
        %v2662 = vunpack.c.h.b16 %v2556
        %v2663 = vunpack.c.l.b16 %v2557
        %v2664 = vunpack.c.h.b16 %v2557
        %v2665 = vunpack.c.l.b16 %v2558
        %v2666 = vunpack.c.h.b16 %v2558
        %v2667 = vunpack.c.l.b16 %v2559
        %v2668 = vunpack.c.h.b16 %v2559
        %v2669 = vunpack.c.l.b16 %v2560
        %v2670 = vunpack.c.h.b16 %v2560
        %v2671 = vunpack.c.l.b16 %v2561
        %v2672 = vunpack.c.h.b16 %v2561
        %v2673 = vunpack.c.l.b16 %v2562
        %v2674 = vunpack.c.h.b16 %v2562
        %v2675 = vunpack.c.l.b16 %v2563
        %v2676 = vunpack.c.h.b16 %v2563
        %v2677 = vunpack.c.l.b16 %v2564
        %v2678 = vunpack.c.h.b16 %v2564
        %v2679 = vunpack.c.l.b16 %v2565
        %v2680 = vunpack.c.h.b16 %v2565
        %v2681 = vunpack.c.l.b16 %v2566
        %v2682 = vunpack.c.h.b16 %v2566
        %v2683 = vunpack.c.l.b16 %v2567
        %v2684 = vunpack.c.h.b16 %v2567
        %v2685 = vunpack.c.l.b16 %v2568
        %v2686 = vunpack.c.h.b16 %v2568
        %v2687 = vpack.c.b16 %v2627, %v2623
        %v2688 = vpack.c.b16 %v2628, %v2624
        %v2689 = vpack.c.b16 %v2629, %v2625
        %v2690 = vpack.c.b16 %v2630, %v2626
        %v2691 = vpack.c.b16 %v2635, %v2631
        %v2692 = vpack.c.b16 %v2636, %v2632
        %v2693 = vpack.c.b16 %v2637, %v2633
        %v2694 = vpack.c.b16 %v2638, %v2634
        %v2695 = vpack.c.b16 %v2643, %v2639
        %v2696 = vpack.c.b16 %v2644, %v2640
        %v2697 = vpack.c.b16 %v2645, %v2641
        %v2698 = vpack.c.b16 %v2646, %v2642
        %v2699 = vpack.c.b16 %v2651, %v2647
        %v2700 = vpack.c.b16 %v2652, %v2648
        %v2701 = vpack.c.b16 %v2653, %v2649
        %v2702 = vpack.c.b16 %v2654, %v2650
        %v2703 = vpack.c.b16 %v2659, %v2655
        %v2704 = vpack.c.b16 %v2660, %v2656
        %v2705 = vpack.c.b16 %v2661, %v2657
        %v2706 = vpack.c.b16 %v2662, %v2658
        %v2707 = vpack.c.b16 %v2667, %v2663
        %v2708 = vpack.c.b16 %v2668, %v2664
        %v2709 = vpack.c.b16 %v2669, %v2665
        %v2710 = vpack.c.b16 %v2670, %v2666
        %v2711 = vpack.c.b16 %v2675, %v2671
        %v2712 = vpack.c.b16 %v2676, %v2672
        %v2713 = vpack.c.b16 %v2677, %v2673
        %v2714 = vpack.c.b16 %v2678, %v2674
        %v2715 = vpack.c.b16 %v2683, %v2679
        %v2716 = vpack.c.b16 %v2684, %v2680
        %v2717 = vpack.c.b16 %v2685, %v2681
        %v2718 = vpack.c.b16 %v2686, %v2682
        %2751 = vmatprep.subr.bf16.mxu0 %v2716
        %2752 = vmatpush1.bf16.msra.mxu0 %v2715
        %2753 = vmatprep.subr.bf16.mxu0 %v2712
        %2754 = vmatpush1.bf16.msra.mxu0 %v2711
        %2755 = vmatprep.subr.bf16.mxu0 %v2708
        %2756 = vmatpush1.bf16.msra.mxu0 %v2707
        %2757 = vmatprep.subr.bf16.mxu0 %v2704
        %2758 = vmatpush1.bf16.msra.mxu0 %v2703
        %2759 = vmatprep.subr.bf16.mxu0 %v2700
        %2760 = vmatpush1.bf16.msra.mxu0 %v2699
        %2761 = vmatprep.subr.bf16.mxu0 %v2696
        %2762 = vmatpush1.bf16.msra.mxu0 %v2695
        %2763 = vmatprep.subr.bf16.mxu0 %v2692
        %2764 = vmatpush1.bf16.msra.mxu0 %v2691
        %2765 = vmatprep.subr.bf16.mxu0 %v2688
        %2766 = vmatpush1.bf16.msra.mxu0 %v2687
        %2767 = vmatprep.subr.bf16.mxu0 0
        %2768 = vmatpush2.bf16.msra.mxu0 0
        %2769 = vmatprep.subr.bf16.mxu0 0
        %2770 = vmatpush2.bf16.msra.mxu0 0
        %2771 = vmatprep.subr.bf16.mxu0 0
        %2772 = vmatpush2.bf16.msra.mxu0 0
        %2773 = vmatprep.subr.bf16.mxu0 0
        %2774 = vmatpush2.bf16.msra.mxu0 0
        %2775 = vmatprep.subr.bf16.mxu0 0
        %2776 = vmatpush2.bf16.msra.mxu0 0
        %2777 = vmatprep.subr.bf16.mxu0 0
        %2778 = vmatpush2.bf16.msra.mxu0 0
        %2779 = vmatprep.subr.bf16.mxu0 0
        %2780 = vmatpush2.bf16.msra.mxu0 0
        %2781 = vmatprep.subr.bf16.mxu0 0
        %2782 = vmatpush2.bf16.msra.mxu0 0
        %2783 = vmatprep.mubr.bf16.mxu0 0
        %2784 = vmatmul.mubr.bf16.gmra.mxu0 %v2535
        %v2785 = vpop.f32.mrf.mxu0
        %v2786 = vadd.f32 %v2574, %v2785
        %v2787 = vpop.f32.mrf.mxu0
        %v2788 = vadd.f32 %v2578, %v2787
        %v2789 = vpop.f32.mrf.mxu0
        %v2790 = vadd.f32 %v2574, %v2789
        %v2791 = vpop.f32.mrf.mxu0
        %v2792 = vadd.f32 %v2578, %v2791
        %2793 = vmatprep.mubr.bf16.mxu0 0
        %2794 = vmatmul.mubr.bf16.gmra.mxu0 %v2536
        %v2795 = vpop.f32.mrf.mxu0
        %v2796 = vadd.f32 %v2574, %v2795
        %v2797 = vpop.f32.mrf.mxu0
        %v2798 = vadd.f32 %v2578, %v2797
        %v2799 = vpop.f32.mrf.mxu0
        %v2800 = vadd.f32 %v2574, %v2799
        %v2801 = vpop.f32.mrf.mxu0
        %v2802 = vadd.f32 %v2578, %v2801
        %2803 = vdwg.mxu0
        %2804 = vmatprep.subr.bf16.mxu0 %v2718
        %2805 = vmatpush1.bf16.msra.mxu0 %v2717
        %2806 = vmatprep.subr.bf16.mxu0 %v2714
        %2807 = vmatpush1.bf16.msra.mxu0 %v2713
        %2808 = vmatprep.subr.bf16.mxu0 %v2710
        %2809 = vmatpush1.bf16.msra.mxu0 %v2709
        %2810 = vmatprep.subr.bf16.mxu0 %v2706
        %2811 = vmatpush1.bf16.msra.mxu0 %v2705
        %2812 = vmatprep.subr.bf16.mxu0 %v2702
        %2813 = vmatpush1.bf16.msra.mxu0 %v2701
        %2814 = vmatprep.subr.bf16.mxu0 %v2698
        %2815 = vmatpush1.bf16.msra.mxu0 %v2697
        %2816 = vmatprep.subr.bf16.mxu0 %v2694
        %2817 = vmatpush1.bf16.msra.mxu0 %v2693
        %2818 = vmatprep.subr.bf16.mxu0 %v2690
        %2819 = vmatpush1.bf16.msra.mxu0 %v2689
        %2820 = vmatprep.subr.bf16.mxu0 0
        %2821 = vmatpush2.bf16.msra.mxu0 0
        %2822 = vmatprep.subr.bf16.mxu0 0
        %2823 = vmatpush2.bf16.msra.mxu0 0
        %2824 = vmatprep.subr.bf16.mxu0 0
        %2825 = vmatpush2.bf16.msra.mxu0 0
        %2826 = vmatprep.subr.bf16.mxu0 0
        %2827 = vmatpush2.bf16.msra.mxu0 0
        %2828 = vmatprep.subr.bf16.mxu0 0
        %2829 = vmatpush2.bf16.msra.mxu0 0
        %2830 = vmatprep.subr.bf16.mxu0 0
        %2831 = vmatpush2.bf16.msra.mxu0 0
        %2832 = vmatprep.subr.bf16.mxu0 0
        %2833 = vmatpush2.bf16.msra.mxu0 0
        %2834 = vmatprep.subr.bf16.mxu0 0
        %2835 = vmatpush2.bf16.msra.mxu0 0
        %2836 = vmatprep.mubr.bf16.mxu0 0
        %2837 = vmatmul.mubr.bf16.gmra.mxu0 %v2535
        %v2838 = vpop.f32.mrf.mxu0
        %v2839 = vadd.f32 %v2582, %v2838
        %v2840 = vpop.f32.mrf.mxu0
        %v2841 = vadd.f32 %v2586, %v2840
        %v2842 = vpop.f32.mrf.mxu0
        %v2843 = vadd.f32 %v2582, %v2842
        %v2844 = vpop.f32.mrf.mxu0
        %v2845 = vadd.f32 %v2586, %v2844
        %2846 = vmatprep.mubr.bf16.mxu0 0
        %2847 = vmatmul.mubr.bf16.gmra.mxu0 %v2536
        %v2848 = vpop.f32.mrf.mxu0
        %v2849 = vadd.f32 %v2582, %v2848
        %v2850 = vpop.f32.mrf.mxu0
        %v2851 = vadd.f32 %v2586, %v2850
        %v2852 = vpop.f32.mrf.mxu0
        %v2853 = vadd.f32 %v2582, %v2852
        %v2854 = vpop.f32.mrf.mxu0
        %v2855 = vadd.f32 %v2586, %v2854
        %2856 = vdwg.mxu0
        %v2857 = vmul.f32 %v2786, 0.5
        %v2858 = vmul.f32 %v2788, 0.5
        %v2859 = vmul.f32 %v2839, 0.5
        %v2860 = vmul.f32 %v2841, 0.5
        %v2861 = vmul.f32 %v2790, 0.5
        %v2862 = vmul.f32 %v2792, 0.5
        %v2863 = vmul.f32 %v2843, 0.5
        %v2864 = vmul.f32 %v2845, 0.5
        %v2865 = vmul.f32 %v2796, 0.5
        %v2866 = vmul.f32 %v2798, 0.5
        %v2867 = vmul.f32 %v2849, 0.5
        %v2868 = vmul.f32 %v2851, 0.5
        %v2869 = vmul.f32 %v2800, 0.5
        %v2870 = vmul.f32 %v2802, 0.5
        %v2871 = vmul.f32 %v2853, 0.5
        %v2872 = vmul.f32 %v2855, 0.5
        %v2873 = vmul.f32 %v2786, 0.044715
        %v2874 = vmul.f32 %v2788, 0.044715
        %v2875 = vmul.f32 %v2839, 0.044715
        %v2876 = vmul.f32 %v2841, 0.044715
        %v2877 = vmul.f32 %v2790, 0.044715
        %v2878 = vmul.f32 %v2792, 0.044715
        %v2879 = vmul.f32 %v2843, 0.044715
        %v2880 = vmul.f32 %v2845, 0.044715
        %v2881 = vmul.f32 %v2796, 0.044715
        %v2882 = vmul.f32 %v2798, 0.044715
        %v2883 = vmul.f32 %v2849, 0.044715
        %v2884 = vmul.f32 %v2851, 0.044715
        %v2885 = vmul.f32 %v2800, 0.044715
        %v2886 = vmul.f32 %v2802, 0.044715
        %v2887 = vmul.f32 %v2853, 0.044715
        %v2888 = vmul.f32 %v2855, 0.044715
        %v2889 = vmul.f32 %v2873, %v2786
        %v2890 = vmul.f32 %v2874, %v2788
        %v2891 = vmul.f32 %v2875, %v2839
        %v2892 = vmul.f32 %v2876, %v2841
        %v2893 = vmul.f32 %v2877, %v2790
        %v2894 = vmul.f32 %v2878, %v2792
        %v2895 = vmul.f32 %v2879, %v2843
        %v2896 = vmul.f32 %v2880, %v2845
        %v2897 = vmul.f32 %v2881, %v2796
        %v2898 = vmul.f32 %v2882, %v2798
        %v2899 = vmul.f32 %v2883, %v2849
        %v2900 = vmul.f32 %v2884, %v2851
        %v2901 = vmul.f32 %v2885, %v2800
        %v2902 = vmul.f32 %v2886, %v2802
        %v2903 = vmul.f32 %v2887, %v2853
        %v2904 = vmul.f32 %v2888, %v2855
        %v2905 = vmul.f32 %v2889, %v2786
        %v2906 = vmul.f32 %v2890, %v2788
        %v2907 = vmul.f32 %v2891, %v2839
        %v2908 = vmul.f32 %v2892, %v2841
        %v2909 = vmul.f32 %v2893, %v2790
        %v2910 = vmul.f32 %v2894, %v2792
        %v2911 = vmul.f32 %v2895, %v2843
        %v2912 = vmul.f32 %v2896, %v2845
        %v2913 = vmul.f32 %v2897, %v2796
        %v2914 = vmul.f32 %v2898, %v2798
        %v2915 = vmul.f32 %v2899, %v2849
        %v2916 = vmul.f32 %v2900, %v2851
        %v2917 = vmul.f32 %v2901, %v2800
        %v2918 = vmul.f32 %v2902, %v2802
        %v2919 = vmul.f32 %v2903, %v2853
        %v2920 = vmul.f32 %v2904, %v2855
        %v2921 = vadd.f32 %v2786, %v2905
        %v2922 = vadd.f32 %v2788, %v2906
        %v2923 = vadd.f32 %v2839, %v2907
        %v2924 = vadd.f32 %v2841, %v2908
        %v2925 = vadd.f32 %v2790, %v2909
        %v2926 = vadd.f32 %v2792, %v2910
        %v2927 = vadd.f32 %v2843, %v2911
        %v2928 = vadd.f32 %v2845, %v2912
        %v2929 = vadd.f32 %v2796, %v2913
        %v2930 = vadd.f32 %v2798, %v2914
        %v2931 = vadd.f32 %v2849, %v2915
        %v2932 = vadd.f32 %v2851, %v2916
        %v2933 = vadd.f32 %v2800, %v2917
        %v2934 = vadd.f32 %v2802, %v2918
        %v2935 = vadd.f32 %v2853, %v2919
        %v2936 = vadd.f32 %v2855, %v2920
        %v2937 = vmul.f32 %v2921, 0.7978846
        %v2938 = vmul.f32 %v2922, 0.7978846
        %v2939 = vmul.f32 %v2923, 0.7978846
        %v2940 = vmul.f32 %v2924, 0.7978846
        %v2941 = vmul.f32 %v2925, 0.7978846
        %v2942 = vmul.f32 %v2926, 0.7978846
        %v2943 = vmul.f32 %v2927, 0.7978846
        %v2944 = vmul.f32 %v2928, 0.7978846
        %v2945 = vmul.f32 %v2929, 0.7978846
        %v2946 = vmul.f32 %v2930, 0.7978846
        %v2947 = vmul.f32 %v2931, 0.7978846
        %v2948 = vmul.f32 %v2932, 0.7978846
        %v2949 = vmul.f32 %v2933, 0.7978846
        %v2950 = vmul.f32 %v2934, 0.7978846
        %v2951 = vmul.f32 %v2935, 0.7978846
        %v2952 = vmul.f32 %v2936, 0.7978846
        %v2953 = vtanh.pop %v2937
        %v2954 = vtanh.pop %v2938
        %v2955 = vtanh.pop %v2939
        %v2956 = vtanh.pop %v2940
        %v2957 = vtanh.pop %v2941
        %v2958 = vtanh.pop %v2942
        %v2959 = vtanh.pop %v2943
        %v2960 = vtanh.pop %v2944
        %v2961 = vtanh.pop %v2945
        %v2962 = vtanh.pop %v2946
        %v2963 = vtanh.pop %v2947
        %v2964 = vtanh.pop %v2948
        %v2965 = vtanh.pop %v2949
        %v2966 = vtanh.pop %v2950
        %v2967 = vtanh.pop %v2951
        %v2968 = vtanh.pop %v2952
        %v2969 = vadd.f32 %v2953, 1.0
        %v2970 = vadd.f32 %v2954, 1.0
        %v2971 = vadd.f32 %v2955, 1.0
        %v2972 = vadd.f32 %v2956, 1.0
        %v2973 = vadd.f32 %v2957, 1.0
        %v2974 = vadd.f32 %v2958, 1.0
        %v2975 = vadd.f32 %v2959, 1.0
        %v2976 = vadd.f32 %v2960, 1.0
        %v2977 = vadd.f32 %v2961, 1.0
        %v2978 = vadd.f32 %v2962, 1.0
        %v2979 = vadd.f32 %v2963, 1.0
        %v2980 = vadd.f32 %v2964, 1.0
        %v2981 = vadd.f32 %v2965, 1.0
        %v2982 = vadd.f32 %v2966, 1.0
        %v2983 = vadd.f32 %v2967, 1.0
        %v2984 = vadd.f32 %v2968, 1.0
        %v2985 = vmul.f32 %v2857, %v2969
        %v2986 = vmul.f32 %v2858, %v2970
        %v2987 = vmul.f32 %v2859, %v2971
        %v2988 = vmul.f32 %v2860, %v2972
        %v2989 = vmul.f32 %v2861, %v2973
        %v2990 = vmul.f32 %v2862, %v2974
        %v2991 = vmul.f32 %v2863, %v2975
        %v2992 = vmul.f32 %v2864, %v2976
        %v2993 = vmul.f32 %v2865, %v2977
        %v2994 = vmul.f32 %v2866, %v2978
        %v2995 = vmul.f32 %v2867, %v2979
        %v2996 = vmul.f32 %v2868, %v2980
        %v2997 = vmul.f32 %v2869, %v2981
        %v2998 = vmul.f32 %v2870, %v2982
        %v2999 = vmul.f32 %v2871, %v2983
        %v3000 = vmul.f32 %v2872, %v2984
        %v3001 = vpack.c.bf16 %v2989, %v2985
        %v3002 = vpack.c.bf16 %v2990, %v2986
        %v3003 = vpack.c.bf16 %v2991, %v2987
        %v3004 = vpack.c.bf16 %v2992, %v2988
        %v3005 = vpack.c.bf16 %v2997, %v2993
        %v3006 = vpack.c.bf16 %v2998, %v2994
        %v3007 = vpack.c.bf16 %v2999, %v2995
        %v3008 = vpack.c.bf16 %v3000, %v2996
        %v3009 = vld [vmem:[%s656] sm:$0xf]
        %v3010 = vld [vmem:[%s656 + $0x4] sm:$0xf]
        %v3011 = vld [vmem:[%s656 + $0x8] sm:$0xf]
        %v3012 = vld [vmem:[%s656 + $0xc] sm:$0xf]
        %v3013 = vld [vmem:[%s656 + $0x10] sm:$0xf]
        %v3014 = vld [vmem:[%s656 + $0x14] sm:$0xf]
        %v3015 = vld [vmem:[%s656 + $0x18] sm:$0xf]
        %v3016 = vld [vmem:[%s656 + $0x1c] sm:$0xf]
        %v3017 = vld [vmem:[%s656 + $0x20] sm:$0xf]
        %v3018 = vld [vmem:[%s656 + $0x24] sm:$0xf]
        %v3019 = vld [vmem:[%s656 + $0x28] sm:$0xf]
        %v3020 = vld [vmem:[%s656 + $0x2c] sm:$0xf]
        %v3021 = vld [vmem:[%s656 + $0x30] sm:$0xf]
        %v3022 = vld [vmem:[%s656 + $0x34] sm:$0xf]
        %v3023 = vld [vmem:[%s656 + $0x38] sm:$0xf]
        %v3024 = vld [vmem:[%s656 + $0x3c] sm:$0xf]
        %v3025 = vld [vmem:[%s656 + $0x40] sm:$0xf]
        %v3026 = vld [vmem:[%s656 + $0x44] sm:$0xf]
        %v3027 = vld [vmem:[%s656 + $0x48] sm:$0xf]
        %v3028 = vld [vmem:[%s656 + $0x4c] sm:$0xf]
        %v3029 = vld [vmem:[%s656 + $0x50] sm:$0xf]
        %v3030 = vld [vmem:[%s656 + $0x54] sm:$0xf]
        %v3031 = vld [vmem:[%s656 + $0x58] sm:$0xf]
        %v3032 = vld [vmem:[%s656 + $0x5c] sm:$0xf]
        %v3033 = vld [vmem:[%s656 + $0x60] sm:$0xf]
        %v3034 = vld [vmem:[%s656 + $0x64] sm:$0xf]
        %v3035 = vld [vmem:[%s656 + $0x68] sm:$0xf]
        %v3036 = vld [vmem:[%s656 + $0x6c] sm:$0xf]
        %v3037 = vld [vmem:[%s656 + $0x70] sm:$0xf]
        %v3038 = vld [vmem:[%s656 + $0x74] sm:$0xf]
        %v3039 = vld [vmem:[%s656 + $0x78] sm:$0xf]
        %v3040 = vld [vmem:[%s656 + $0x7c] sm:$0xf]
        %v3041 = vld [vmem:[%s656 + $0x80] sm:$0xf]
        %v3042 = vld [vmem:[%s656 + $0x84] sm:$0xf]
        %v3043 = vld [vmem:[%s656 + $0x88] sm:$0xf]
        %v3044 = vld [vmem:[%s656 + $0x8c] sm:$0xf]
        %v3045 = vld [vmem:[%s656 + $0x90] sm:$0xf]
        %v3046 = vld [vmem:[%s656 + $0x94] sm:$0xf]
        %v3047 = vld [vmem:[%s656 + $0x98] sm:$0xf]
        %v3048 = vld [vmem:[%s656 + $0x9c] sm:$0xf]
        %v3049 = vld [vmem:[%s656 + $0xa0] sm:$0xf]
        %v3050 = vld [vmem:[%s656 + $0xa4] sm:$0xf]
        %v3051 = vld [vmem:[%s656 + $0xa8] sm:$0xf]
        %v3052 = vld [vmem:[%s656 + $0xac] sm:$0xf]
        %v3053 = vld [vmem:[%s656 + $0xb0] sm:$0xf]
        %v3054 = vld [vmem:[%s656 + $0xb4] sm:$0xf]
        %v3055 = vld [vmem:[%s656 + $0xb8] sm:$0xf]
        %v3056 = vld [vmem:[%s656 + $0xbc] sm:$0xf]
        %v3057 = vld [vmem:[%s656 + $0xc0] sm:$0xf]
        %v3058 = vld [vmem:[%s656 + $0xc4] sm:$0xf]
        %v3059 = vld [vmem:[%s656 + $0xc8] sm:$0xf]
        %v3060 = vld [vmem:[%s656 + $0xcc] sm:$0xf]
        %v3061 = vld [vmem:[%s656 + $0xd0] sm:$0xf]
        %v3062 = vld [vmem:[%s656 + $0xd4] sm:$0xf]
        %v3063 = vld [vmem:[%s656 + $0xd8] sm:$0xf]
        %v3064 = vld [vmem:[%s656 + $0xdc] sm:$0xf]
        %v3065 = vld [vmem:[%s656 + $0xe0] sm:$0xf]
        %v3066 = vld [vmem:[%s656 + $0xe4] sm:$0xf]
        %v3067 = vld [vmem:[%s656 + $0xe8] sm:$0xf]
        %v3068 = vld [vmem:[%s656 + $0xec] sm:$0xf]
        %v3069 = vld [vmem:[%s656 + $0xf0] sm:$0xf]
        %v3070 = vld [vmem:[%s656 + $0xf4] sm:$0xf]
        %v3071 = vld [vmem:[%s656 + $0xf8] sm:$0xf]
        %v3072 = vld [vmem:[%s656 + $0xfc] sm:$0xf]
        %v3073 = vld [vmem:[%s779] sm:$0x1]
        %v3075 = vlaneseq
        %v3076 = vshrl.u32 %v3075, 7
        %v3077 = vsub.s32 0, %v3076
        %v3078 = vrot.slane %v3073, %v3077
        %v3144 = vunpack.c.l.b16 %v3009
        %v3145 = vunpack.c.l.b16 %v3010
        %v3146 = vunpack.c.l.b16 %v3011
        %v3147 = vunpack.c.l.b16 %v3012
        %v3148 = vunpack.c.l.b16 %v3013
        %v3149 = vunpack.c.l.b16 %v3014
        %v3150 = vunpack.c.l.b16 %v3015
        %v3151 = vunpack.c.l.b16 %v3016
        %v3152 = vunpack.c.l.b16 %v3017
        %v3153 = vunpack.c.l.b16 %v3018
        %v3154 = vunpack.c.l.b16 %v3019
        %v3155 = vunpack.c.l.b16 %v3020
        %v3156 = vunpack.c.l.b16 %v3021
        %v3157 = vunpack.c.l.b16 %v3022
        %v3158 = vunpack.c.l.b16 %v3023
        %v3159 = vunpack.c.l.b16 %v3024
        %v3160 = vunpack.c.l.b16 %v3025
        %v3161 = vunpack.c.l.b16 %v3026
        %v3162 = vunpack.c.l.b16 %v3027
        %v3163 = vunpack.c.l.b16 %v3028
        %v3164 = vunpack.c.l.b16 %v3029
        %v3165 = vunpack.c.l.b16 %v3030
        %v3166 = vunpack.c.l.b16 %v3031
        %v3167 = vunpack.c.l.b16 %v3032
        %v3168 = vunpack.c.l.b16 %v3033
        %v3169 = vunpack.c.l.b16 %v3034
        %v3170 = vunpack.c.l.b16 %v3035
        %v3171 = vunpack.c.l.b16 %v3036
        %v3172 = vunpack.c.l.b16 %v3037
        %v3173 = vunpack.c.l.b16 %v3038
        %v3174 = vunpack.c.l.b16 %v3039
        %v3175 = vunpack.c.l.b16 %v3040
        %v3176 = vunpack.c.l.b16 %v3041
        %v3177 = vunpack.c.l.b16 %v3042
        %v3178 = vunpack.c.l.b16 %v3043
        %v3179 = vunpack.c.l.b16 %v3044
        %v3180 = vunpack.c.l.b16 %v3045
        %v3181 = vunpack.c.l.b16 %v3046
        %v3182 = vunpack.c.l.b16 %v3047
        %v3183 = vunpack.c.l.b16 %v3048
        %v3184 = vunpack.c.l.b16 %v3049
        %v3185 = vunpack.c.l.b16 %v3050
        %v3186 = vunpack.c.l.b16 %v3051
        %v3187 = vunpack.c.l.b16 %v3052
        %v3188 = vunpack.c.l.b16 %v3053
        %v3189 = vunpack.c.l.b16 %v3054
        %v3190 = vunpack.c.l.b16 %v3055
        %v3191 = vunpack.c.l.b16 %v3056
        %v3192 = vunpack.c.l.b16 %v3057
        %v3193 = vunpack.c.l.b16 %v3058
        %v3194 = vunpack.c.l.b16 %v3059
        %v3195 = vunpack.c.l.b16 %v3060
        %v3196 = vunpack.c.l.b16 %v3061
        %v3197 = vunpack.c.l.b16 %v3062
        %v3198 = vunpack.c.l.b16 %v3063
        %v3199 = vunpack.c.l.b16 %v3064
        %v3200 = vunpack.c.l.b16 %v3065
        %v3201 = vunpack.c.l.b16 %v3066
        %v3202 = vunpack.c.l.b16 %v3067
        %v3203 = vunpack.c.l.b16 %v3068
        %v3204 = vunpack.c.l.b16 %v3069
        %v3205 = vunpack.c.l.b16 %v3070
        %v3206 = vunpack.c.l.b16 %v3071
        %v3207 = vunpack.c.l.b16 %v3072
        %v3208 = vpack.c.b16 %v3145, %v3144
        %v3209 = vpack.c.b16 %v3147, %v3146
        %v3210 = vpack.c.b16 %v3149, %v3148
        %v3211 = vpack.c.b16 %v3151, %v3150
        %v3212 = vpack.c.b16 %v3153, %v3152
        %v3213 = vpack.c.b16 %v3155, %v3154
        %v3214 = vpack.c.b16 %v3157, %v3156
        %v3215 = vpack.c.b16 %v3159, %v3158
        %v3216 = vpack.c.b16 %v3161, %v3160
        %v3217 = vpack.c.b16 %v3163, %v3162
        %v3218 = vpack.c.b16 %v3165, %v3164
        %v3219 = vpack.c.b16 %v3167, %v3166
        %v3220 = vpack.c.b16 %v3169, %v3168
        %v3221 = vpack.c.b16 %v3171, %v3170
        %v3222 = vpack.c.b16 %v3173, %v3172
        %v3223 = vpack.c.b16 %v3175, %v3174
        %v3224 = vpack.c.b16 %v3177, %v3176
        %v3225 = vpack.c.b16 %v3179, %v3178
        %v3226 = vpack.c.b16 %v3181, %v3180
        %v3227 = vpack.c.b16 %v3183, %v3182
        %v3228 = vpack.c.b16 %v3185, %v3184
        %v3229 = vpack.c.b16 %v3187, %v3186
        %v3230 = vpack.c.b16 %v3189, %v3188
        %v3231 = vpack.c.b16 %v3191, %v3190
        %v3232 = vpack.c.b16 %v3193, %v3192
        %v3233 = vpack.c.b16 %v3195, %v3194
        %v3234 = vpack.c.b16 %v3197, %v3196
        %v3235 = vpack.c.b16 %v3199, %v3198
        %v3236 = vpack.c.b16 %v3201, %v3200
        %v3237 = vpack.c.b16 %v3203, %v3202
        %v3238 = vpack.c.b16 %v3205, %v3204
        %v3239 = vpack.c.b16 %v3207, %v3206
        %3272 = vmatprep.subr.bf16.mxu0 0
        %3273 = vmatpush1.bf16.msra.mxu0 %v3215
        %3274 = vmatprep.subr.bf16.mxu0 0
        %3275 = vmatpush1.bf16.msra.mxu0 %v3214
        %3276 = vmatprep.subr.bf16.mxu0 0
        %3277 = vmatpush1.bf16.msra.mxu0 %v3213
        %3278 = vmatprep.subr.bf16.mxu0 0
        %3279 = vmatpush1.bf16.msra.mxu0 %v3212
        %3280 = vmatprep.subr.bf16.mxu0 0
        %3281 = vmatpush1.bf16.msra.mxu0 %v3211
        %3282 = vmatprep.subr.bf16.mxu0 0
        %3283 = vmatpush1.bf16.msra.mxu0 %v3210
        %3284 = vmatprep.subr.bf16.mxu0 0
        %3285 = vmatpush1.bf16.msra.mxu0 %v3209
        %3286 = vmatprep.subr.bf16.mxu0 0
        %3287 = vmatpush1.bf16.msra.mxu0 %v3208
        %3288 = vmatprep.subr.bf16.mxu0 0
        %3289 = vmatpush2.bf16.msra.mxu0 %v3223
        %3290 = vmatprep.subr.bf16.mxu0 0
        %3291 = vmatpush2.bf16.msra.mxu0 %v3222
        %3292 = vmatprep.subr.bf16.mxu0 0
        %3293 = vmatpush2.bf16.msra.mxu0 %v3221
        %3294 = vmatprep.subr.bf16.mxu0 0
        %3295 = vmatpush2.bf16.msra.mxu0 %v3220
        %3296 = vmatprep.subr.bf16.mxu0 0
        %3297 = vmatpush2.bf16.msra.mxu0 %v3219
        %3298 = vmatprep.subr.bf16.mxu0 0
        %3299 = vmatpush2.bf16.msra.mxu0 %v3218
        %3300 = vmatprep.subr.bf16.mxu0 0
        %3301 = vmatpush2.bf16.msra.mxu0 %v3217
        %3302 = vmatprep.subr.bf16.mxu0 0
        %3303 = vmatpush2.bf16.msra.mxu0 %v3216
        %3304 = vmatprep.mubr.bf16.mxu0 %v3002
        %3305 = vmatmul.mubr.bf16.gmra.mxu0 %v3001
        %v3306 = vpop.f32.mrf.mxu0
        %v3307 = vadd.f32 %v3078, %v3306
        %v3308 = vpop.f32.mrf.mxu0
        %v3309 = vpop.f32.mrf.mxu0
        %v3310 = vadd.f32 %v3078, %v3309
        %v3311 = vpop.f32.mrf.mxu0
        %3312 = vmatprep.mubr.bf16.mxu0 %v3006
        %3313 = vmatmul.mubr.bf16.gmra.mxu0 %v3005
        %v3314 = vpop.f32.mrf.mxu0
        %v3315 = vadd.f32 %v3078, %v3314
        %v3316 = vpop.f32.mrf.mxu0
        %v3317 = vpop.f32.mrf.mxu0
        %v3318 = vadd.f32 %v3078, %v3317
        %v3319 = vpop.f32.mrf.mxu0
        %3320 = vdwg.mxu0
        %3321 = vmatprep.subr.bf16.mxu0 0
        %3322 = vmatpush1.bf16.msra.mxu0 %v3231
        %3323 = vmatprep.subr.bf16.mxu0 0
        %3324 = vmatpush1.bf16.msra.mxu0 %v3230
        %3325 = vmatprep.subr.bf16.mxu0 0
        %3326 = vmatpush1.bf16.msra.mxu0 %v3229
        %3327 = vmatprep.subr.bf16.mxu0 0
        %3328 = vmatpush1.bf16.msra.mxu0 %v3228
        %3329 = vmatprep.subr.bf16.mxu0 0
        %3330 = vmatpush1.bf16.msra.mxu0 %v3227
        %3331 = vmatprep.subr.bf16.mxu0 0
        %3332 = vmatpush1.bf16.msra.mxu0 %v3226
        %3333 = vmatprep.subr.bf16.mxu0 0
        %3334 = vmatpush1.bf16.msra.mxu0 %v3225
        %3335 = vmatprep.subr.bf16.mxu0 0
        %3336 = vmatpush1.bf16.msra.mxu0 %v3224
        %3337 = vmatprep.subr.bf16.mxu0 0
        %3338 = vmatpush2.bf16.msra.mxu0 %v3239
        %3339 = vmatprep.subr.bf16.mxu0 0
        %3340 = vmatpush2.bf16.msra.mxu0 %v3238
        %3341 = vmatprep.subr.bf16.mxu0 0
        %3342 = vmatpush2.bf16.msra.mxu0 %v3237
        %3343 = vmatprep.subr.bf16.mxu0 0
        %3344 = vmatpush2.bf16.msra.mxu0 %v3236
        %3345 = vmatprep.subr.bf16.mxu0 0
        %3346 = vmatpush2.bf16.msra.mxu0 %v3235
        %3347 = vmatprep.subr.bf16.mxu0 0
        %3348 = vmatpush2.bf16.msra.mxu0 %v3234
        %3349 = vmatprep.subr.bf16.mxu0 0
        %3350 = vmatpush2.bf16.msra.mxu0 %v3233
        %3351 = vmatprep.subr.bf16.mxu0 0
        %3352 = vmatpush2.bf16.msra.mxu0 %v3232
        %3353 = vmatprep.mubr.bf16.mxu0 %v3004
        %3354 = vmatmul.mubr.bf16.gmra.mxu0 %v3003
        %v3355 = vpop.f32.mrf.mxu0
        %v3356 = vadd.f32 %v3307, %v3355
        %v3357 = vpop.f32.mrf.mxu0
        %v3358 = vpop.f32.mrf.mxu0
        %v3359 = vadd.f32 %v3310, %v3358
        %v3360 = vpop.f32.mrf.mxu0
        %3361 = vmatprep.mubr.bf16.mxu0 %v3008
        %3362 = vmatmul.mubr.bf16.gmra.mxu0 %v3007
        %v3363 = vpop.f32.mrf.mxu0
        %v3364 = vadd.f32 %v3315, %v3363
        %v3365 = vpop.f32.mrf.mxu0
        %v3366 = vpop.f32.mrf.mxu0
        %v3367 = vadd.f32 %v3318, %v3366
        %v3368 = vpop.f32.mrf.mxu0
        %3369 = vdwg.mxu0
        %v3370 = vsel %vm1741, %v3356, 0.0
        %v3371 = vsel %vm1742, %v3359, 0.0
        %v3372 = vsel %vm2346, %v3364, 0.0
        %v3373 = vsel %vm2347, %v3367, 0.0
        %v3374 = vadd.f32 %v2465, %v3370
        %v3375 = vadd.f32 %v2466, %v3371
        %v3376 = vadd.f32 %v2467, %v3372
        %v3377 = vadd.f32 %v2468, %v3373
        %3378 = vst [vmem:[#allocation2] sm:$0xff] %v3374
        %3379 = vst [vmem:[#allocation2 + $0x8] sm:$0xff] %v3375
        %3380 = vst [vmem:[#allocation2 + $0x10] sm:$0xff] %v3376
        %3381 = vst [vmem:[#allocation2 + $0x18] sm:$0xff] %v3377
        %3382 = vst [vmem:[%s749] sm:$0xff] %v3374
        %3383 = vst [vmem:[%s749 + $0x8] sm:$0xff] %v3375
        %3384 = vst [vmem:[%s749 + $0x10] sm:$0xff] %v3376
        %3385 = vst [vmem:[%s749 + $0x18] sm:$0xff] %v3377
        %s3386 = sand.u32 %s397, 1
        %s3387 = scalar_lea.sflag [#allocation5], %s3386
        %s3388 = sand.u32 %s397, 1
        %s3389 = smul.addr %s3388, 32
        %s3390 = scalar_lea.vmem [#allocation14], %s3389
        // Predicated region
        $region101: #{tpu_custom_call.1} parent=71 // pred_check
          %p3391 = pneg %p407
        $region102: #{tpu_custom_call.1} parent=71 // pred_check_branch
          %3393 = sbr.rel (%p3391) target = $region104
        $region103: #{tpu_custom_call.1} parent=71 // pred_region
          %s3394 = smul.u32 4, %s43
          %s3396 = ssub.s32 512, 512
          %3397 = vsyncadd %s3387, %s3396
          %s3398 = smul.addr %s3394, 128
          %s3399 = scalar_lea.hbm %s13, %s3398
          %s3400 = sshll.u32 %s3390, 4
          %s3401 = int_to_ptr.vmem [resolvable:$true] %s3400
          %3406 = dma.vmem_to_hbm [thread:$0]  %s3401, 512, %s3399, %s3387, 128, 128, 8
        $region104: #{tpu_custom_call.1} parent=71 // pred_fallthru
          _
      $region72: #{tpu_custom_call.1} parent=5 // pred_fallthru
        _
      %p3407 = scmp.le.s32.totalorder 2, %s34
      // Predicated region
      $region105: #{tpu_custom_call.1} parent=5 // pred_check
        %p3408 = pneg %p3407
      $region106: #{tpu_custom_call.1} parent=5 // pred_check_branch
        %3410 = sbr.rel (%p3408) target = $region108
      $region107: #{tpu_custom_call.1} parent=5 // pred_region
        %s3411 = ssub.s32 %s34, 2
        // Predicated region
        $region109: #{tpu_custom_call.1} parent=107 // pred_check
          %p3412 = pneg %p413
        $region110: #{tpu_custom_call.1} parent=107 // pred_check_branch
          %3414 = sbr.rel (%p3412) target = $region112
        $region111: #{tpu_custom_call.1} parent=107 // pred_region
          %s3415 = sand.u32 %s398, 1
          %s3416 = scalar_lea.sflag [#allocation5], %s3415
          %s3417 = sand.u32 %s398, 1
          %s3418 = smul.addr %s3417, 32
          %s3419 = scalar_lea.vmem [#allocation14], %s3418
          %3420 = dma.done %s3416, 512
        $region112: #{tpu_custom_call.1} parent=107 // pred_fallthru
          _
      $region108: #{tpu_custom_call.1} parent=5 // pred_fallthru
        _
    $region6: #{tpu_custom_call.1} parent=1 // loop_footer
      %s38 = sadd.s32 1, %s34
    $region7: #{tpu_custom_call.1} parent=1 // loop_footer_branch
      %33 = sbr.rel target = $region3
    $region8: #{tpu_custom_call.1} parent=1 // loop_exit
      _
    %3421 = vsyncpa [#allocation4], 1
    %s3422 = scalar_lea.sflag [#allocation4], 1
    %3423 = vsyncpa %s3422, 1
    %3424 = vsyncpa [#allocation7], 1
    %s3425 = scalar_lea.sflag [#allocation7], 1
    %3426 = vsyncpa %s3425, 1
    %3427 = vsyncpa [#allocation10], 1
    %s3428 = scalar_lea.sflag [#allocation10], 1
    %3429 = vsyncpa %s3428, 1
    %3430 = vsyncpa [#allocation13], 1
    %s3431 = scalar_lea.sflag [#allocation13], 1
    %3432 = vsyncpa %s3431, 1
    %3433 = vsyncpa [#allocation5], 1
    %s3434 = scalar_lea.sflag [#allocation5], 1
    %3435 = vsyncpa %s3434, 1

</llo_original>
